<compile_context>
chip_gen: v5e
topology: v5e:2x2
jax: 0.10.0
libtpu: 0.0.40
codegen_flags: <defaults>
</compile_context>

<pallas_src>
import functools

import jax
import jax.numpy as jnp
from jax import lax
from jax.experimental import pallas as pl
from jax.experimental.pallas import tpu as pltpu
import numpy as np


_VMEM_SPEC = pl.BlockSpec(memory_space=pltpu.MemorySpace.VMEM)


# ----------------------------- Pallas kernels ------------------------------

def _bilstm_layer_kernel(T, B, H, want_seq,
                         x_ref, mask_ref, w_ih_ref, w_hh_f_ref, w_hh_b_ref,
                         b_ref, seq_ref, pooled_ref, gx_ref):
    """One full BiLSTM layer (both directions interleaved) + fused mask/concat/pool.

    x_ref:      (T*B, F)  bf16, time-major, row = t*B + b
    mask_ref:   (T*B, 1)  f32, 1.0 where t < length else 0.0
    w_ih_ref:   (F, 8H)   bf16, [W_ih_fwd | W_ih_bwd]
    w_hh_*_ref: (H, 4H)   bf16
    b_ref:      (1, 8H)   f32, [b_fwd | b_bwd]  (b_ih + b_hh combined)
    seq_ref:    (T*B, 2H) f32, [h_fwd | h_bwd], zeroed on padded timesteps.
                When want_seq=False (last layer) it is a small dummy output that
                is only zero-filled (the sequence never round-trips to HBM).
    pooled_ref: (B, 2H)   f32, masked sum over time of [h_fwd | h_bwd]
    gx_ref:     (T*B, 8H) f32 VMEM scratch for the hoisted input projection
    """
    G = 4 * H

    # Hoisted, time-independent input projection for BOTH directions: one large
    # bf16 MXU matmul (f32 accumulate) instead of 2*T tiny matmuls on the
    # serial recurrence path.
    gx_ref[...] = (
        jnp.dot(x_ref[...], w_ih_ref[...], preferred_element_type=jnp.float32)
        + b_ref[...])

    # Recurrent weights loaded from VMEM once, outside the unrolled time loop.
    w_hh_f = w_hh_f_ref[...]
    w_hh_b = w_hh_b_ref[...]

    if not want_seq:
        seq_ref[...] = jnp.zeros(seq_ref.shape, seq_ref.dtype)

    def gate_math(gates, c_prev):
        # NOTE: with H=32 each gate slice is a sub-vreg lane slice (cheap XLU
        # rotate at toy sizes); see header TODO for real configs.
        i = jax.nn.sigmoid(gates[:, 0 * H:1 * H])
        f = jax.nn.sigmoid(gates[:, 1 * H:2 * H])
        g = jnp.tanh(gates[:, 2 * H:3 * H])
        o = jax.nn.sigmoid(gates[:, 3 * H:4 * H])
        c = f * c_prev + i * g
        h = o * jnp.tanh(c)
        return h, c

    def step(t, carry):
        h_f, c_f, h_b, c_b, p_f, p_b = carry

        # Forward processes timestep t; backward processes timestep T-1-t.
        # Two independent dependency chains per iteration -> MXU / EUP latency
        # of one hides under the other on single-TensorCore chips.
        row_f = pl.multiple_of(t * B, B)
        row_b = pl.multiple_of((T - 1 - t) * B, B)

        m_f = mask_ref[pl.ds(row_f, B), :]                       # (B, 1)
        m_b = mask_ref[pl.ds(row_b, B), :]

        gates_f = gx_ref[pl.ds(row_f, B), 0:G] + jnp.dot(
            h_f.astype(jnp.bfloat16), w_hh_f, preferred_element_type=jnp.float32)
        gates_b = gx_ref[pl.ds(row_b, B), G:2 * G] + jnp.dot(
            h_b.astype(jnp.bfloat16), w_hh_b, preferred_element_type=jnp.float32)

        h_f, c_f = gate_math(gates_f, c_f)                       # f32 gate math
        hb_new, cb_new = gate_math(gates_b, c_b)

        # Packed-sequence backward pass without an explicit reversal: iterating
        # time in reverse, the backward state must stay zero while t >= length.
        # The carry is zero on those (trailing) timesteps, so multiplying by
        # the mask is exact and also zeroes the stored output (unpack semantics).
        h_b = hb_new * m_b
        c_b = cb_new * m_b

        hf_masked = h_f * m_f                                    # fused unpack zeroing

        if want_seq:
            seq_ref[pl.ds(row_f, B), 0:H] = hf_masked
            seq_ref[pl.ds(row_b, B), H:2 * H] = h_b

        # Fused mean-pooling numerator (masked running sum over time).
        p_f = p_f + hf_masked
        p_b = p_b + h_b
        return h_f, c_f, h_b, c_b, p_f, p_b

    zeros = jnp.zeros((B, H), jnp.float32)
    init = (zeros, zeros, zeros, zeros, zeros, zeros)
    # T is a small compile-time constant: full unroll lets the scheduler overlap
    # consecutive timesteps.  TODO(synk): bound the unroll (4..8) once T grows,
    # to avoid vreg-spill on the serial path.
    _, _, _, _, p_f, p_b = lax.fori_loop(0, T, step, init, unroll=True)

    pooled_ref[...] = jnp.concatenate([p_f, p_b], axis=1)


def _head_kernel(pooled_sum_ref, inv_len_ref, w_ref, b_ref, logits_ref):
    """Mean-pooling normalization + output Linear.

    pooled_sum_ref: (B, 2H) f32 masked sum over time (from the LSTM kernel)
    inv_len_ref:    (B, 1)  f32 1 / length
    w_ref:          (2H, num_labels) f32
    b_ref:          (1, num_labels)  f32
    """
    pooled = pooled_sum_ref[...] * inv_len_ref[...]
    # num_labels=4 -> narrow masked store; accepted knowingly at this size.
    logits_ref[...] = (
        jnp.dot(pooled, w_ref[...], preferred_element_type=jnp.float32)
        + b_ref[...])


# ------------------------------ Pallas wrappers -----------------------------

def bilstm_layer_fused(x_flat_bf16, mask_flat, fwd_p, bwd_p, T, B, want_seq=True):
    """One BiLSTM layer in a single pallas_call (both directions interleaved).

    Returns (seq, pooled_sum):
      seq:        (T*B, 2H) f32 masked time-major encoding (None if want_seq=False)
      pooled_sum: (B, 2H)   f32 sum over valid timesteps (mean-pooling numerator)
    """
    H = fwd_p[1].shape[0]

    w_ih_cat = jnp.concatenate([fwd_p[0], bwd_p[0]], axis=1).astype(jnp.bfloat16)  # (F, 8H)
    b_cat = jnp.concatenate([fwd_p[2], bwd_p[2]], axis=1)                          # (1, 8H) f32
    w_hh_f = fwd_p[1].astype(jnp.bfloat16)                                         # (H, 4H)
    w_hh_b = bwd_p[1].astype(jnp.bfloat16)

    seq_rows = T * B if want_seq else 8     # tiny dummy output for the last layer

    seq, pooled = pl.pallas_call(
        functools.partial(_bilstm_layer_kernel, T, B, H, want_seq),
        out_shape=(jax.ShapeDtypeStruct((seq_rows, 2 * H), jnp.float32),
                   jax.ShapeDtypeStruct((B, 2 * H), jnp.float32)),
        in_specs=[_VMEM_SPEC] * 6,
        out_specs=(_VMEM_SPEC, _VMEM_SPEC),
        scratch_shapes=[pltpu.VMEM((T * B, 8 * H), jnp.float32)],
        compiler_params=pltpu.CompilerParams(vmem_limit_bytes=32 * 1024 * 1024),
    )(x_flat_bf16, mask_flat, w_ih_cat, w_hh_f, w_hh_b, b_cat)
    return (seq if want_seq else None), pooled


def head_project(pooled_sum, inv_len, w_out, b_out):
    B = pooled_sum.shape[0]
    num_labels = w_out.shape[1]
    return pl.pallas_call(
        _head_kernel,
        out_shape=jax.ShapeDtypeStruct((B, num_labels), jnp.float32),
        in_specs=[_VMEM_SPEC] * 4,
        out_specs=_VMEM_SPEC,
    )(pooled_sum, inv_len, w_out, b_out)


# ------------------------------- forward pass --------------------------------

def bilstm_forward(params, src_sequences, src_lengths):
    """Returns (loss=None, predictions, logits) matching BiLSTM.forward."""
    B, T = src_sequences.shape

    x = params["emb"][src_sequences]                  # (B, T, E); dropout p=0 -> identity
    x = jnp.transpose(x, (1, 0, 2))                   # time-major once: (T, B, E)

    # Pad batch to a sublane multiple so matmul/store tiles are sublane-dense.
    B_pad = max(8, ((B + 7) // 8) * 8)
    pad = B_pad - B
    if pad:
        x = jnp.pad(x, ((0, 0), (0, pad), (0, 0)))
        lengths = jnp.concatenate(
            [src_lengths, jnp.ones((pad,), src_lengths.dtype)])  # len=1 avoids 1/0
    else:
        lengths = src_lengths

    # Padding mask, time-major and flattened like x (row = t*B + b); computed
    # once and reused by every layer (fused into the kernels).
    mask_flat = (jnp.arange(T)[:, None] < lengths[None, :]
                 ).astype(jnp.float32).reshape(T * B_pad, 1)

    x_flat = x.reshape(T * B_pad, -1).astype(jnp.bfloat16)       # bf16 MXU operands

    num_layers = len(params["lstm"])
    pooled_sum = None
    for li, (fwd_p, bwd_p) in enumerate(params["lstm"]):
        want_seq = (li + 1) < num_layers   # last layer only feeds the fused pooled sum
        seq, pooled_sum = bilstm_layer_fused(x_flat, mask_flat, fwd_p, bwd_p,
                                             T, B_pad, want_seq=want_seq)
        if want_seq:
            x_flat = seq.astype(jnp.bfloat16)

    inv_len = (1.0 / lengths.astype(jnp.float32))[:, None]       # (B_pad, 1)
    logits = head_project(pooled_sum, inv_len,
                          params["w_out"], params["b_out"])[:B]
    predictions = jnp.argmax(logits, axis=1)
    loss = None  # tgt_batch is None -> CrossEntropyLoss branch not exercised
    return loss, predictions, logits


# --------------------------- pure-JAX reference ------------------------------
# Algorithm reference (explicit per-length reversal for the backward direction,
# scan over time, explicit mask/concat/pool).  `matmul_dtype=jnp.bfloat16`
# reproduces the kernel's matmul-operand precision (f32 accumulate / gate math)
# for a tight check; `jnp.float32` gives a full-precision sanity bound.

def _reverse_by_length_ref(x, lengths):
    _, T, _ = x.shape
    t_idx = jnp.arange(T)[None, :]
    L = lengths[:, None]
    rev = jnp.where(t_idx < L, L - 1 - t_idx, t_idx)
    return jnp.take_along_axis(x, rev[:, :, None], axis=1)


def _lstm_direction_ref(x_bte, w_ih, w_hh, b, mm_dtype):
    B, _, _ = x_bte.shape
    H = w_hh.shape[0]

    def mm(a, w):
        return jnp.dot(a.astype(mm_dtype), w.astype(mm_dtype),
                       preferred_element_type=jnp.float32)

    def step(carry, x_t):
        h, c = carry
        gates = mm(x_t, w_ih) + b + mm(h, w_hh)
        i = jax.nn.sigmoid(gates[:, 0 * H:1 * H])
        f = jax.nn.sigmoid(gates[:, 1 * H:2 * H])
        g = jnp.tanh(gates[:, 2 * H:3 * H])
        o = jax.nn.sigmoid(gates[:, 3 * H:4 * H])
        c = f * c + i * g
        h = o * jnp.tanh(c)
        return (h, c), h

    init = (jnp.zeros((B, H), jnp.float32), jnp.zeros((B, H), jnp.float32))
    _, hs = lax.scan(step, init, jnp.transpose(x_bte, (1, 0, 2)))
    return jnp.transpose(hs, (1, 0, 2))


def bilstm_forward_ref(params, src_sequences, src_lengths,
                       matmul_dtype=jnp.float32):
    x = params["emb"][src_sequences]
    _, T, _ = x.shape
    mask = (jnp.arange(T)[None, :] < src_lengths[:, None]).astype(jnp.float32)
    for (fwd_p, bwd_p) in params["lstm"]:
        h_f = _lstm_direction_ref(x, *fwd_p, matmul_dtype)
        h_r = _lstm_direction_ref(_reverse_by_length_ref(x, src_lengths),
                                  *bwd_p, matmul_dtype)
        h_b = _reverse_by_length_ref(h_r, src_lengths)
        x = jnp.concatenate([h_f, h_b], axis=-1) * mask[:, :, None]
    pooled = (x * mask[:, :, None]).sum(axis=1) / src_lengths.astype(jnp.float32)[:, None]
    logits = pooled @ params["w_out"] + params["b_out"]   # head stays f32 (as in kernel)
    return None, jnp.argmax(logits, axis=1), logits


# ------------------------------- parameters ---------------------------------

def init_params(key, vocab, emb_dim, hidden, num_labels, num_layers=2, bidirectional=True):
    dirs = 2 if bidirectional else 1
    keys = jax.random.split(key, 2 + num_layers * dirs)
    params = {"emb": jax.random.normal(keys[0], (vocab, emb_dim), jnp.float32)}

    k = 1.0 / float(np.sqrt(hidden))
    layers = []
    idx = 1
    for layer in range(num_layers):
        in_size = emb_dim if layer == 0 else hidden * dirs
        dir_params = []
        for _ in range(dirs):
            sub = jax.random.split(keys[idx], 3)
            idx += 1
            w_ih = jax.random.uniform(sub[0], (in_size, 4 * hidden), jnp.float32, -k, k)
            w_hh = jax.random.uniform(sub[1], (hidden, 4 * hidden), jnp.float32, -k, k)
            b = jax.random.uniform(sub[2], (1, 4 * hidden), jnp.float32, -k, k)  # b_ih + b_hh combined
            dir_params.append((w_ih, w_hh, b))
        layers.append(tuple(dir_params))
    params["lstm"] = layers

    k_out = 1.0 / float(np.sqrt(hidden * dirs))
    sub = jax.random.split(keys[idx], 2)
    params["w_out"] = jax.random.uniform(sub[0], (hidden * dirs, num_labels), jnp.float32, -k_out, k_out)
    params["b_out"] = jax.random.uniform(sub[1], (1, num_labels), jnp.float32, -k_out, k_out)
    return params


# ---------------------------------- main -------------------------------------

if __name__ == "__main__":
    VOCAB, EMB_DIM, HIDDEN, NUM_LABELS = 50, 32, 32, 4
    B, T = 2, 8

    key = jax.random.PRNGKey(0)
    k_param, k_seq = jax.random.split(key)
    params = init_params(k_param, VOCAB, EMB_DIM, HIDDEN, NUM_LABELS,
                         num_layers=2, bidirectional=True)

    src_sequences = jax.random.randint(k_seq, (B, T), 0, VOCAB, dtype=jnp.int32)
    src_lengths = jnp.array([8, 5], dtype=jnp.int32)  # variable-length batch

    loss, predictions, logits = jax.jit(bilstm_forward)(params, src_sequences, src_lengths)
    jax.block_until_ready((predictions, logits))

    # Tight check vs. an algorithm-equivalent reference using the SAME matmul
    # operand precision as the kernel (bf16 on the MXU, f32 accumulate/gate math).
    _, pred_ref, logits_ref = bilstm_forward_ref(
        params, src_sequences, src_lengths, matmul_dtype=jnp.bfloat16)
    np.testing.assert_allclose(np.asarray(logits), np.asarray(logits_ref),
                               rtol=5e-3, atol=5e-3)
    assert np.array_equal(np.asarray(predictions), np.asarray(pred_ref))

    # Loose sanity bound vs. the full-f32 reference (bf16-operand deviation only).
    _, _, logits_f32 = bilstm_forward_ref(
        params, src_sequences, src_lengths, matmul_dtype=jnp.float32)
    np.testing.assert_allclose(np.asarray(logits), np.asarray(logits_f32),
                               rtol=5e-2, atol=5e-2)

    assert loss is None
    print("KERNEL_OK")
</pallas_src>

<mosaic_0001>
module attributes {stable_mosaic.version = 11 : i64} {
  func.func @_bilstm_layer_kernel(%arg0: memref<64x32xbf16, #tpu.memory_space<vmem>>, %arg1: memref<64x1xf32, #tpu.memory_space<vmem>>, %arg2: memref<32x256xbf16, #tpu.memory_space<vmem>>, %arg3: memref<32x128xbf16, #tpu.memory_space<vmem>>, %arg4: memref<32x128xbf16, #tpu.memory_space<vmem>>, %arg5: memref<1x256xf32, #tpu.memory_space<vmem>>, %arg6: memref<64x64xf32, #tpu.memory_space<vmem>>, %arg7: memref<8x64xf32, #tpu.memory_space<vmem>>, %arg8: memref<64x256xf32, #tpu.memory_space<vmem>>) attributes {dimension_semantics = [], scalar_prefetch = 0 : i64, scratch_operands = 1 : i64, tpu.core_type = #tpu.core_type<tc>} {
    %c0 = arith.constant 0 : index
    %c0_0 = arith.constant 0 : index
    %0 = vector.load %arg0[%c0, %c0_0] : memref<64x32xbf16, #tpu.memory_space<vmem>>, vector<64x32xbf16>
    %c0_1 = arith.constant 0 : index
    %c0_2 = arith.constant 0 : index
    %1 = vector.load %arg2[%c0_1, %c0_2] : memref<32x256xbf16, #tpu.memory_space<vmem>>, vector<32x256xbf16>
    %cst = arith.constant dense<0.000000e+00> : vector<64x256xf32>
    %2 = tpu.matmul %0, %1, %cst {dimension_numbers = #tpu.dot_dimension_numbers<[1], [0], [0], [1], [0, 0, 1, 1], [], []>} : vector<64x32xbf16>, vector<32x256xbf16>, vector<64x256xf32> -> vector<64x256xf32>
    %c0_3 = arith.constant 0 : index
    %c0_4 = arith.constant 0 : index
    %3 = vector.load %arg5[%c0_3, %c0_4] : memref<1x256xf32, #tpu.memory_space<vmem>>, vector<1x256xf32>
    %4 = vector.broadcast %3 : vector<1x256xf32> to vector<64x256xf32>
    %5 = arith.addf %2, %4 : vector<64x256xf32>
    %c0_5 = arith.constant 0 : index
    %c0_6 = arith.constant 0 : index
    %6 = vector.load %arg8[%c0_5, %c0_6] : memref<64x256xf32, #tpu.memory_space<vmem>>, vector<64x256xf32>
    tpu.vector_store %arg8[%c0_5, %c0_6], %5 {strides = array<i32>} : memref<64x256xf32, #tpu.memory_space<vmem>>, vector<64x256xf32>,
    %c0_7 = arith.constant 0 : index
    %c0_8 = arith.constant 0 : index
    %7 = vector.load %arg3[%c0_7, %c0_8] : memref<32x128xbf16, #tpu.memory_space<vmem>>, vector<32x128xbf16>
    %c0_9 = arith.constant 0 : index
    %c0_10 = arith.constant 0 : index
    %8 = vector.load %arg4[%c0_9, %c0_10] : memref<32x128xbf16, #tpu.memory_space<vmem>>, vector<32x128xbf16>
    %cst_11 = arith.constant 0.000000e+00 : f32
    %9 = vector.broadcast %cst_11 : f32 to vector<8x32xf32>
    %c0_i32 = arith.constant 0 : i32
    %c8_i32 = arith.constant 8 : i32
    %10 = arith.muli %c0_i32, %c8_i32 : i32
    %11 = tpu.assume_multiple %10, 8 : i32
    %c7_i32 = arith.constant 7 : i32
    %12 = arith.subi %c7_i32, %c0_i32 : i32
    %c8_i32_12 = arith.constant 8 : i32
    %13 = arith.muli %12, %c8_i32_12 : i32
    %14 = tpu.assume_multiple %13, 8 : i32
    %15 = arith.index_cast %11 : i32 to index
    %c0_13 = arith.constant 0 : index
    %16 = vector.load %arg1[%15, %c0_13] : memref<64x1xf32, #tpu.memory_space<vmem>>, vector<8x1xf32>
    %17 = arith.index_cast %14 : i32 to index
    %c0_14 = arith.constant 0 : index
    %18 = vector.load %arg1[%17, %c0_14] : memref<64x1xf32, #tpu.memory_space<vmem>>, vector<8x1xf32>
    %19 = arith.index_cast %11 : i32 to index
    %c0_15 = arith.constant 0 : index
    %20 = vector.load %arg8[%19, %c0_15] : memref<64x256xf32, #tpu.memory_space<vmem>>, vector<8x128xf32>
    %21 = arith.truncf %9 : vector<8x32xf32> to vector<8x32xbf16>
    %cst_16 = arith.constant dense<0.000000e+00> : vector<8x128xf32>
    %22 = tpu.matmul %21, %7, %cst_16 {dimension_numbers = #tpu.dot_dimension_numbers<[1], [0], [0], [1], [0, 0, 1, 1], [], []>} : vector<8x32xbf16>, vector<32x128xbf16>, vector<8x128xf32> -> vector<8x128xf32>
    %23 = arith.addf %20, %22 : vector<8x128xf32>
    %24 = arith.index_cast %14 : i32 to index
    %c128 = arith.constant 128 : index
    %25 = vector.load %arg8[%24, %c128] : memref<64x256xf32, #tpu.memory_space<vmem>>, vector<8x128xf32>
    %26 = arith.truncf %9 : vector<8x32xf32> to vector<8x32xbf16>
    %cst_17 = arith.constant dense<0.000000e+00> : vector<8x128xf32>
    %27 = tpu.matmul %26, %8, %cst_17 {dimension_numbers = #tpu.dot_dimension_numbers<[1], [0], [0], [1], [0, 0, 1, 1], [], []>} : vector<8x32xbf16>, vector<32x128xbf16>, vector<8x128xf32> -> vector<8x128xf32>
    %28 = arith.addf %25, %27 : vector<8x128xf32>
    %29 = vector.extract_strided_slice %23 {offsets = [0, 0], sizes = [8, 32], strides = [1, 1]} : vector<8x128xf32> to vector<8x32xf32>
    %30 = arith.negf %29 : vector<8x32xf32>
    %31 = math.exp %30 : vector<8x32xf32>
    %cst_18 = arith.constant 1.000000e+00 : f32
    %32 = vector.broadcast %cst_18 : f32 to vector<8x32xf32>
    %33 = arith.addf %32, %31 : vector<8x32xf32>
    %34 = arith.divf %32, %33 : vector<8x32xf32>
    %35 = vector.extract_strided_slice %23 {offsets = [0, 32], sizes = [8, 32], strides = [1, 1]} : vector<8x128xf32> to vector<8x32xf32>
    %36 = arith.negf %35 : vector<8x32xf32>
    %37 = math.exp %36 : vector<8x32xf32>
    %cst_19 = arith.constant 1.000000e+00 : f32
    %38 = vector.broadcast %cst_19 : f32 to vector<8x32xf32>
    %39 = arith.addf %38, %37 : vector<8x32xf32>
    %40 = arith.divf %38, %39 : vector<8x32xf32>
    %41 = vector.extract_strided_slice %23 {offsets = [0, 64], sizes = [8, 32], strides = [1, 1]} : vector<8x128xf32> to vector<8x32xf32>
    %42 = math.tanh %41 : vector<8x32xf32>
    %43 = vector.extract_strided_slice %23 {offsets = [0, 96], sizes = [8, 32], strides = [1, 1]} : vector<8x128xf32> to vector<8x32xf32>
    %44 = arith.negf %43 : vector<8x32xf32>
    %45 = math.exp %44 : vector<8x32xf32>
    %cst_20 = arith.constant 1.000000e+00 : f32
    %46 = vector.broadcast %cst_20 : f32 to vector<8x32xf32>
    %47 = arith.addf %46, %45 : vector<8x32xf32>
    %48 = arith.divf %46, %47 : vector<8x32xf32>
    %49 = arith.mulf %40, %9 : vector<8x32xf32>
    %50 = arith.mulf %34, %42 : vector<8x32xf32>
    %51 = arith.addf %49, %50 : vector<8x32xf32>
    %52 = math.tanh %51 : vector<8x32xf32>
    %53 = arith.mulf %48, %52 : vector<8x32xf32>
    %54 = vector.extract_strided_slice %28 {offsets = [0, 0], sizes = [8, 32], strides = [1, 1]} : vector<8x128xf32> to vector<8x32xf32>
    %55 = arith.negf %54 : vector<8x32xf32>
    %56 = math.exp %55 : vector<8x32xf32>
    %cst_21 = arith.constant 1.000000e+00 : f32
    %57 = vector.broadcast %cst_21 : f32 to vector<8x32xf32>
    %58 = arith.addf %57, %56 : vector<8x32xf32>
    %59 = arith.divf %57, %58 : vector<8x32xf32>
    %60 = vector.extract_strided_slice %28 {offsets = [0, 32], sizes = [8, 32], strides = [1, 1]} : vector<8x128xf32> to vector<8x32xf32>
    %61 = arith.negf %60 : vector<8x32xf32>
    %62 = math.exp %61 : vector<8x32xf32>
    %cst_22 = arith.constant 1.000000e+00 : f32
    %63 = vector.broadcast %cst_22 : f32 to vector<8x32xf32>
    %64 = arith.addf %63, %62 : vector<8x32xf32>
    %65 = arith.divf %63, %64 : vector<8x32xf32>
    %66 = vector.extract_strided_slice %28 {offsets = [0, 64], sizes = [8, 32], strides = [1, 1]} : vector<8x128xf32> to vector<8x32xf32>
    %67 = math.tanh %66 : vector<8x32xf32>
    %68 = vector.extract_strided_slice %28 {offsets = [0, 96], sizes = [8, 32], strides = [1, 1]} : vector<8x128xf32> to vector<8x32xf32>
    %69 = arith.negf %68 : vector<8x32xf32>
    %70 = math.exp %69 : vector<8x32xf32>
    %cst_23 = arith.constant 1.000000e+00 : f32
    %71 = vector.broadcast %cst_23 : f32 to vector<8x32xf32>
    %72 = arith.addf %71, %70 : vector<8x32xf32>
    %73 = arith.divf %71, %72 : vector<8x32xf32>
    %74 = arith.mulf %65, %9 : vector<8x32xf32>
    %75 = arith.mulf %59, %67 : vector<8x32xf32>
    %76 = arith.addf %74, %75 : vector<8x32xf32>
    %77 = math.tanh %76 : vector<8x32xf32>
    %78 = arith.mulf %73, %77 : vector<8x32xf32>
    %79 = vector.broadcast %18 : vector<8x1xf32> to vector<8x32xf32>
    %80 = arith.mulf %78, %79 : vector<8x32xf32>
    %81 = vector.broadcast %18 : vector<8x1xf32> to vector<8x32xf32>
    %82 = arith.mulf %76, %81 : vector<8x32xf32>
    %83 = vector.broadcast %16 : vector<8x1xf32> to vector<8x32xf32>
    %84 = arith.mulf %53, %83 : vector<8x32xf32>
    %85 = arith.index_cast %11 : i32 to index
    %c0_24 = arith.constant 0 : index
    %86 = vector.load %arg6[%85, %c0_24] : memref<64x64xf32, #tpu.memory_space<vmem>>, vector<8x32xf32>
    tpu.vector_store %arg6[%85, %c0_24], %84 {strides = array<i32>} : memref<64x64xf32, #tpu.memory_space<vmem>>, vector<8x32xf32>,
    %87 = arith.index_cast %14 : i32 to index
    %c32 = arith.constant 32 : index
    %88 = vector.load %arg6[%87, %c32] : memref<64x64xf32, #tpu.memory_space<vmem>>, vector<8x32xf32>
    tpu.vector_store %arg6[%87, %c32], %80 {strides = array<i32>} : memref<64x64xf32, #tpu.memory_space<vmem>>, vector<8x32xf32>,
    %89 = arith.addf %9, %84 : vector<8x32xf32>
    %90 = arith.addf %9, %80 : vector<8x32xf32>
    %c1_i32 = arith.constant 1 : i32
    %c8_i32_25 = arith.constant 8 : i32
    %91 = arith.muli %c1_i32, %c8_i32_25 : i32
    %92 = tpu.assume_multiple %91, 8 : i32
    %c7_i32_26 = arith.constant 7 : i32
    %93 = arith.subi %c7_i32_26, %c1_i32 : i32
    %c8_i32_27 = arith.constant 8 : i32
    %94 = arith.muli %93, %c8_i32_27 : i32
    %95 = tpu.assume_multiple %94, 8 : i32
    %96 = arith.index_cast %92 : i32 to index
    %c0_28 = arith.constant 0 : index
    %97 = vector.load %arg1[%96, %c0_28] : memref<64x1xf32, #tpu.memory_space<vmem>>, vector<8x1xf32>
    %98 = arith.index_cast %95 : i32 to index
    %c0_29 = arith.constant 0 : index
    %99 = vector.load %arg1[%98, %c0_29] : memref<64x1xf32, #tpu.memory_space<vmem>>, vector<8x1xf32>
    %100 = arith.index_cast %92 : i32 to index
    %c0_30 = arith.constant 0 : index
    %101 = vector.load %arg8[%100, %c0_30] : memref<64x256xf32, #tpu.memory_space<vmem>>, vector<8x128xf32>
    %102 = arith.truncf %53 : vector<8x32xf32> to vector<8x32xbf16>
    %cst_31 = arith.constant dense<0.000000e+00> : vector<8x128xf32>
    %103 = tpu.matmul %102, %7, %cst_31 {dimension_numbers = #tpu.dot_dimension_numbers<[1], [0], [0], [1], [0, 0, 1, 1], [], []>} : vector<8x32xbf16>, vector<32x128xbf16>, vector<8x128xf32> -> vector<8x128xf32>
    %104 = arith.addf %101, %103 : vector<8x128xf32>
    %105 = arith.index_cast %95 : i32 to index
    %c128_32 = arith.constant 128 : index
    %106 = vector.load %arg8[%105, %c128_32] : memref<64x256xf32, #tpu.memory_space<vmem>>, vector<8x128xf32>
    %107 = arith.truncf %80 : vector<8x32xf32> to vector<8x32xbf16>
    %cst_33 = arith.constant dense<0.000000e+00> : vector<8x128xf32>
    %108 = tpu.matmul %107, %8, %cst_33 {dimension_numbers = #tpu.dot_dimension_numbers<[1], [0], [0], [1], [0, 0, 1, 1], [], []>} : vector<8x32xbf16>, vector<32x128xbf16>, vector<8x128xf32> -> vector<8x128xf32>
    %109 = arith.addf %106, %108 : vector<8x128xf32>
    %110 = vector.extract_strided_slice %104 {offsets = [0, 0], sizes = [8, 32], strides = [1, 1]} : vector<8x128xf32> to vector<8x32xf32>
    %111 = arith.negf %110 : vector<8x32xf32>
    %112 = math.exp %111 : vector<8x32xf32>
    %cst_34 = arith.constant 1.000000e+00 : f32
    %113 = vector.broadcast %cst_34 : f32 to vector<8x32xf32>
    %114 = arith.addf %113, %112 : vector<8x32xf32>
    %115 = arith.divf %113, %114 : vector<8x32xf32>
    %116 = vector.extract_strided_slice %104 {offsets = [0, 32], sizes = [8, 32], strides = [1, 1]} : vector<8x128xf32> to vector<8x32xf32>
    %117 = arith.negf %116 : vector<8x32xf32>
    %118 = math.exp %117 : vector<8x32xf32>
    %cst_35 = arith.constant 1.000000e+00 : f32
    %119 = vector.broadcast %cst_35 : f32 to vector<8x32xf32>
    %120 = arith.addf %119, %118 : vector<8x32xf32>
    %121 = arith.divf %119, %120 : vector<8x32xf32>
    %122 = vector.extract_strided_slice %104 {offsets = [0, 64], sizes = [8, 32], strides = [1, 1]} : vector<8x128xf32> to vector<8x32xf32>
    %123 = math.tanh %122 : vector<8x32xf32>
    %124 = vector.extract_strided_slice %104 {offsets = [0, 96], sizes = [8, 32], strides = [1, 1]} : vector<8x128xf32> to vector<8x32xf32>
    %125 = arith.negf %124 : vector<8x32xf32>
    %126 = math.exp %125 : vector<8x32xf32>
    %cst_36 = arith.constant 1.000000e+00 : f32
    %127 = vector.broadcast %cst_36 : f32 to vector<8x32xf32>
    %128 = arith.addf %127, %126 : vector<8x32xf32>
    %129 = arith.divf %127, %128 : vector<8x32xf32>
    %130 = arith.mulf %121, %51 : vector<8x32xf32>
    %131 = arith.mulf %115, %123 : vector<8x32xf32>
    %132 = arith.addf %130, %131 : vector<8x32xf32>
    %133 = math.tanh %132 : vector<8x32xf32>
    %134 = arith.mulf %129, %133 : vector<8x32xf32>
    %135 = vector.extract_strided_slice %109 {offsets = [0, 0], sizes = [8, 32], strides = [1, 1]} : vector<8x128xf32> to vector<8x32xf32>
    %136 = arith.negf %135 : vector<8x32xf32>
    %137 = math.exp %136 : vector<8x32xf32>
    %cst_37 = arith.constant 1.000000e+00 : f32
    %138 = vector.broadcast %cst_37 : f32 to vector<8x32xf32>
    %139 = arith.addf %138, %137 : vector<8x32xf32>
    %140 = arith.divf %138, %139 : vector<8x32xf32>
    %141 = vector.extract_strided_slice %109 {offsets = [0, 32], sizes = [8, 32], strides = [1, 1]} : vector<8x128xf32> to vector<8x32xf32>
    %142 = arith.negf %141 : vector<8x32xf32>
    %143 = math.exp %142 : vector<8x32xf32>
    %cst_38 = arith.constant 1.000000e+00 : f32
    %144 = vector.broadcast %cst_38 : f32 to vector<8x32xf32>
    %145 = arith.addf %144, %143 : vector<8x32xf32>
    %146 = arith.divf %144, %145 : vector<8x32xf32>
    %147 = vector.extract_strided_slice %109 {offsets = [0, 64], sizes = [8, 32], strides = [1, 1]} : vector<8x128xf32> to vector<8x32xf32>
    %148 = math.tanh %147 : vector<8x32xf32>
    %149 = vector.extract_strided_slice %109 {offsets = [0, 96], sizes = [8, 32], strides = [1, 1]} : vector<8x128xf32> to vector<8x32xf32>
    %150 = arith.negf %149 : vector<8x32xf32>
    %151 = math.exp %150 : vector<8x32xf32>
    %cst_39 = arith.constant 1.000000e+00 : f32
    %152 = vector.broadcast %cst_39 : f32 to vector<8x32xf32>
    %153 = arith.addf %152, %151 : vector<8x32xf32>
    %154 = arith.divf %152, %153 : vector<8x32xf32>
    %155 = arith.mulf %146, %82 : vector<8x32xf32>
    %156 = arith.mulf %140, %148 : vector<8x32xf32>
    %157 = arith.addf %155, %156 : vector<8x32xf32>
    %158 = math.tanh %157 : vector<8x32xf32>
    %159 = arith.mulf %154, %158 : vector<8x32xf32>
    %160 = vector.broadcast %99 : vector<8x1xf32> to vector<8x32xf32>
    %161 = arith.mulf %159, %160 : vector<8x32xf32>
    %162 = vector.broadcast %99 : vector<8x1xf32> to vector<8x32xf32>
    %163 = arith.mulf %157, %162 : vector<8x32xf32>
    %164 = vector.broadcast %97 : vector<8x1xf32> to vector<8x32xf32>
    %165 = arith.mulf %134, %164 : vector<8x32xf32>
    %166 = arith.index_cast %92 : i32 to index
    %c0_40 = arith.constant 0 : index
    %167 = vector.load %arg6[%166, %c0_40] : memref<64x64xf32, #tpu.memory_space<vmem>>, vector<8x32xf32>
    tpu.vector_store %arg6[%166, %c0_40], %165 {strides = array<i32>} : memref<64x64xf32, #tpu.memory_space<vmem>>, vector<8x32xf32>,
    %168 = arith.index_cast %95 : i32 to index
    %c32_41 = arith.constant 32 : index
    %169 = vector.load %arg6[%168, %c32_41] : memref<64x64xf32, #tpu.memory_space<vmem>>, vector<8x32xf32>
    tpu.vector_store %arg6[%168, %c32_41], %161 {strides = array<i32>} : memref<64x64xf32, #tpu.memory_space<vmem>>, vector<8x32xf32>,
    %170 = arith.addf %89, %165 : vector<8x32xf32>
    %171 = arith.addf %90, %161 : vector<8x32xf32>
    %c2_i32 = arith.constant 2 : i32
    %c8_i32_42 = arith.constant 8 : i32
    %172 = arith.muli %c2_i32, %c8_i32_42 : i32
    %173 = tpu.assume_multiple %172, 8 : i32
    %c7_i32_43 = arith.constant 7 : i32
    %174 = arith.subi %c7_i32_43, %c2_i32 : i32
    %c8_i32_44 = arith.constant 8 : i32
    %175 = arith.muli %174, %c8_i32_44 : i32
    %176 = tpu.assume_multiple %175, 8 : i32
    %177 = arith.index_cast %173 : i32 to index
    %c0_45 = arith.constant 0 : index
    %178 = vector.load %arg1[%177, %c0_45] : memref<64x1xf32, #tpu.memory_space<vmem>>, vector<8x1xf32>
    %179 = arith.index_cast %176 : i32 to index
    %c0_46 = arith.constant 0 : index
    %180 = vector.load %arg1[%179, %c0_46] : memref<64x1xf32, #tpu.memory_space<vmem>>, vector<8x1xf32>
    %181 = arith.index_cast %173 : i32 to index
    %c0_47 = arith.constant 0 : index
    %182 = vector.load %arg8[%181, %c0_47] : memref<64x256xf32, #tpu.memory_space<vmem>>, vector<8x128xf32>
    %183 = arith.truncf %134 : vector<8x32xf32> to vector<8x32xbf16>
    %cst_48 = arith.constant dense<0.000000e+00> : vector<8x128xf32>
    %184 = tpu.matmul %183, %7, %cst_48 {dimension_numbers = #tpu.dot_dimension_numbers<[1], [0], [0], [1], [0, 0, 1, 1], [], []>} : vector<8x32xbf16>, vector<32x128xbf16>, vector<8x128xf32> -> vector<8x128xf32>
    %185 = arith.addf %182, %184 : vector<8x128xf32>
    %186 = arith.index_cast %176 : i32 to index
    %c128_49 = arith.constant 128 : index
    %187 = vector.load %arg8[%186, %c128_49] : memref<64x256xf32, #tpu.memory_space<vmem>>, vector<8x128xf32>
    %188 = arith.truncf %161 : vector<8x32xf32> to vector<8x32xbf16>
    %cst_50 = arith.constant dense<0.000000e+00> : vector<8x128xf32>
    %189 = tpu.matmul %188, %8, %cst_50 {dimension_numbers = #tpu.dot_dimension_numbers<[1], [0], [0], [1], [0, 0, 1, 1], [], []>} : vector<8x32xbf16>, vector<32x128xbf16>, vector<8x128xf32> -> vector<8x128xf32>
    %190 = arith.addf %187, %189 : vector<8x128xf32>
    %191 = vector.extract_strided_slice %185 {offsets = [0, 0], sizes = [8, 32], strides = [1, 1]} : vector<8x128xf32> to vector<8x32xf32>
    %192 = arith.negf %191 : vector<8x32xf32>
    %193 = math.exp %192 : vector<8x32xf32>
    %cst_51 = arith.constant 1.000000e+00 : f32
    %194 = vector.broadcast %cst_51 : f32 to vector<8x32xf32>
    %195 = arith.addf %194, %193 : vector<8x32xf32>
    %196 = arith.divf %194, %195 : vector<8x32xf32>
    %197 = vector.extract_strided_slice %185 {offsets = [0, 32], sizes = [8, 32], strides = [1, 1]} : vector<8x128xf32> to vector<8x32xf32>
    %198 = arith.negf %197 : vector<8x32xf32>
    %199 = math.exp %198 : vector<8x32xf32>
    %cst_52 = arith.constant 1.000000e+00 : f32
    %200 = vector.broadcast %cst_52 : f32 to vector<8x32xf32>
    %201 = arith.addf %200, %199 : vector<8x32xf32>
    %202 = arith.divf %200, %201 : vector<8x32xf32>
    %203 = vector.extract_strided_slice %185 {offsets = [0, 64], sizes = [8, 32], strides = [1, 1]} : vector<8x128xf32> to vector<8x32xf32>
    %204 = math.tanh %203 : vector<8x32xf32>
    %205 = vector.extract_strided_slice %185 {offsets = [0, 96], sizes = [8, 32], strides = [1, 1]} : vector<8x128xf32> to vector<8x32xf32>
    %206 = arith.negf %205 : vector<8x32xf32>
    %207 = math.exp %206 : vector<8x32xf32>
    %cst_53 = arith.constant 1.000000e+00 : f32
    %208 = vector.broadcast %cst_53 : f32 to vector<8x32xf32>
    %209 = arith.addf %208, %207 : vector<8x32xf32>
    %210 = arith.divf %208, %209 : vector<8x32xf32>
    %211 = arith.mulf %202, %132 : vector<8x32xf32>
    %212 = arith.mulf %196, %204 : vector<8x32xf32>
    %213 = arith.addf %211, %212 : vector<8x32xf32>
    %214 = math.tanh %213 : vector<8x32xf32>
    %215 = arith.mulf %210, %214 : vector<8x32xf32>
    %216 = vector.extract_strided_slice %190 {offsets = [0, 0], sizes = [8, 32], strides = [1, 1]} : vector<8x128xf32> to vector<8x32xf32>
    %217 = arith.negf %216 : vector<8x32xf32>
    %218 = math.exp %217 : vector<8x32xf32>
    %cst_54 = arith.constant 1.000000e+00 : f32
    %219 = vector.broadcast %cst_54 : f32 to vector<8x32xf32>
    %220 = arith.addf %219, %218 : vector<8x32xf32>
    %221 = arith.divf %219, %220 : vector<8x32xf32>
    %222 = vector.extract_strided_slice %190 {offsets = [0, 32], sizes = [8, 32], strides = [1, 1]} : vector<8x128xf32> to vector<8x32xf32>
    %223 = arith.negf %222 : vector<8x32xf32>
    %224 = math.exp %223 : vector<8x32xf32>
    %cst_55 = arith.constant 1.000000e+00 : f32
    %225 = vector.broadcast %cst_55 : f32 to vector<8x32xf32>
    %226 = arith.addf %225, %224 : vector<8x32xf32>
    %227 = arith.divf %225, %226 : vector<8x32xf32>
    %228 = vector.extract_strided_slice %190 {offsets = [0, 64], sizes = [8, 32], strides = [1, 1]} : vector<8x128xf32> to vector<8x32xf32>
    %229 = math.tanh %228 : vector<8x32xf32>
    %230 = vector.extract_strided_slice %190 {offsets = [0, 96], sizes = [8, 32], strides = [1, 1]} : vector<8x128xf32> to vector<8x32xf32>
    %231 = arith.negf %230 : vector<8x32xf32>
    %232 = math.exp %231 : vector<8x32xf32>
    %cst_56 = arith.constant 1.000000e+00 : f32
    %233 = vector.broadcast %cst_56 : f32 to vector<8x32xf32>
    %234 = arith.addf %233, %232 : vector<8x32xf32>
    %235 = arith.divf %233, %234 : vector<8x32xf32>
    %236 = arith.mulf %227, %163 : vector<8x32xf32>
    %237 = arith.mulf %221, %229 : vector<8x32xf32>
    %238 = arith.addf %236, %237 : vector<8x32xf32>
    %239 = math.tanh %238 : vector<8x32xf32>
    %240 = arith.mulf %235, %239 : vector<8x32xf32>
    %241 = vector.broadcast %180 : vector<8x1xf32> to vector<8x32xf32>
    %242 = arith.mulf %240, %241 : vector<8x32xf32>
    %243 = vector.broadcast %180 : vector<8x1xf32> to vector<8x32xf32>
    %244 = arith.mulf %238, %243 : vector<8x32xf32>
    %245 = vector.broadcast %178 : vector<8x1xf32> to vector<8x32xf32>
    %246 = arith.mulf %215, %245 : vector<8x32xf32>
    %247 = arith.index_cast %173 : i32 to index
    %c0_57 = arith.constant 0 : index
    %248 = vector.load %arg6[%247, %c0_57] : memref<64x64xf32, #tpu.memory_space<vmem>>, vector<8x32xf32>
    tpu.vector_store %arg6[%247, %c0_57], %246 {strides = array<i32>} : memref<64x64xf32, #tpu.memory_space<vmem>>, vector<8x32xf32>,
    %249 = arith.index_cast %176 : i32 to index
    %c32_58 = arith.constant 32 : index
    %250 = vector.load %arg6[%249, %c32_58] : memref<64x64xf32, #tpu.memory_space<vmem>>, vector<8x32xf32>
    tpu.vector_store %arg6[%249, %c32_58], %242 {strides = array<i32>} : memref<64x64xf32, #tpu.memory_space<vmem>>, vector<8x32xf32>,
    %251 = arith.addf %170, %246 : vector<8x32xf32>
    %252 = arith.addf %171, %242 : vector<8x32xf32>
    %c3_i32 = arith.constant 3 : i32
    %c8_i32_59 = arith.constant 8 : i32
    %253 = arith.muli %c3_i32, %c8_i32_59 : i32
    %254 = tpu.assume_multiple %253, 8 : i32
    %c7_i32_60 = arith.constant 7 : i32
    %255 = arith.subi %c7_i32_60, %c3_i32 : i32
    %c8_i32_61 = arith.constant 8 : i32
    %256 = arith.muli %255, %c8_i32_61 : i32
    %257 = tpu.assume_multiple %256, 8 : i32
    %258 = arith.index_cast %254 : i32 to index
    %c0_62 = arith.constant 0 : index
    %259 = vector.load %arg1[%258, %c0_62] : memref<64x1xf32, #tpu.memory_space<vmem>>, vector<8x1xf32>
    %260 = arith.index_cast %257 : i32 to index
    %c0_63 = arith.constant 0 : index
    %261 = vector.load %arg1[%260, %c0_63] : memref<64x1xf32, #tpu.memory_space<vmem>>, vector<8x1xf32>
    %262 = arith.index_cast %254 : i32 to index
    %c0_64 = arith.constant 0 : index
    %263 = vector.load %arg8[%262, %c0_64] : memref<64x256xf32, #tpu.memory_space<vmem>>, vector<8x128xf32>
    %264 = arith.truncf %215 : vector<8x32xf32> to vector<8x32xbf16>
    %cst_65 = arith.constant dense<0.000000e+00> : vector<8x128xf32>
    %265 = tpu.matmul %264, %7, %cst_65 {dimension_numbers = #tpu.dot_dimension_numbers<[1], [0], [0], [1], [0, 0, 1, 1], [], []>} : vector<8x32xbf16>, vector<32x128xbf16>, vector<8x128xf32> -> vector<8x128xf32>
    %266 = arith.addf %263, %265 : vector<8x128xf32>
    %267 = arith.index_cast %257 : i32 to index
    %c128_66 = arith.constant 128 : index
    %268 = vector.load %arg8[%267, %c128_66] : memref<64x256xf32, #tpu.memory_space<vmem>>, vector<8x128xf32>
    %269 = arith.truncf %242 : vector<8x32xf32> to vector<8x32xbf16>
    %cst_67 = arith.constant dense<0.000000e+00> : vector<8x128xf32>
    %270 = tpu.matmul %269, %8, %cst_67 {dimension_numbers = #tpu.dot_dimension_numbers<[1], [0], [0], [1], [0, 0, 1, 1], [], []>} : vector<8x32xbf16>, vector<32x128xbf16>, vector<8x128xf32> -> vector<8x128xf32>
    %271 = arith.addf %268, %270 : vector<8x128xf32>
    %272 = vector.extract_strided_slice %266 {offsets = [0, 0], sizes = [8, 32], strides = [1, 1]} : vector<8x128xf32> to vector<8x32xf32>
    %273 = arith.negf %272 : vector<8x32xf32>
    %274 = math.exp %273 : vector<8x32xf32>
    %cst_68 = arith.constant 1.000000e+00 : f32
    %275 = vector.broadcast %cst_68 : f32 to vector<8x32xf32>
    %276 = arith.addf %275, %274 : vector<8x32xf32>
    %277 = arith.divf %275, %276 : vector<8x32xf32>
    %278 = vector.extract_strided_slice %266 {offsets = [0, 32], sizes = [8, 32], strides = [1, 1]} : vector<8x128xf32> to vector<8x32xf32>
    %279 = arith.negf %278 : vector<8x32xf32>
    %280 = math.exp %279 : vector<8x32xf32>
    %cst_69 = arith.constant 1.000000e+00 : f32
    %281 = vector.broadcast %cst_69 : f32 to vector<8x32xf32>
    %282 = arith.addf %281, %280 : vector<8x32xf32>
    %283 = arith.divf %281, %282 : vector<8x32xf32>
    %284 = vector.extract_strided_slice %266 {offsets = [0, 64], sizes = [8, 32], strides = [1, 1]} : vector<8x128xf32> to vector<8x32xf32>
    %285 = math.tanh %284 : vector<8x32xf32>
    %286 = vector.extract_strided_slice %266 {offsets = [0, 96], sizes = [8, 32], strides = [1, 1]} : vector<8x128xf32> to vector<8x32xf32>
    %287 = arith.negf %286 : vector<8x32xf32>
    %288 = math.exp %287 : vector<8x32xf32>
    %cst_70 = arith.constant 1.000000e+00 : f32
    %289 = vector.broadcast %cst_70 : f32 to vector<8x32xf32>
    %290 = arith.addf %289, %288 : vector<8x32xf32>
    %291 = arith.divf %289, %290 : vector<8x32xf32>
    %292 = arith.mulf %283, %213 : vector<8x32xf32>
    %293 = arith.mulf %277, %285 : vector<8x32xf32>
    %294 = arith.addf %292, %293 : vector<8x32xf32>
    %295 = math.tanh %294 : vector<8x32xf32>
    %296 = arith.mulf %291, %295 : vector<8x32xf32>
    %297 = vector.extract_strided_slice %271 {offsets = [0, 0], sizes = [8, 32], strides = [1, 1]} : vector<8x128xf32> to vector<8x32xf32>
    %298 = arith.negf %297 : vector<8x32xf32>
    %299 = math.exp %298 : vector<8x32xf32>
    %cst_71 = arith.constant 1.000000e+00 : f32
    %300 = vector.broadcast %cst_71 : f32 to vector<8x32xf32>
    %301 = arith.addf %300, %299 : vector<8x32xf32>
    %302 = arith.divf %300, %301 : vector<8x32xf32>
    %303 = vector.extract_strided_slice %271 {offsets = [0, 32], sizes = [8, 32], strides = [1, 1]} : vector<8x128xf32> to vector<8x32xf32>
    %304 = arith.negf %303 : vector<8x32xf32>
    %305 = math.exp %304 : vector<8x32xf32>
    %cst_72 = arith.constant 1.000000e+00 : f32
    %306 = vector.broadcast %cst_72 : f32 to vector<8x32xf32>
    %307 = arith.addf %306, %305 : vector<8x32xf32>
    %308 = arith.divf %306, %307 : vector<8x32xf32>
    %309 = vector.extract_strided_slice %271 {offsets = [0, 64], sizes = [8, 32], strides = [1, 1]} : vector<8x128xf32> to vector<8x32xf32>
    %310 = math.tanh %309 : vector<8x32xf32>
    %311 = vector.extract_strided_slice %271 {offsets = [0, 96], sizes = [8, 32], strides = [1, 1]} : vector<8x128xf32> to vector<8x32xf32>
    %312 = arith.negf %311 : vector<8x32xf32>
    %313 = math.exp %312 : vector<8x32xf32>
    %cst_73 = arith.constant 1.000000e+00 : f32
    %314 = vector.broadcast %cst_73 : f32 to vector<8x32xf32>
    %315 = arith.addf %314, %313 : vector<8x32xf32>
    %316 = arith.divf %314, %315 : vector<8x32xf32>
    %317 = arith.mulf %308, %244 : vector<8x32xf32>
    %318 = arith.mulf %302, %310 : vector<8x32xf32>
    %319 = arith.addf %317, %318 : vector<8x32xf32>
    %320 = math.tanh %319 : vector<8x32xf32>
    %321 = arith.mulf %316, %320 : vector<8x32xf32>
    %322 = vector.broadcast %261 : vector<8x1xf32> to vector<8x32xf32>
    %323 = arith.mulf %321, %322 : vector<8x32xf32>
    %324 = vector.broadcast %261 : vector<8x1xf32> to vector<8x32xf32>
    %325 = arith.mulf %319, %324 : vector<8x32xf32>
    %326 = vector.broadcast %259 : vector<8x1xf32> to vector<8x32xf32>
    %327 = arith.mulf %296, %326 : vector<8x32xf32>
    %328 = arith.index_cast %254 : i32 to index
    %c0_74 = arith.constant 0 : index
    %329 = vector.load %arg6[%328, %c0_74] : memref<64x64xf32, #tpu.memory_space<vmem>>, vector<8x32xf32>
    tpu.vector_store %arg6[%328, %c0_74], %327 {strides = array<i32>} : memref<64x64xf32, #tpu.memory_space<vmem>>, vector<8x32xf32>,
    %330 = arith.index_cast %257 : i32 to index
    %c32_75 = arith.constant 32 : index
    %331 = vector.load %arg6[%330, %c32_75] : memref<64x64xf32, #tpu.memory_space<vmem>>, vector<8x32xf32>
    tpu.vector_store %arg6[%330, %c32_75], %323 {strides = array<i32>} : memref<64x64xf32, #tpu.memory_space<vmem>>, vector<8x32xf32>,
    %332 = arith.addf %251, %327 : vector<8x32xf32>
    %333 = arith.addf %252, %323 : vector<8x32xf32>
    %c4_i32 = arith.constant 4 : i32
    %c8_i32_76 = arith.constant 8 : i32
    %334 = arith.muli %c4_i32, %c8_i32_76 : i32
    %335 = tpu.assume_multiple %334, 8 : i32
    %c7_i32_77 = arith.constant 7 : i32
    %336 = arith.subi %c7_i32_77, %c4_i32 : i32
    %c8_i32_78 = arith.constant 8 : i32
    %337 = arith.muli %336, %c8_i32_78 : i32
    %338 = tpu.assume_multiple %337, 8 : i32
    %339 = arith.index_cast %335 : i32 to index
    %c0_79 = arith.constant 0 : index
    %340 = vector.load %arg1[%339, %c0_79] : memref<64x1xf32, #tpu.memory_space<vmem>>, vector<8x1xf32>
    %341 = arith.index_cast %338 : i32 to index
    %c0_80 = arith.constant 0 : index
    %342 = vector.load %arg1[%341, %c0_80] : memref<64x1xf32, #tpu.memory_space<vmem>>, vector<8x1xf32>
    %343 = arith.index_cast %335 : i32 to index
    %c0_81 = arith.constant 0 : index
    %344 = vector.load %arg8[%343, %c0_81] : memref<64x256xf32, #tpu.memory_space<vmem>>, vector<8x128xf32>
    %345 = arith.truncf %296 : vector<8x32xf32> to vector<8x32xbf16>
    %cst_82 = arith.constant dense<0.000000e+00> : vector<8x128xf32>
    %346 = tpu.matmul %345, %7, %cst_82 {dimension_numbers = #tpu.dot_dimension_numbers<[1], [0], [0], [1], [0, 0, 1, 1], [], []>} : vector<8x32xbf16>, vector<32x128xbf16>, vector<8x128xf32> -> vector<8x128xf32>
    %347 = arith.addf %344, %346 : vector<8x128xf32>
    %348 = arith.index_cast %338 : i32 to index
    %c128_83 = arith.constant 128 : index
    %349 = vector.load %arg8[%348, %c128_83] : memref<64x256xf32, #tpu.memory_space<vmem>>, vector<8x128xf32>
    %350 = arith.truncf %323 : vector<8x32xf32> to vector<8x32xbf16>
    %cst_84 = arith.constant dense<0.000000e+00> : vector<8x128xf32>
    %351 = tpu.matmul %350, %8, %cst_84 {dimension_numbers = #tpu.dot_dimension_numbers<[1], [0], [0], [1], [0, 0, 1, 1], [], []>} : vector<8x32xbf16>, vector<32x128xbf16>, vector<8x128xf32> -> vector<8x128xf32>
    %352 = arith.addf %349, %351 : vector<8x128xf32>
    %353 = vector.extract_strided_slice %347 {offsets = [0, 0], sizes = [8, 32], strides = [1, 1]} : vector<8x128xf32> to vector<8x32xf32>
    %354 = arith.negf %353 : vector<8x32xf32>
    %355 = math.exp %354 : vector<8x32xf32>
    %cst_85 = arith.constant 1.000000e+00 : f32
    %356 = vector.broadcast %cst_85 : f32 to vector<8x32xf32>
    %357 = arith.addf %356, %355 : vector<8x32xf32>
    %358 = arith.divf %356, %357 : vector<8x32xf32>
    %359 = vector.extract_strided_slice %347 {offsets = [0, 32], sizes = [8, 32], strides = [1, 1]} : vector<8x128xf32> to vector<8x32xf32>
    %360 = arith.negf %359 : vector<8x32xf32>
    %361 = math.exp %360 : vector<8x32xf32>
    %cst_86 = arith.constant 1.000000e+00 : f32
    %362 = vector.broadcast %cst_86 : f32 to vector<8x32xf32>
    %363 = arith.addf %362, %361 : vector<8x32xf32>
    %364 = arith.divf %362, %363 : vector<8x32xf32>
    %365 = vector.extract_strided_slice %347 {offsets = [0, 64], sizes = [8, 32], strides = [1, 1]} : vector<8x128xf32> to vector<8x32xf32>
    %366 = math.tanh %365 : vector<8x32xf32>
    %367 = vector.extract_strided_slice %347 {offsets = [0, 96], sizes = [8, 32], strides = [1, 1]} : vector<8x128xf32> to vector<8x32xf32>
    %368 = arith.negf %367 : vector<8x32xf32>
    %369 = math.exp %368 : vector<8x32xf32>
    %cst_87 = arith.constant 1.000000e+00 : f32
    %370 = vector.broadcast %cst_87 : f32 to vector<8x32xf32>
    %371 = arith.addf %370, %369 : vector<8x32xf32>
    %372 = arith.divf %370, %371 : vector<8x32xf32>
    %373 = arith.mulf %364, %294 : vector<8x32xf32>
    %374 = arith.mulf %358, %366 : vector<8x32xf32>
    %375 = arith.addf %373, %374 : vector<8x32xf32>
    %376 = math.tanh %375 : vector<8x32xf32>
    %377 = arith.mulf %372, %376 : vector<8x32xf32>
    %378 = vector.extract_strided_slice %352 {offsets = [0, 0], sizes = [8, 32], strides = [1, 1]} : vector<8x128xf32> to vector<8x32xf32>
    %379 = arith.negf %378 : vector<8x32xf32>
    %380 = math.exp %379 : vector<8x32xf32>
    %cst_88 = arith.constant 1.000000e+00 : f32
    %381 = vector.broadcast %cst_88 : f32 to vector<8x32xf32>
    %382 = arith.addf %381, %380 : vector<8x32xf32>
    %383 = arith.divf %381, %382 : vector<8x32xf32>
    %384 = vector.extract_strided_slice %352 {offsets = [0, 32], sizes = [8, 32], strides = [1, 1]} : vector<8x128xf32> to vector<8x32xf32>
    %385 = arith.negf %384 : vector<8x32xf32>
    %386 = math.exp %385 : vector<8x32xf32>
    %cst_89 = arith.constant 1.000000e+00 : f32
    %387 = vector.broadcast %cst_89 : f32 to vector<8x32xf32>
    %388 = arith.addf %387, %386 : vector<8x32xf32>
    %389 = arith.divf %387, %388 : vector<8x32xf32>
    %390 = vector.extract_strided_slice %352 {offsets = [0, 64], sizes = [8, 32], strides = [1, 1]} : vector<8x128xf32> to vector<8x32xf32>
    %391 = math.tanh %390 : vector<8x32xf32>
    %392 = vector.extract_strided_slice %352 {offsets = [0, 96], sizes = [8, 32], strides = [1, 1]} : vector<8x128xf32> to vector<8x32xf32>
    %393 = arith.negf %392 : vector<8x32xf32>
    %394 = math.exp %393 : vector<8x32xf32>
    %cst_90 = arith.constant 1.000000e+00 : f32
    %395 = vector.broadcast %cst_90 : f32 to vector<8x32xf32>
    %396 = arith.addf %395, %394 : vector<8x32xf32>
    %397 = arith.divf %395, %396 : vector<8x32xf32>
    %398 = arith.mulf %389, %325 : vector<8x32xf32>
    %399 = arith.mulf %383, %391 : vector<8x32xf32>
    %400 = arith.addf %398, %399 : vector<8x32xf32>
    %401 = math.tanh %400 : vector<8x32xf32>
    %402 = arith.mulf %397, %401 : vector<8x32xf32>
    %403 = vector.broadcast %342 : vector<8x1xf32> to vector<8x32xf32>
    %404 = arith.mulf %402, %403 : vector<8x32xf32>
    %405 = vector.broadcast %342 : vector<8x1xf32> to vector<8x32xf32>
    %406 = arith.mulf %400, %405 : vector<8x32xf32>
    %407 = vector.broadcast %340 : vector<8x1xf32> to vector<8x32xf32>
    %408 = arith.mulf %377, %407 : vector<8x32xf32>
    %409 = arith.index_cast %335 : i32 to index
    %c0_91 = arith.constant 0 : index
    %410 = vector.load %arg6[%409, %c0_91] : memref<64x64xf32, #tpu.memory_space<vmem>>, vector<8x32xf32>
    tpu.vector_store %arg6[%409, %c0_91], %408 {strides = array<i32>} : memref<64x64xf32, #tpu.memory_space<vmem>>, vector<8x32xf32>,
    %411 = arith.index_cast %338 : i32 to index
    %c32_92 = arith.constant 32 : index
    %412 = vector.load %arg6[%411, %c32_92] : memref<64x64xf32, #tpu.memory_space<vmem>>, vector<8x32xf32>
    tpu.vector_store %arg6[%411, %c32_92], %404 {strides = array<i32>} : memref<64x64xf32, #tpu.memory_space<vmem>>, vector<8x32xf32>,
    %413 = arith.addf %332, %408 : vector<8x32xf32>
    %414 = arith.addf %333, %404 : vector<8x32xf32>
    %c5_i32 = arith.constant 5 : i32
    %c8_i32_93 = arith.constant 8 : i32
    %415 = arith.muli %c5_i32, %c8_i32_93 : i32
    %416 = tpu.assume_multiple %415, 8 : i32
    %c7_i32_94 = arith.constant 7 : i32
    %417 = arith.subi %c7_i32_94, %c5_i32 : i32
    %c8_i32_95 = arith.constant 8 : i32
    %418 = arith.muli %417, %c8_i32_95 : i32
    %419 = tpu.assume_multiple %418, 8 : i32
    %420 = arith.index_cast %416 : i32 to index
    %c0_96 = arith.constant 0 : index
    %421 = vector.load %arg1[%420, %c0_96] : memref<64x1xf32, #tpu.memory_space<vmem>>, vector<8x1xf32>
    %422 = arith.index_cast %419 : i32 to index
    %c0_97 = arith.constant 0 : index
    %423 = vector.load %arg1[%422, %c0_97] : memref<64x1xf32, #tpu.memory_space<vmem>>, vector<8x1xf32>
    %424 = arith.index_cast %416 : i32 to index
    %c0_98 = arith.constant 0 : index
    %425 = vector.load %arg8[%424, %c0_98] : memref<64x256xf32, #tpu.memory_space<vmem>>, vector<8x128xf32>
    %426 = arith.truncf %377 : vector<8x32xf32> to vector<8x32xbf16>
    %cst_99 = arith.constant dense<0.000000e+00> : vector<8x128xf32>
    %427 = tpu.matmul %426, %7, %cst_99 {dimension_numbers = #tpu.dot_dimension_numbers<[1], [0], [0], [1], [0, 0, 1, 1], [], []>} : vector<8x32xbf16>, vector<32x128xbf16>, vector<8x128xf32> -> vector<8x128xf32>
    %428 = arith.addf %425, %427 : vector<8x128xf32>
    %429 = arith.index_cast %419 : i32 to index
    %c128_100 = arith.constant 128 : index
    %430 = vector.load %arg8[%429, %c128_100] : memref<64x256xf32, #tpu.memory_space<vmem>>, vector<8x128xf32>
    %431 = arith.truncf %404 : vector<8x32xf32> to vector<8x32xbf16>
    %cst_101 = arith.constant dense<0.000000e+00> : vector<8x128xf32>
    %432 = tpu.matmul %431, %8, %cst_101 {dimension_numbers = #tpu.dot_dimension_numbers<[1], [0], [0], [1], [0, 0, 1, 1], [], []>} : vector<8x32xbf16>, vector<32x128xbf16>, vector<8x128xf32> -> vector<8x128xf32>
    %433 = arith.addf %430, %432 : vector<8x128xf32>
    %434 = vector.extract_strided_slice %428 {offsets = [0, 0], sizes = [8, 32], strides = [1, 1]} : vector<8x128xf32> to vector<8x32xf32>
    %435 = arith.negf %434 : vector<8x32xf32>
    %436 = math.exp %435 : vector<8x32xf32>
    %cst_102 = arith.constant 1.000000e+00 : f32
    %437 = vector.broadcast %cst_102 : f32 to vector<8x32xf32>
    %438 = arith.addf %437, %436 : vector<8x32xf32>
    %439 = arith.divf %437, %438 : vector<8x32xf32>
    %440 = vector.extract_strided_slice %428 {offsets = [0, 32], sizes = [8, 32], strides = [1, 1]} : vector<8x128xf32> to vector<8x32xf32>
    %441 = arith.negf %440 : vector<8x32xf32>
    %442 = math.exp %441 : vector<8x32xf32>
    %cst_103 = arith.constant 1.000000e+00 : f32
    %443 = vector.broadcast %cst_103 : f32 to vector<8x32xf32>
    %444 = arith.addf %443, %442 : vector<8x32xf32>
    %445 = arith.divf %443, %444 : vector<8x32xf32>
    %446 = vector.extract_strided_slice %428 {offsets = [0, 64], sizes = [8, 32], strides = [1, 1]} : vector<8x128xf32> to vector<8x32xf32>
    %447 = math.tanh %446 : vector<8x32xf32>
    %448 = vector.extract_strided_slice %428 {offsets = [0, 96], sizes = [8, 32], strides = [1, 1]} : vector<8x128xf32> to vector<8x32xf32>
    %449 = arith.negf %448 : vector<8x32xf32>
    %450 = math.exp %449 : vector<8x32xf32>
    %cst_104 = arith.constant 1.000000e+00 : f32
    %451 = vector.broadcast %cst_104 : f32 to vector<8x32xf32>
    %452 = arith.addf %451, %450 : vector<8x32xf32>
    %453 = arith.divf %451, %452 : vector<8x32xf32>
    %454 = arith.mulf %445, %375 : vector<8x32xf32>
    %455 = arith.mulf %439, %447 : vector<8x32xf32>
    %456 = arith.addf %454, %455 : vector<8x32xf32>
    %457 = math.tanh %456 : vector<8x32xf32>
    %458 = arith.mulf %453, %457 : vector<8x32xf32>
    %459 = vector.extract_strided_slice %433 {offsets = [0, 0], sizes = [8, 32], strides = [1, 1]} : vector<8x128xf32> to vector<8x32xf32>
    %460 = arith.negf %459 : vector<8x32xf32>
    %461 = math.exp %460 : vector<8x32xf32>
    %cst_105 = arith.constant 1.000000e+00 : f32
    %462 = vector.broadcast %cst_105 : f32 to vector<8x32xf32>
    %463 = arith.addf %462, %461 : vector<8x32xf32>
    %464 = arith.divf %462, %463 : vector<8x32xf32>
    %465 = vector.extract_strided_slice %433 {offsets = [0, 32], sizes = [8, 32], strides = [1, 1]} : vector<8x128xf32> to vector<8x32xf32>
    %466 = arith.negf %465 : vector<8x32xf32>
    %467 = math.exp %466 : vector<8x32xf32>
    %cst_106 = arith.constant 1.000000e+00 : f32
    %468 = vector.broadcast %cst_106 : f32 to vector<8x32xf32>
    %469 = arith.addf %468, %467 : vector<8x32xf32>
    %470 = arith.divf %468, %469 : vector<8x32xf32>
    %471 = vector.extract_strided_slice %433 {offsets = [0, 64], sizes = [8, 32], strides = [1, 1]} : vector<8x128xf32> to vector<8x32xf32>
    %472 = math.tanh %471 : vector<8x32xf32>
    %473 = vector.extract_strided_slice %433 {offsets = [0, 96], sizes = [8, 32], strides = [1, 1]} : vector<8x128xf32> to vector<8x32xf32>
    %474 = arith.negf %473 : vector<8x32xf32>
    %475 = math.exp %474 : vector<8x32xf32>
    %cst_107 = arith.constant 1.000000e+00 : f32
    %476 = vector.broadcast %cst_107 : f32 to vector<8x32xf32>
    %477 = arith.addf %476, %475 : vector<8x32xf32>
    %478 = arith.divf %476, %477 : vector<8x32xf32>
    %479 = arith.mulf %470, %406 : vector<8x32xf32>
    %480 = arith.mulf %464, %472 : vector<8x32xf32>
    %481 = arith.addf %479, %480 : vector<8x32xf32>
    %482 = math.tanh %481 : vector<8x32xf32>
    %483 = arith.mulf %478, %482 : vector<8x32xf32>
    %484 = vector.broadcast %423 : vector<8x1xf32> to vector<8x32xf32>
    %485 = arith.mulf %483, %484 : vector<8x32xf32>
    %486 = vector.broadcast %423 : vector<8x1xf32> to vector<8x32xf32>
    %487 = arith.mulf %481, %486 : vector<8x32xf32>
    %488 = vector.broadcast %421 : vector<8x1xf32> to vector<8x32xf32>
    %489 = arith.mulf %458, %488 : vector<8x32xf32>
    %490 = arith.index_cast %416 : i32 to index
    %c0_108 = arith.constant 0 : index
    %491 = vector.load %arg6[%490, %c0_108] : memref<64x64xf32, #tpu.memory_space<vmem>>, vector<8x32xf32>
    tpu.vector_store %arg6[%490, %c0_108], %489 {strides = array<i32>} : memref<64x64xf32, #tpu.memory_space<vmem>>, vector<8x32xf32>,
    %492 = arith.index_cast %419 : i32 to index
    %c32_109 = arith.constant 32 : index
    %493 = vector.load %arg6[%492, %c32_109] : memref<64x64xf32, #tpu.memory_space<vmem>>, vector<8x32xf32>
    tpu.vector_store %arg6[%492, %c32_109], %485 {strides = array<i32>} : memref<64x64xf32, #tpu.memory_space<vmem>>, vector<8x32xf32>,
    %494 = arith.addf %413, %489 : vector<8x32xf32>
    %495 = arith.addf %414, %485 : vector<8x32xf32>
    %c6_i32 = arith.constant 6 : i32
    %c8_i32_110 = arith.constant 8 : i32
    %496 = arith.muli %c6_i32, %c8_i32_110 : i32
    %497 = tpu.assume_multiple %496, 8 : i32
    %c7_i32_111 = arith.constant 7 : i32
    %498 = arith.subi %c7_i32_111, %c6_i32 : i32
    %c8_i32_112 = arith.constant 8 : i32
    %499 = arith.muli %498, %c8_i32_112 : i32
    %500 = tpu.assume_multiple %499, 8 : i32
    %501 = arith.index_cast %497 : i32 to index
    %c0_113 = arith.constant 0 : index
    %502 = vector.load %arg1[%501, %c0_113] : memref<64x1xf32, #tpu.memory_space<vmem>>, vector<8x1xf32>
    %503 = arith.index_cast %500 : i32 to index
    %c0_114 = arith.constant 0 : index
    %504 = vector.load %arg1[%503, %c0_114] : memref<64x1xf32, #tpu.memory_space<vmem>>, vector<8x1xf32>
    %505 = arith.index_cast %497 : i32 to index
    %c0_115 = arith.constant 0 : index
    %506 = vector.load %arg8[%505, %c0_115] : memref<64x256xf32, #tpu.memory_space<vmem>>, vector<8x128xf32>
    %507 = arith.truncf %458 : vector<8x32xf32> to vector<8x32xbf16>
    %cst_116 = arith.constant dense<0.000000e+00> : vector<8x128xf32>
    %508 = tpu.matmul %507, %7, %cst_116 {dimension_numbers = #tpu.dot_dimension_numbers<[1], [0], [0], [1], [0, 0, 1, 1], [], []>} : vector<8x32xbf16>, vector<32x128xbf16>, vector<8x128xf32> -> vector<8x128xf32>
    %509 = arith.addf %506, %508 : vector<8x128xf32>
    %510 = arith.index_cast %500 : i32 to index
    %c128_117 = arith.constant 128 : index
    %511 = vector.load %arg8[%510, %c128_117] : memref<64x256xf32, #tpu.memory_space<vmem>>, vector<8x128xf32>
    %512 = arith.truncf %485 : vector<8x32xf32> to vector<8x32xbf16>
    %cst_118 = arith.constant dense<0.000000e+00> : vector<8x128xf32>
    %513 = tpu.matmul %512, %8, %cst_118 {dimension_numbers = #tpu.dot_dimension_numbers<[1], [0], [0], [1], [0, 0, 1, 1], [], []>} : vector<8x32xbf16>, vector<32x128xbf16>, vector<8x128xf32> -> vector<8x128xf32>
    %514 = arith.addf %511, %513 : vector<8x128xf32>
    %515 = vector.extract_strided_slice %509 {offsets = [0, 0], sizes = [8, 32], strides = [1, 1]} : vector<8x128xf32> to vector<8x32xf32>
    %516 = arith.negf %515 : vector<8x32xf32>
    %517 = math.exp %516 : vector<8x32xf32>
    %cst_119 = arith.constant 1.000000e+00 : f32
    %518 = vector.broadcast %cst_119 : f32 to vector<8x32xf32>
    %519 = arith.addf %518, %517 : vector<8x32xf32>
    %520 = arith.divf %518, %519 : vector<8x32xf32>
    %521 = vector.extract_strided_slice %509 {offsets = [0, 32], sizes = [8, 32], strides = [1, 1]} : vector<8x128xf32> to vector<8x32xf32>
    %522 = arith.negf %521 : vector<8x32xf32>
    %523 = math.exp %522 : vector<8x32xf32>
    %cst_120 = arith.constant 1.000000e+00 : f32
    %524 = vector.broadcast %cst_120 : f32 to vector<8x32xf32>
    %525 = arith.addf %524, %523 : vector<8x32xf32>
    %526 = arith.divf %524, %525 : vector<8x32xf32>
    %527 = vector.extract_strided_slice %509 {offsets = [0, 64], sizes = [8, 32], strides = [1, 1]} : vector<8x128xf32> to vector<8x32xf32>
    %528 = math.tanh %527 : vector<8x32xf32>
    %529 = vector.extract_strided_slice %509 {offsets = [0, 96], sizes = [8, 32], strides = [1, 1]} : vector<8x128xf32> to vector<8x32xf32>
    %530 = arith.negf %529 : vector<8x32xf32>
    %531 = math.exp %530 : vector<8x32xf32>
    %cst_121 = arith.constant 1.000000e+00 : f32
    %532 = vector.broadcast %cst_121 : f32 to vector<8x32xf32>
    %533 = arith.addf %532, %531 : vector<8x32xf32>
    %534 = arith.divf %532, %533 : vector<8x32xf32>
    %535 = arith.mulf %526, %456 : vector<8x32xf32>
    %536 = arith.mulf %520, %528 : vector<8x32xf32>
    %537 = arith.addf %535, %536 : vector<8x32xf32>
    %538 = math.tanh %537 : vector<8x32xf32>
    %539 = arith.mulf %534, %538 : vector<8x32xf32>
    %540 = vector.extract_strided_slice %514 {offsets = [0, 0], sizes = [8, 32], strides = [1, 1]} : vector<8x128xf32> to vector<8x32xf32>
    %541 = arith.negf %540 : vector<8x32xf32>
    %542 = math.exp %541 : vector<8x32xf32>
    %cst_122 = arith.constant 1.000000e+00 : f32
    %543 = vector.broadcast %cst_122 : f32 to vector<8x32xf32>
    %544 = arith.addf %543, %542 : vector<8x32xf32>
    %545 = arith.divf %543, %544 : vector<8x32xf32>
    %546 = vector.extract_strided_slice %514 {offsets = [0, 32], sizes = [8, 32], strides = [1, 1]} : vector<8x128xf32> to vector<8x32xf32>
    %547 = arith.negf %546 : vector<8x32xf32>
    %548 = math.exp %547 : vector<8x32xf32>
    %cst_123 = arith.constant 1.000000e+00 : f32
    %549 = vector.broadcast %cst_123 : f32 to vector<8x32xf32>
    %550 = arith.addf %549, %548 : vector<8x32xf32>
    %551 = arith.divf %549, %550 : vector<8x32xf32>
    %552 = vector.extract_strided_slice %514 {offsets = [0, 64], sizes = [8, 32], strides = [1, 1]} : vector<8x128xf32> to vector<8x32xf32>
    %553 = math.tanh %552 : vector<8x32xf32>
    %554 = vector.extract_strided_slice %514 {offsets = [0, 96], sizes = [8, 32], strides = [1, 1]} : vector<8x128xf32> to vector<8x32xf32>
    %555 = arith.negf %554 : vector<8x32xf32>
    %556 = math.exp %555 : vector<8x32xf32>
    %cst_124 = arith.constant 1.000000e+00 : f32
    %557 = vector.broadcast %cst_124 : f32 to vector<8x32xf32>
    %558 = arith.addf %557, %556 : vector<8x32xf32>
    %559 = arith.divf %557, %558 : vector<8x32xf32>
    %560 = arith.mulf %551, %487 : vector<8x32xf32>
    %561 = arith.mulf %545, %553 : vector<8x32xf32>
    %562 = arith.addf %560, %561 : vector<8x32xf32>
    %563 = math.tanh %562 : vector<8x32xf32>
    %564 = arith.mulf %559, %563 : vector<8x32xf32>
    %565 = vector.broadcast %504 : vector<8x1xf32> to vector<8x32xf32>
    %566 = arith.mulf %564, %565 : vector<8x32xf32>
    %567 = vector.broadcast %504 : vector<8x1xf32> to vector<8x32xf32>
    %568 = arith.mulf %562, %567 : vector<8x32xf32>
    %569 = vector.broadcast %502 : vector<8x1xf32> to vector<8x32xf32>
    %570 = arith.mulf %539, %569 : vector<8x32xf32>
    %571 = arith.index_cast %497 : i32 to index
    %c0_125 = arith.constant 0 : index
    %572 = vector.load %arg6[%571, %c0_125] : memref<64x64xf32, #tpu.memory_space<vmem>>, vector<8x32xf32>
    tpu.vector_store %arg6[%571, %c0_125], %570 {strides = array<i32>} : memref<64x64xf32, #tpu.memory_space<vmem>>, vector<8x32xf32>,
    %573 = arith.index_cast %500 : i32 to index
    %c32_126 = arith.constant 32 : index
    %574 = vector.load %arg6[%573, %c32_126] : memref<64x64xf32, #tpu.memory_space<vmem>>, vector<8x32xf32>
    tpu.vector_store %arg6[%573, %c32_126], %566 {strides = array<i32>} : memref<64x64xf32, #tpu.memory_space<vmem>>, vector<8x32xf32>,
    %575 = arith.addf %494, %570 : vector<8x32xf32>
    %576 = arith.addf %495, %566 : vector<8x32xf32>
    %c7_i32_127 = arith.constant 7 : i32
    %c8_i32_128 = arith.constant 8 : i32
    %577 = arith.muli %c7_i32_127, %c8_i32_128 : i32
    %578 = tpu.assume_multiple %577, 8 : i32
    %c7_i32_129 = arith.constant 7 : i32
    %579 = arith.subi %c7_i32_129, %c7_i32_127 : i32
    %c8_i32_130 = arith.constant 8 : i32
    %580 = arith.muli %579, %c8_i32_130 : i32
    %581 = tpu.assume_multiple %580, 8 : i32
    %582 = arith.index_cast %578 : i32 to index
    %c0_131 = arith.constant 0 : index
    %583 = vector.load %arg1[%582, %c0_131] : memref<64x1xf32, #tpu.memory_space<vmem>>, vector<8x1xf32>
    %584 = arith.index_cast %581 : i32 to index
    %c0_132 = arith.constant 0 : index
    %585 = vector.load %arg1[%584, %c0_132] : memref<64x1xf32, #tpu.memory_space<vmem>>, vector<8x1xf32>
    %586 = arith.index_cast %578 : i32 to index
    %c0_133 = arith.constant 0 : index
    %587 = vector.load %arg8[%586, %c0_133] : memref<64x256xf32, #tpu.memory_space<vmem>>, vector<8x128xf32>
    %588 = arith.truncf %539 : vector<8x32xf32> to vector<8x32xbf16>
    %cst_134 = arith.constant dense<0.000000e+00> : vector<8x128xf32>
    %589 = tpu.matmul %588, %7, %cst_134 {dimension_numbers = #tpu.dot_dimension_numbers<[1], [0], [0], [1], [0, 0, 1, 1], [], []>} : vector<8x32xbf16>, vector<32x128xbf16>, vector<8x128xf32> -> vector<8x128xf32>
    %590 = arith.addf %587, %589 : vector<8x128xf32>
    %591 = arith.index_cast %581 : i32 to index
    %c128_135 = arith.constant 128 : index
    %592 = vector.load %arg8[%591, %c128_135] : memref<64x256xf32, #tpu.memory_space<vmem>>, vector<8x128xf32>
    %593 = arith.truncf %566 : vector<8x32xf32> to vector<8x32xbf16>
    %cst_136 = arith.constant dense<0.000000e+00> : vector<8x128xf32>
    %594 = tpu.matmul %593, %8, %cst_136 {dimension_numbers = #tpu.dot_dimension_numbers<[1], [0], [0], [1], [0, 0, 1, 1], [], []>} : vector<8x32xbf16>, vector<32x128xbf16>, vector<8x128xf32> -> vector<8x128xf32>
    %595 = arith.addf %592, %594 : vector<8x128xf32>
    %596 = vector.extract_strided_slice %590 {offsets = [0, 0], sizes = [8, 32], strides = [1, 1]} : vector<8x128xf32> to vector<8x32xf32>
    %597 = arith.negf %596 : vector<8x32xf32>
    %598 = math.exp %597 : vector<8x32xf32>
    %cst_137 = arith.constant 1.000000e+00 : f32
    %599 = vector.broadcast %cst_137 : f32 to vector<8x32xf32>
    %600 = arith.addf %599, %598 : vector<8x32xf32>
    %601 = arith.divf %599, %600 : vector<8x32xf32>
    %602 = vector.extract_strided_slice %590 {offsets = [0, 32], sizes = [8, 32], strides = [1, 1]} : vector<8x128xf32> to vector<8x32xf32>
    %603 = arith.negf %602 : vector<8x32xf32>
    %604 = math.exp %603 : vector<8x32xf32>
    %cst_138 = arith.constant 1.000000e+00 : f32
    %605 = vector.broadcast %cst_138 : f32 to vector<8x32xf32>
    %606 = arith.addf %605, %604 : vector<8x32xf32>
    %607 = arith.divf %605, %606 : vector<8x32xf32>
    %608 = vector.extract_strided_slice %590 {offsets = [0, 64], sizes = [8, 32], strides = [1, 1]} : vector<8x128xf32> to vector<8x32xf32>
    %609 = math.tanh %608 : vector<8x32xf32>
    %610 = vector.extract_strided_slice %590 {offsets = [0, 96], sizes = [8, 32], strides = [1, 1]} : vector<8x128xf32> to vector<8x32xf32>
    %611 = arith.negf %610 : vector<8x32xf32>
    %612 = math.exp %611 : vector<8x32xf32>
    %cst_139 = arith.constant 1.000000e+00 : f32
    %613 = vector.broadcast %cst_139 : f32 to vector<8x32xf32>
    %614 = arith.addf %613, %612 : vector<8x32xf32>
    %615 = arith.divf %613, %614 : vector<8x32xf32>
    %616 = arith.mulf %607, %537 : vector<8x32xf32>
    %617 = arith.mulf %601, %609 : vector<8x32xf32>
    %618 = arith.addf %616, %617 : vector<8x32xf32>
    %619 = math.tanh %618 : vector<8x32xf32>
    %620 = arith.mulf %615, %619 : vector<8x32xf32>
    %621 = vector.extract_strided_slice %595 {offsets = [0, 0], sizes = [8, 32], strides = [1, 1]} : vector<8x128xf32> to vector<8x32xf32>
    %622 = arith.negf %621 : vector<8x32xf32>
    %623 = math.exp %622 : vector<8x32xf32>
    %cst_140 = arith.constant 1.000000e+00 : f32
    %624 = vector.broadcast %cst_140 : f32 to vector<8x32xf32>
    %625 = arith.addf %624, %623 : vector<8x32xf32>
    %626 = arith.divf %624, %625 : vector<8x32xf32>
    %627 = vector.extract_strided_slice %595 {offsets = [0, 32], sizes = [8, 32], strides = [1, 1]} : vector<8x128xf32> to vector<8x32xf32>
    %628 = arith.negf %627 : vector<8x32xf32>
    %629 = math.exp %628 : vector<8x32xf32>
    %cst_141 = arith.constant 1.000000e+00 : f32
    %630 = vector.broadcast %cst_141 : f32 to vector<8x32xf32>
    %631 = arith.addf %630, %629 : vector<8x32xf32>
    %632 = arith.divf %630, %631 : vector<8x32xf32>
    %633 = vector.extract_strided_slice %595 {offsets = [0, 64], sizes = [8, 32], strides = [1, 1]} : vector<8x128xf32> to vector<8x32xf32>
    %634 = math.tanh %633 : vector<8x32xf32>
    %635 = vector.extract_strided_slice %595 {offsets = [0, 96], sizes = [8, 32], strides = [1, 1]} : vector<8x128xf32> to vector<8x32xf32>
    %636 = arith.negf %635 : vector<8x32xf32>
    %637 = math.exp %636 : vector<8x32xf32>
    %cst_142 = arith.constant 1.000000e+00 : f32
    %638 = vector.broadcast %cst_142 : f32 to vector<8x32xf32>
    %639 = arith.addf %638, %637 : vector<8x32xf32>
    %640 = arith.divf %638, %639 : vector<8x32xf32>
    %641 = arith.mulf %632, %568 : vector<8x32xf32>
    %642 = arith.mulf %626, %634 : vector<8x32xf32>
    %643 = arith.addf %641, %642 : vector<8x32xf32>
    %644 = math.tanh %643 : vector<8x32xf32>
    %645 = arith.mulf %640, %644 : vector<8x32xf32>
    %646 = vector.broadcast %585 : vector<8x1xf32> to vector<8x32xf32>
    %647 = arith.mulf %645, %646 : vector<8x32xf32>
    %648 = vector.broadcast %585 : vector<8x1xf32> to vector<8x32xf32>
    %649 = arith.mulf %643, %648 : vector<8x32xf32>
    %650 = vector.broadcast %583 : vector<8x1xf32> to vector<8x32xf32>
    %651 = arith.mulf %620, %650 : vector<8x32xf32>
    %652 = arith.index_cast %578 : i32 to index
    %c0_143 = arith.constant 0 : index
    %653 = vector.load %arg6[%652, %c0_143] : memref<64x64xf32, #tpu.memory_space<vmem>>, vector<8x32xf32>
    tpu.vector_store %arg6[%652, %c0_143], %651 {strides = array<i32>} : memref<64x64xf32, #tpu.memory_space<vmem>>, vector<8x32xf32>,
    %654 = arith.index_cast %581 : i32 to index
    %c32_144 = arith.constant 32 : index
    %655 = vector.load %arg6[%654, %c32_144] : memref<64x64xf32, #tpu.memory_space<vmem>>, vector<8x32xf32>
    tpu.vector_store %arg6[%654, %c32_144], %647 {strides = array<i32>} : memref<64x64xf32, #tpu.memory_space<vmem>>, vector<8x32xf32>,
    %656 = arith.addf %575, %651 : vector<8x32xf32>
    %657 = arith.addf %576, %647 : vector<8x32xf32>
    %c8_i32_145 = arith.constant 8 : i32
    %658 = tpu.concatenate %656, %657 in 1 : vector<8x32xf32>, vector<8x32xf32> -> vector<8x64xf32>
    %c0_146 = arith.constant 0 : index
    %c0_147 = arith.constant 0 : index
    %659 = vector.load %arg7[%c0_146, %c0_147] : memref<8x64xf32, #tpu.memory_space<vmem>>, vector<8x64xf32>
    tpu.vector_store %arg7[%c0_146, %c0_147], %658 {strides = array<i32>} : memref<8x64xf32, #tpu.memory_space<vmem>>, vector<8x64xf32>,
    return
  }
}

module attributes {stable_mosaic.version = 11 : i64} {
  func.func @_bilstm_layer_kernel(%arg0: memref<64x64xbf16, #tpu.memory_space<vmem>>, %arg1: memref<64x1xf32, #tpu.memory_space<vmem>>, %arg2: memref<64x256xbf16, #tpu.memory_space<vmem>>, %arg3: memref<32x128xbf16, #tpu.memory_space<vmem>>, %arg4: memref<32x128xbf16, #tpu.memory_space<vmem>>, %arg5: memref<1x256xf32, #tpu.memory_space<vmem>>, %arg6: memref<8x64xf32, #tpu.memory_space<vmem>>, %arg7: memref<8x64xf32, #tpu.memory_space<vmem>>, %arg8: memref<64x256xf32, #tpu.memory_space<vmem>>) attributes {dimension_semantics = [], scalar_prefetch = 0 : i64, scratch_operands = 1 : i64, tpu.core_type = #tpu.core_type<tc>} {
    %c0 = arith.constant 0 : index
    %c0_0 = arith.constant 0 : index
    %0 = vector.load %arg0[%c0, %c0_0] : memref<64x64xbf16, #tpu.memory_space<vmem>>, vector<64x64xbf16>
    %c0_1 = arith.constant 0 : index
    %c0_2 = arith.constant 0 : index
    %1 = vector.load %arg2[%c0_1, %c0_2] : memref<64x256xbf16, #tpu.memory_space<vmem>>, vector<64x256xbf16>
    %cst = arith.constant dense<0.000000e+00> : vector<64x256xf32>
    %2 = tpu.matmul %0, %1, %cst {dimension_numbers = #tpu.dot_dimension_numbers<[1], [0], [0], [1], [0, 0, 1, 1], [], []>} : vector<64x64xbf16>, vector<64x256xbf16>, vector<64x256xf32> -> vector<64x256xf32>
    %c0_3 = arith.constant 0 : index
    %c0_4 = arith.constant 0 : index
    %3 = vector.load %arg5[%c0_3, %c0_4] : memref<1x256xf32, #tpu.memory_space<vmem>>, vector<1x256xf32>
    %4 = vector.broadcast %3 : vector<1x256xf32> to vector<64x256xf32>
    %5 = arith.addf %2, %4 : vector<64x256xf32>
    %c0_5 = arith.constant 0 : index
    %c0_6 = arith.constant 0 : index
    %6 = vector.load %arg8[%c0_5, %c0_6] : memref<64x256xf32, #tpu.memory_space<vmem>>, vector<64x256xf32>
    tpu.vector_store %arg8[%c0_5, %c0_6], %5 {strides = array<i32>} : memref<64x256xf32, #tpu.memory_space<vmem>>, vector<64x256xf32>,
    %c0_7 = arith.constant 0 : index
    %c0_8 = arith.constant 0 : index
    %7 = vector.load %arg3[%c0_7, %c0_8] : memref<32x128xbf16, #tpu.memory_space<vmem>>, vector<32x128xbf16>
    %c0_9 = arith.constant 0 : index
    %c0_10 = arith.constant 0 : index
    %8 = vector.load %arg4[%c0_9, %c0_10] : memref<32x128xbf16, #tpu.memory_space<vmem>>, vector<32x128xbf16>
    %cst_11 = arith.constant 0.000000e+00 : f32
    %9 = vector.broadcast %cst_11 : f32 to vector<8x64xf32>
    %c0_12 = arith.constant 0 : index
    %c0_13 = arith.constant 0 : index
    %10 = vector.load %arg6[%c0_12, %c0_13] : memref<8x64xf32, #tpu.memory_space<vmem>>, vector<8x64xf32>
    tpu.vector_store %arg6[%c0_12, %c0_13], %9 {strides = array<i32>} : memref<8x64xf32, #tpu.memory_space<vmem>>, vector<8x64xf32>,
    %cst_14 = arith.constant 0.000000e+00 : f32
    %11 = vector.broadcast %cst_14 : f32 to vector<8x32xf32>
    %c0_i32 = arith.constant 0 : i32
    %c8_i32 = arith.constant 8 : i32
    %12 = arith.muli %c0_i32, %c8_i32 : i32
    %13 = tpu.assume_multiple %12, 8 : i32
    %c7_i32 = arith.constant 7 : i32
    %14 = arith.subi %c7_i32, %c0_i32 : i32
    %c8_i32_15 = arith.constant 8 : i32
    %15 = arith.muli %14, %c8_i32_15 : i32
    %16 = tpu.assume_multiple %15, 8 : i32
    %17 = arith.index_cast %13 : i32 to index
    %c0_16 = arith.constant 0 : index
    %18 = vector.load %arg1[%17, %c0_16] : memref<64x1xf32, #tpu.memory_space<vmem>>, vector<8x1xf32>
    %19 = arith.index_cast %16 : i32 to index
    %c0_17 = arith.constant 0 : index
    %20 = vector.load %arg1[%19, %c0_17] : memref<64x1xf32, #tpu.memory_space<vmem>>, vector<8x1xf32>
    %21 = arith.index_cast %13 : i32 to index
    %c0_18 = arith.constant 0 : index
    %22 = vector.load %arg8[%21, %c0_18] : memref<64x256xf32, #tpu.memory_space<vmem>>, vector<8x128xf32>
    %23 = arith.truncf %11 : vector<8x32xf32> to vector<8x32xbf16>
    %cst_19 = arith.constant dense<0.000000e+00> : vector<8x128xf32>
    %24 = tpu.matmul %23, %7, %cst_19 {dimension_numbers = #tpu.dot_dimension_numbers<[1], [0], [0], [1], [0, 0, 1, 1], [], []>} : vector<8x32xbf16>, vector<32x128xbf16>, vector<8x128xf32> -> vector<8x128xf32>
    %25 = arith.addf %22, %24 : vector<8x128xf32>
    %26 = arith.index_cast %16 : i32 to index
    %c128 = arith.constant 128 : index
    %27 = vector.load %arg8[%26, %c128] : memref<64x256xf32, #tpu.memory_space<vmem>>, vector<8x128xf32>
    %28 = arith.truncf %11 : vector<8x32xf32> to vector<8x32xbf16>
    %cst_20 = arith.constant dense<0.000000e+00> : vector<8x128xf32>
    %29 = tpu.matmul %28, %8, %cst_20 {dimension_numbers = #tpu.dot_dimension_numbers<[1], [0], [0], [1], [0, 0, 1, 1], [], []>} : vector<8x32xbf16>, vector<32x128xbf16>, vector<8x128xf32> -> vector<8x128xf32>
    %30 = arith.addf %27, %29 : vector<8x128xf32>
    %31 = vector.extract_strided_slice %25 {offsets = [0, 0], sizes = [8, 32], strides = [1, 1]} : vector<8x128xf32> to vector<8x32xf32>
    %32 = arith.negf %31 : vector<8x32xf32>
    %33 = math.exp %32 : vector<8x32xf32>
    %cst_21 = arith.constant 1.000000e+00 : f32
    %34 = vector.broadcast %cst_21 : f32 to vector<8x32xf32>
    %35 = arith.addf %34, %33 : vector<8x32xf32>
    %36 = arith.divf %34, %35 : vector<8x32xf32>
    %37 = vector.extract_strided_slice %25 {offsets = [0, 32], sizes = [8, 32], strides = [1, 1]} : vector<8x128xf32> to vector<8x32xf32>
    %38 = arith.negf %37 : vector<8x32xf32>
    %39 = math.exp %38 : vector<8x32xf32>
    %cst_22 = arith.constant 1.000000e+00 : f32
    %40 = vector.broadcast %cst_22 : f32 to vector<8x32xf32>
    %41 = arith.addf %40, %39 : vector<8x32xf32>
    %42 = arith.divf %40, %41 : vector<8x32xf32>
    %43 = vector.extract_strided_slice %25 {offsets = [0, 64], sizes = [8, 32], strides = [1, 1]} : vector<8x128xf32> to vector<8x32xf32>
    %44 = math.tanh %43 : vector<8x32xf32>
    %45 = vector.extract_strided_slice %25 {offsets = [0, 96], sizes = [8, 32], strides = [1, 1]} : vector<8x128xf32> to vector<8x32xf32>
    %46 = arith.negf %45 : vector<8x32xf32>
    %47 = math.exp %46 : vector<8x32xf32>
    %cst_23 = arith.constant 1.000000e+00 : f32
    %48 = vector.broadcast %cst_23 : f32 to vector<8x32xf32>
    %49 = arith.addf %48, %47 : vector<8x32xf32>
    %50 = arith.divf %48, %49 : vector<8x32xf32>
    %51 = arith.mulf %42, %11 : vector<8x32xf32>
    %52 = arith.mulf %36, %44 : vector<8x32xf32>
    %53 = arith.addf %51, %52 : vector<8x32xf32>
    %54 = math.tanh %53 : vector<8x32xf32>
    %55 = arith.mulf %50, %54 : vector<8x32xf32>
    %56 = vector.extract_strided_slice %30 {offsets = [0, 0], sizes = [8, 32], strides = [1, 1]} : vector<8x128xf32> to vector<8x32xf32>
    %57 = arith.negf %56 : vector<8x32xf32>
    %58 = math.exp %57 : vector<8x32xf32>
    %cst_24 = arith.constant 1.000000e+00 : f32
    %59 = vector.broadcast %cst_24 : f32 to vector<8x32xf32>
    %60 = arith.addf %59, %58 : vector<8x32xf32>
    %61 = arith.divf %59, %60 : vector<8x32xf32>
    %62 = vector.extract_strided_slice %30 {offsets = [0, 32], sizes = [8, 32], strides = [1, 1]} : vector<8x128xf32> to vector<8x32xf32>
    %63 = arith.negf %62 : vector<8x32xf32>
    %64 = math.exp %63 : vector<8x32xf32>
    %cst_25 = arith.constant 1.000000e+00 : f32
    %65 = vector.broadcast %cst_25 : f32 to vector<8x32xf32>
    %66 = arith.addf %65, %64 : vector<8x32xf32>
    %67 = arith.divf %65, %66 : vector<8x32xf32>
    %68 = vector.extract_strided_slice %30 {offsets = [0, 64], sizes = [8, 32], strides = [1, 1]} : vector<8x128xf32> to vector<8x32xf32>
    %69 = math.tanh %68 : vector<8x32xf32>
    %70 = vector.extract_strided_slice %30 {offsets = [0, 96], sizes = [8, 32], strides = [1, 1]} : vector<8x128xf32> to vector<8x32xf32>
    %71 = arith.negf %70 : vector<8x32xf32>
    %72 = math.exp %71 : vector<8x32xf32>
    %cst_26 = arith.constant 1.000000e+00 : f32
    %73 = vector.broadcast %cst_26 : f32 to vector<8x32xf32>
    %74 = arith.addf %73, %72 : vector<8x32xf32>
    %75 = arith.divf %73, %74 : vector<8x32xf32>
    %76 = arith.mulf %67, %11 : vector<8x32xf32>
    %77 = arith.mulf %61, %69 : vector<8x32xf32>
    %78 = arith.addf %76, %77 : vector<8x32xf32>
    %79 = math.tanh %78 : vector<8x32xf32>
    %80 = arith.mulf %75, %79 : vector<8x32xf32>
    %81 = vector.broadcast %20 : vector<8x1xf32> to vector<8x32xf32>
    %82 = arith.mulf %80, %81 : vector<8x32xf32>
    %83 = vector.broadcast %20 : vector<8x1xf32> to vector<8x32xf32>
    %84 = arith.mulf %78, %83 : vector<8x32xf32>
    %85 = vector.broadcast %18 : vector<8x1xf32> to vector<8x32xf32>
    %86 = arith.mulf %55, %85 : vector<8x32xf32>
    %87 = arith.addf %11, %86 : vector<8x32xf32>
    %88 = arith.addf %11, %82 : vector<8x32xf32>
    %c1_i32 = arith.constant 1 : i32
    %c8_i32_27 = arith.constant 8 : i32
    %89 = arith.muli %c1_i32, %c8_i32_27 : i32
    %90 = tpu.assume_multiple %89, 8 : i32
    %c7_i32_28 = arith.constant 7 : i32
    %91 = arith.subi %c7_i32_28, %c1_i32 : i32
    %c8_i32_29 = arith.constant 8 : i32
    %92 = arith.muli %91, %c8_i32_29 : i32
    %93 = tpu.assume_multiple %92, 8 : i32
    %94 = arith.index_cast %90 : i32 to index
    %c0_30 = arith.constant 0 : index
    %95 = vector.load %arg1[%94, %c0_30] : memref<64x1xf32, #tpu.memory_space<vmem>>, vector<8x1xf32>
    %96 = arith.index_cast %93 : i32 to index
    %c0_31 = arith.constant 0 : index
    %97 = vector.load %arg1[%96, %c0_31] : memref<64x1xf32, #tpu.memory_space<vmem>>, vector<8x1xf32>
    %98 = arith.index_cast %90 : i32 to index
    %c0_32 = arith.constant 0 : index
    %99 = vector.load %arg8[%98, %c0_32] : memref<64x256xf32, #tpu.memory_space<vmem>>, vector<8x128xf32>
    %100 = arith.truncf %55 : vector<8x32xf32> to vector<8x32xbf16>
    %cst_33 = arith.constant dense<0.000000e+00> : vector<8x128xf32>
    %101 = tpu.matmul %100, %7, %cst_33 {dimension_numbers = #tpu.dot_dimension_numbers<[1], [0], [0], [1], [0, 0, 1, 1], [], []>} : vector<8x32xbf16>, vector<32x128xbf16>, vector<8x128xf32> -> vector<8x128xf32>
    %102 = arith.addf %99, %101 : vector<8x128xf32>
    %103 = arith.index_cast %93 : i32 to index
    %c128_34 = arith.constant 128 : index
    %104 = vector.load %arg8[%103, %c128_34] : memref<64x256xf32, #tpu.memory_space<vmem>>, vector<8x128xf32>
    %105 = arith.truncf %82 : vector<8x32xf32> to vector<8x32xbf16>
    %cst_35 = arith.constant dense<0.000000e+00> : vector<8x128xf32>
    %106 = tpu.matmul %105, %8, %cst_35 {dimension_numbers = #tpu.dot_dimension_numbers<[1], [0], [0], [1], [0, 0, 1, 1], [], []>} : vector<8x32xbf16>, vector<32x128xbf16>, vector<8x128xf32> -> vector<8x128xf32>
    %107 = arith.addf %104, %106 : vector<8x128xf32>
    %108 = vector.extract_strided_slice %102 {offsets = [0, 0], sizes = [8, 32], strides = [1, 1]} : vector<8x128xf32> to vector<8x32xf32>
    %109 = arith.negf %108 : vector<8x32xf32>
    %110 = math.exp %109 : vector<8x32xf32>
    %cst_36 = arith.constant 1.000000e+00 : f32
    %111 = vector.broadcast %cst_36 : f32 to vector<8x32xf32>
    %112 = arith.addf %111, %110 : vector<8x32xf32>
    %113 = arith.divf %111, %112 : vector<8x32xf32>
    %114 = vector.extract_strided_slice %102 {offsets = [0, 32], sizes = [8, 32], strides = [1, 1]} : vector<8x128xf32> to vector<8x32xf32>
    %115 = arith.negf %114 : vector<8x32xf32>
    %116 = math.exp %115 : vector<8x32xf32>
    %cst_37 = arith.constant 1.000000e+00 : f32
    %117 = vector.broadcast %cst_37 : f32 to vector<8x32xf32>
    %118 = arith.addf %117, %116 : vector<8x32xf32>
    %119 = arith.divf %117, %118 : vector<8x32xf32>
    %120 = vector.extract_strided_slice %102 {offsets = [0, 64], sizes = [8, 32], strides = [1, 1]} : vector<8x128xf32> to vector<8x32xf32>
    %121 = math.tanh %120 : vector<8x32xf32>
    %122 = vector.extract_strided_slice %102 {offsets = [0, 96], sizes = [8, 32], strides = [1, 1]} : vector<8x128xf32> to vector<8x32xf32>
    %123 = arith.negf %122 : vector<8x32xf32>
    %124 = math.exp %123 : vector<8x32xf32>
    %cst_38 = arith.constant 1.000000e+00 : f32
    %125 = vector.broadcast %cst_38 : f32 to vector<8x32xf32>
    %126 = arith.addf %125, %124 : vector<8x32xf32>
    %127 = arith.divf %125, %126 : vector<8x32xf32>
    %128 = arith.mulf %119, %53 : vector<8x32xf32>
    %129 = arith.mulf %113, %121 : vector<8x32xf32>
    %130 = arith.addf %128, %129 : vector<8x32xf32>
    %131 = math.tanh %130 : vector<8x32xf32>
    %132 = arith.mulf %127, %131 : vector<8x32xf32>
    %133 = vector.extract_strided_slice %107 {offsets = [0, 0], sizes = [8, 32], strides = [1, 1]} : vector<8x128xf32> to vector<8x32xf32>
    %134 = arith.negf %133 : vector<8x32xf32>
    %135 = math.exp %134 : vector<8x32xf32>
    %cst_39 = arith.constant 1.000000e+00 : f32
    %136 = vector.broadcast %cst_39 : f32 to vector<8x32xf32>
    %137 = arith.addf %136, %135 : vector<8x32xf32>
    %138 = arith.divf %136, %137 : vector<8x32xf32>
    %139 = vector.extract_strided_slice %107 {offsets = [0, 32], sizes = [8, 32], strides = [1, 1]} : vector<8x128xf32> to vector<8x32xf32>
    %140 = arith.negf %139 : vector<8x32xf32>
    %141 = math.exp %140 : vector<8x32xf32>
    %cst_40 = arith.constant 1.000000e+00 : f32
    %142 = vector.broadcast %cst_40 : f32 to vector<8x32xf32>
    %143 = arith.addf %142, %141 : vector<8x32xf32>
    %144 = arith.divf %142, %143 : vector<8x32xf32>
    %145 = vector.extract_strided_slice %107 {offsets = [0, 64], sizes = [8, 32], strides = [1, 1]} : vector<8x128xf32> to vector<8x32xf32>
    %146 = math.tanh %145 : vector<8x32xf32>
    %147 = vector.extract_strided_slice %107 {offsets = [0, 96], sizes = [8, 32], strides = [1, 1]} : vector<8x128xf32> to vector<8x32xf32>
    %148 = arith.negf %147 : vector<8x32xf32>
    %149 = math.exp %148 : vector<8x32xf32>
    %cst_41 = arith.constant 1.000000e+00 : f32
    %150 = vector.broadcast %cst_41 : f32 to vector<8x32xf32>
    %151 = arith.addf %150, %149 : vector<8x32xf32>
    %152 = arith.divf %150, %151 : vector<8x32xf32>
    %153 = arith.mulf %144, %84 : vector<8x32xf32>
    %154 = arith.mulf %138, %146 : vector<8x32xf32>
    %155 = arith.addf %153, %154 : vector<8x32xf32>
    %156 = math.tanh %155 : vector<8x32xf32>
    %157 = arith.mulf %152, %156 : vector<8x32xf32>
    %158 = vector.broadcast %97 : vector<8x1xf32> to vector<8x32xf32>
    %159 = arith.mulf %157, %158 : vector<8x32xf32>
    %160 = vector.broadcast %97 : vector<8x1xf32> to vector<8x32xf32>
    %161 = arith.mulf %155, %160 : vector<8x32xf32>
    %162 = vector.broadcast %95 : vector<8x1xf32> to vector<8x32xf32>
    %163 = arith.mulf %132, %162 : vector<8x32xf32>
    %164 = arith.addf %87, %163 : vector<8x32xf32>
    %165 = arith.addf %88, %159 : vector<8x32xf32>
    %c2_i32 = arith.constant 2 : i32
    %c8_i32_42 = arith.constant 8 : i32
    %166 = arith.muli %c2_i32, %c8_i32_42 : i32
    %167 = tpu.assume_multiple %166, 8 : i32
    %c7_i32_43 = arith.constant 7 : i32
    %168 = arith.subi %c7_i32_43, %c2_i32 : i32
    %c8_i32_44 = arith.constant 8 : i32
    %169 = arith.muli %168, %c8_i32_44 : i32
    %170 = tpu.assume_multiple %169, 8 : i32
    %171 = arith.index_cast %167 : i32 to index
    %c0_45 = arith.constant 0 : index
    %172 = vector.load %arg1[%171, %c0_45] : memref<64x1xf32, #tpu.memory_space<vmem>>, vector<8x1xf32>
    %173 = arith.index_cast %170 : i32 to index
    %c0_46 = arith.constant 0 : index
    %174 = vector.load %arg1[%173, %c0_46] : memref<64x1xf32, #tpu.memory_space<vmem>>, vector<8x1xf32>
    %175 = arith.index_cast %167 : i32 to index
    %c0_47 = arith.constant 0 : index
    %176 = vector.load %arg8[%175, %c0_47] : memref<64x256xf32, #tpu.memory_space<vmem>>, vector<8x128xf32>
    %177 = arith.truncf %132 : vector<8x32xf32> to vector<8x32xbf16>
    %cst_48 = arith.constant dense<0.000000e+00> : vector<8x128xf32>
    %178 = tpu.matmul %177, %7, %cst_48 {dimension_numbers = #tpu.dot_dimension_numbers<[1], [0], [0], [1], [0, 0, 1, 1], [], []>} : vector<8x32xbf16>, vector<32x128xbf16>, vector<8x128xf32> -> vector<8x128xf32>
    %179 = arith.addf %176, %178 : vector<8x128xf32>
    %180 = arith.index_cast %170 : i32 to index
    %c128_49 = arith.constant 128 : index
    %181 = vector.load %arg8[%180, %c128_49] : memref<64x256xf32, #tpu.memory_space<vmem>>, vector<8x128xf32>
    %182 = arith.truncf %159 : vector<8x32xf32> to vector<8x32xbf16>
    %cst_50 = arith.constant dense<0.000000e+00> : vector<8x128xf32>
    %183 = tpu.matmul %182, %8, %cst_50 {dimension_numbers = #tpu.dot_dimension_numbers<[1], [0], [0], [1], [0, 0, 1, 1], [], []>} : vector<8x32xbf16>, vector<32x128xbf16>, vector<8x128xf32> -> vector<8x128xf32>
    %184 = arith.addf %181, %183 : vector<8x128xf32>
    %185 = vector.extract_strided_slice %179 {offsets = [0, 0], sizes = [8, 32], strides = [1, 1]} : vector<8x128xf32> to vector<8x32xf32>
    %186 = arith.negf %185 : vector<8x32xf32>
    %187 = math.exp %186 : vector<8x32xf32>
    %cst_51 = arith.constant 1.000000e+00 : f32
    %188 = vector.broadcast %cst_51 : f32 to vector<8x32xf32>
    %189 = arith.addf %188, %187 : vector<8x32xf32>
    %190 = arith.divf %188, %189 : vector<8x32xf32>
    %191 = vector.extract_strided_slice %179 {offsets = [0, 32], sizes = [8, 32], strides = [1, 1]} : vector<8x128xf32> to vector<8x32xf32>
    %192 = arith.negf %191 : vector<8x32xf32>
    %193 = math.exp %192 : vector<8x32xf32>
    %cst_52 = arith.constant 1.000000e+00 : f32
    %194 = vector.broadcast %cst_52 : f32 to vector<8x32xf32>
    %195 = arith.addf %194, %193 : vector<8x32xf32>
    %196 = arith.divf %194, %195 : vector<8x32xf32>
    %197 = vector.extract_strided_slice %179 {offsets = [0, 64], sizes = [8, 32], strides = [1, 1]} : vector<8x128xf32> to vector<8x32xf32>
    %198 = math.tanh %197 : vector<8x32xf32>
    %199 = vector.extract_strided_slice %179 {offsets = [0, 96], sizes = [8, 32], strides = [1, 1]} : vector<8x128xf32> to vector<8x32xf32>
    %200 = arith.negf %199 : vector<8x32xf32>
    %201 = math.exp %200 : vector<8x32xf32>
    %cst_53 = arith.constant 1.000000e+00 : f32
    %202 = vector.broadcast %cst_53 : f32 to vector<8x32xf32>
    %203 = arith.addf %202, %201 : vector<8x32xf32>
    %204 = arith.divf %202, %203 : vector<8x32xf32>
    %205 = arith.mulf %196, %130 : vector<8x32xf32>
    %206 = arith.mulf %190, %198 : vector<8x32xf32>
    %207 = arith.addf %205, %206 : vector<8x32xf32>
    %208 = math.tanh %207 : vector<8x32xf32>
    %209 = arith.mulf %204, %208 : vector<8x32xf32>
    %210 = vector.extract_strided_slice %184 {offsets = [0, 0], sizes = [8, 32], strides = [1, 1]} : vector<8x128xf32> to vector<8x32xf32>
    %211 = arith.negf %210 : vector<8x32xf32>
    %212 = math.exp %211 : vector<8x32xf32>
    %cst_54 = arith.constant 1.000000e+00 : f32
    %213 = vector.broadcast %cst_54 : f32 to vector<8x32xf32>
    %214 = arith.addf %213, %212 : vector<8x32xf32>
    %215 = arith.divf %213, %214 : vector<8x32xf32>
    %216 = vector.extract_strided_slice %184 {offsets = [0, 32], sizes = [8, 32], strides = [1, 1]} : vector<8x128xf32> to vector<8x32xf32>
    %217 = arith.negf %216 : vector<8x32xf32>
    %218 = math.exp %217 : vector<8x32xf32>
    %cst_55 = arith.constant 1.000000e+00 : f32
    %219 = vector.broadcast %cst_55 : f32 to vector<8x32xf32>
    %220 = arith.addf %219, %218 : vector<8x32xf32>
    %221 = arith.divf %219, %220 : vector<8x32xf32>
    %222 = vector.extract_strided_slice %184 {offsets = [0, 64], sizes = [8, 32], strides = [1, 1]} : vector<8x128xf32> to vector<8x32xf32>
    %223 = math.tanh %222 : vector<8x32xf32>
    %224 = vector.extract_strided_slice %184 {offsets = [0, 96], sizes = [8, 32], strides = [1, 1]} : vector<8x128xf32> to vector<8x32xf32>
    %225 = arith.negf %224 : vector<8x32xf32>
    %226 = math.exp %225 : vector<8x32xf32>
    %cst_56 = arith.constant 1.000000e+00 : f32
    %227 = vector.broadcast %cst_56 : f32 to vector<8x32xf32>
    %228 = arith.addf %227, %226 : vector<8x32xf32>
    %229 = arith.divf %227, %228 : vector<8x32xf32>
    %230 = arith.mulf %221, %161 : vector<8x32xf32>
    %231 = arith.mulf %215, %223 : vector<8x32xf32>
    %232 = arith.addf %230, %231 : vector<8x32xf32>
    %233 = math.tanh %232 : vector<8x32xf32>
    %234 = arith.mulf %229, %233 : vector<8x32xf32>
    %235 = vector.broadcast %174 : vector<8x1xf32> to vector<8x32xf32>
    %236 = arith.mulf %234, %235 : vector<8x32xf32>
    %237 = vector.broadcast %174 : vector<8x1xf32> to vector<8x32xf32>
    %238 = arith.mulf %232, %237 : vector<8x32xf32>
    %239 = vector.broadcast %172 : vector<8x1xf32> to vector<8x32xf32>
    %240 = arith.mulf %209, %239 : vector<8x32xf32>
    %241 = arith.addf %164, %240 : vector<8x32xf32>
    %242 = arith.addf %165, %236 : vector<8x32xf32>
    %c3_i32 = arith.constant 3 : i32
    %c8_i32_57 = arith.constant 8 : i32
    %243 = arith.muli %c3_i32, %c8_i32_57 : i32
    %244 = tpu.assume_multiple %243, 8 : i32
    %c7_i32_58 = arith.constant 7 : i32
    %245 = arith.subi %c7_i32_58, %c3_i32 : i32
    %c8_i32_59 = arith.constant 8 : i32
    %246 = arith.muli %245, %c8_i32_59 : i32
    %247 = tpu.assume_multiple %246, 8 : i32
    %248 = arith.index_cast %244 : i32 to index
    %c0_60 = arith.constant 0 : index
    %249 = vector.load %arg1[%248, %c0_60] : memref<64x1xf32, #tpu.memory_space<vmem>>, vector<8x1xf32>
    %250 = arith.index_cast %247 : i32 to index
    %c0_61 = arith.constant 0 : index
    %251 = vector.load %arg1[%250, %c0_61] : memref<64x1xf32, #tpu.memory_space<vmem>>, vector<8x1xf32>
    %252 = arith.index_cast %244 : i32 to index
    %c0_62 = arith.constant 0 : index
    %253 = vector.load %arg8[%252, %c0_62] : memref<64x256xf32, #tpu.memory_space<vmem>>, vector<8x128xf32>
    %254 = arith.truncf %209 : vector<8x32xf32> to vector<8x32xbf16>
    %cst_63 = arith.constant dense<0.000000e+00> : vector<8x128xf32>
    %255 = tpu.matmul %254, %7, %cst_63 {dimension_numbers = #tpu.dot_dimension_numbers<[1], [0], [0], [1], [0, 0, 1, 1], [], []>} : vector<8x32xbf16>, vector<32x128xbf16>, vector<8x128xf32> -> vector<8x128xf32>
    %256 = arith.addf %253, %255 : vector<8x128xf32>
    %257 = arith.index_cast %247 : i32 to index
    %c128_64 = arith.constant 128 : index
    %258 = vector.load %arg8[%257, %c128_64] : memref<64x256xf32, #tpu.memory_space<vmem>>, vector<8x128xf32>
    %259 = arith.truncf %236 : vector<8x32xf32> to vector<8x32xbf16>
    %cst_65 = arith.constant dense<0.000000e+00> : vector<8x128xf32>
    %260 = tpu.matmul %259, %8, %cst_65 {dimension_numbers = #tpu.dot_dimension_numbers<[1], [0], [0], [1], [0, 0, 1, 1], [], []>} : vector<8x32xbf16>, vector<32x128xbf16>, vector<8x128xf32> -> vector<8x128xf32>
    %261 = arith.addf %258, %260 : vector<8x128xf32>
    %262 = vector.extract_strided_slice %256 {offsets = [0, 0], sizes = [8, 32], strides = [1, 1]} : vector<8x128xf32> to vector<8x32xf32>
    %263 = arith.negf %262 : vector<8x32xf32>
    %264 = math.exp %263 : vector<8x32xf32>
    %cst_66 = arith.constant 1.000000e+00 : f32
    %265 = vector.broadcast %cst_66 : f32 to vector<8x32xf32>
    %266 = arith.addf %265, %264 : vector<8x32xf32>
    %267 = arith.divf %265, %266 : vector<8x32xf32>
    %268 = vector.extract_strided_slice %256 {offsets = [0, 32], sizes = [8, 32], strides = [1, 1]} : vector<8x128xf32> to vector<8x32xf32>
    %269 = arith.negf %268 : vector<8x32xf32>
    %270 = math.exp %269 : vector<8x32xf32>
    %cst_67 = arith.constant 1.000000e+00 : f32
    %271 = vector.broadcast %cst_67 : f32 to vector<8x32xf32>
    %272 = arith.addf %271, %270 : vector<8x32xf32>
    %273 = arith.divf %271, %272 : vector<8x32xf32>
    %274 = vector.extract_strided_slice %256 {offsets = [0, 64], sizes = [8, 32], strides = [1, 1]} : vector<8x128xf32> to vector<8x32xf32>
    %275 = math.tanh %274 : vector<8x32xf32>
    %276 = vector.extract_strided_slice %256 {offsets = [0, 96], sizes = [8, 32], strides = [1, 1]} : vector<8x128xf32> to vector<8x32xf32>
    %277 = arith.negf %276 : vector<8x32xf32>
    %278 = math.exp %277 : vector<8x32xf32>
    %cst_68 = arith.constant 1.000000e+00 : f32
    %279 = vector.broadcast %cst_68 : f32 to vector<8x32xf32>
    %280 = arith.addf %279, %278 : vector<8x32xf32>
    %281 = arith.divf %279, %280 : vector<8x32xf32>
    %282 = arith.mulf %273, %207 : vector<8x32xf32>
    %283 = arith.mulf %267, %275 : vector<8x32xf32>
    %284 = arith.addf %282, %283 : vector<8x32xf32>
    %285 = math.tanh %284 : vector<8x32xf32>
    %286 = arith.mulf %281, %285 : vector<8x32xf32>
    %287 = vector.extract_strided_slice %261 {offsets = [0, 0], sizes = [8, 32], strides = [1, 1]} : vector<8x128xf32> to vector<8x32xf32>
    %288 = arith.negf %287 : vector<8x32xf32>
    %289 = math.exp %288 : vector<8x32xf32>
    %cst_69 = arith.constant 1.000000e+00 : f32
    %290 = vector.broadcast %cst_69 : f32 to vector<8x32xf32>
    %291 = arith.addf %290, %289 : vector<8x32xf32>
    %292 = arith.divf %290, %291 : vector<8x32xf32>
    %293 = vector.extract_strided_slice %261 {offsets = [0, 32], sizes = [8, 32], strides = [1, 1]} : vector<8x128xf32> to vector<8x32xf32>
    %294 = arith.negf %293 : vector<8x32xf32>
    %295 = math.exp %294 : vector<8x32xf32>
    %cst_70 = arith.constant 1.000000e+00 : f32
    %296 = vector.broadcast %cst_70 : f32 to vector<8x32xf32>
    %297 = arith.addf %296, %295 : vector<8x32xf32>
    %298 = arith.divf %296, %297 : vector<8x32xf32>
    %299 = vector.extract_strided_slice %261 {offsets = [0, 64], sizes = [8, 32], strides = [1, 1]} : vector<8x128xf32> to vector<8x32xf32>
    %300 = math.tanh %299 : vector<8x32xf32>
    %301 = vector.extract_strided_slice %261 {offsets = [0, 96], sizes = [8, 32], strides = [1, 1]} : vector<8x128xf32> to vector<8x32xf32>
    %302 = arith.negf %301 : vector<8x32xf32>
    %303 = math.exp %302 : vector<8x32xf32>
    %cst_71 = arith.constant 1.000000e+00 : f32
    %304 = vector.broadcast %cst_71 : f32 to vector<8x32xf32>
    %305 = arith.addf %304, %303 : vector<8x32xf32>
    %306 = arith.divf %304, %305 : vector<8x32xf32>
    %307 = arith.mulf %298, %238 : vector<8x32xf32>
    %308 = arith.mulf %292, %300 : vector<8x32xf32>
    %309 = arith.addf %307, %308 : vector<8x32xf32>
    %310 = math.tanh %309 : vector<8x32xf32>
    %311 = arith.mulf %306, %310 : vector<8x32xf32>
    %312 = vector.broadcast %251 : vector<8x1xf32> to vector<8x32xf32>
    %313 = arith.mulf %311, %312 : vector<8x32xf32>
    %314 = vector.broadcast %251 : vector<8x1xf32> to vector<8x32xf32>
    %315 = arith.mulf %309, %314 : vector<8x32xf32>
    %316 = vector.broadcast %249 : vector<8x1xf32> to vector<8x32xf32>
    %317 = arith.mulf %286, %316 : vector<8x32xf32>
    %318 = arith.addf %241, %317 : vector<8x32xf32>
    %319 = arith.addf %242, %313 : vector<8x32xf32>
    %c4_i32 = arith.constant 4 : i32
    %c8_i32_72 = arith.constant 8 : i32
    %320 = arith.muli %c4_i32, %c8_i32_72 : i32
    %321 = tpu.assume_multiple %320, 8 : i32
    %c7_i32_73 = arith.constant 7 : i32
    %322 = arith.subi %c7_i32_73, %c4_i32 : i32
    %c8_i32_74 = arith.constant 8 : i32
    %323 = arith.muli %322, %c8_i32_74 : i32
    %324 = tpu.assume_multiple %323, 8 : i32
    %325 = arith.index_cast %321 : i32 to index
    %c0_75 = arith.constant 0 : index
    %326 = vector.load %arg1[%325, %c0_75] : memref<64x1xf32, #tpu.memory_space<vmem>>, vector<8x1xf32>
    %327 = arith.index_cast %324 : i32 to index
    %c0_76 = arith.constant 0 : index
    %328 = vector.load %arg1[%327, %c0_76] : memref<64x1xf32, #tpu.memory_space<vmem>>, vector<8x1xf32>
    %329 = arith.index_cast %321 : i32 to index
    %c0_77 = arith.constant 0 : index
    %330 = vector.load %arg8[%329, %c0_77] : memref<64x256xf32, #tpu.memory_space<vmem>>, vector<8x128xf32>
    %331 = arith.truncf %286 : vector<8x32xf32> to vector<8x32xbf16>
    %cst_78 = arith.constant dense<0.000000e+00> : vector<8x128xf32>
    %332 = tpu.matmul %331, %7, %cst_78 {dimension_numbers = #tpu.dot_dimension_numbers<[1], [0], [0], [1], [0, 0, 1, 1], [], []>} : vector<8x32xbf16>, vector<32x128xbf16>, vector<8x128xf32> -> vector<8x128xf32>
    %333 = arith.addf %330, %332 : vector<8x128xf32>
    %334 = arith.index_cast %324 : i32 to index
    %c128_79 = arith.constant 128 : index
    %335 = vector.load %arg8[%334, %c128_79] : memref<64x256xf32, #tpu.memory_space<vmem>>, vector<8x128xf32>
    %336 = arith.truncf %313 : vector<8x32xf32> to vector<8x32xbf16>
    %cst_80 = arith.constant dense<0.000000e+00> : vector<8x128xf32>
    %337 = tpu.matmul %336, %8, %cst_80 {dimension_numbers = #tpu.dot_dimension_numbers<[1], [0], [0], [1], [0, 0, 1, 1], [], []>} : vector<8x32xbf16>, vector<32x128xbf16>, vector<8x128xf32> -> vector<8x128xf32>
    %338 = arith.addf %335, %337 : vector<8x128xf32>
    %339 = vector.extract_strided_slice %333 {offsets = [0, 0], sizes = [8, 32], strides = [1, 1]} : vector<8x128xf32> to vector<8x32xf32>
    %340 = arith.negf %339 : vector<8x32xf32>
    %341 = math.exp %340 : vector<8x32xf32>
    %cst_81 = arith.constant 1.000000e+00 : f32
    %342 = vector.broadcast %cst_81 : f32 to vector<8x32xf32>
    %343 = arith.addf %342, %341 : vector<8x32xf32>
    %344 = arith.divf %342, %343 : vector<8x32xf32>
    %345 = vector.extract_strided_slice %333 {offsets = [0, 32], sizes = [8, 32], strides = [1, 1]} : vector<8x128xf32> to vector<8x32xf32>
    %346 = arith.negf %345 : vector<8x32xf32>
    %347 = math.exp %346 : vector<8x32xf32>
    %cst_82 = arith.constant 1.000000e+00 : f32
    %348 = vector.broadcast %cst_82 : f32 to vector<8x32xf32>
    %349 = arith.addf %348, %347 : vector<8x32xf32>
    %350 = arith.divf %348, %349 : vector<8x32xf32>
    %351 = vector.extract_strided_slice %333 {offsets = [0, 64], sizes = [8, 32], strides = [1, 1]} : vector<8x128xf32> to vector<8x32xf32>
    %352 = math.tanh %351 : vector<8x32xf32>
    %353 = vector.extract_strided_slice %333 {offsets = [0, 96], sizes = [8, 32], strides = [1, 1]} : vector<8x128xf32> to vector<8x32xf32>
    %354 = arith.negf %353 : vector<8x32xf32>
    %355 = math.exp %354 : vector<8x32xf32>
    %cst_83 = arith.constant 1.000000e+00 : f32
    %356 = vector.broadcast %cst_83 : f32 to vector<8x32xf32>
    %357 = arith.addf %356, %355 : vector<8x32xf32>
    %358 = arith.divf %356, %357 : vector<8x32xf32>
    %359 = arith.mulf %350, %284 : vector<8x32xf32>
    %360 = arith.mulf %344, %352 : vector<8x32xf32>
    %361 = arith.addf %359, %360 : vector<8x32xf32>
    %362 = math.tanh %361 : vector<8x32xf32>
    %363 = arith.mulf %358, %362 : vector<8x32xf32>
    %364 = vector.extract_strided_slice %338 {offsets = [0, 0], sizes = [8, 32], strides = [1, 1]} : vector<8x128xf32> to vector<8x32xf32>
    %365 = arith.negf %364 : vector<8x32xf32>
    %366 = math.exp %365 : vector<8x32xf32>
    %cst_84 = arith.constant 1.000000e+00 : f32
    %367 = vector.broadcast %cst_84 : f32 to vector<8x32xf32>
    %368 = arith.addf %367, %366 : vector<8x32xf32>
    %369 = arith.divf %367, %368 : vector<8x32xf32>
    %370 = vector.extract_strided_slice %338 {offsets = [0, 32], sizes = [8, 32], strides = [1, 1]} : vector<8x128xf32> to vector<8x32xf32>
    %371 = arith.negf %370 : vector<8x32xf32>
    %372 = math.exp %371 : vector<8x32xf32>
    %cst_85 = arith.constant 1.000000e+00 : f32
    %373 = vector.broadcast %cst_85 : f32 to vector<8x32xf32>
    %374 = arith.addf %373, %372 : vector<8x32xf32>
    %375 = arith.divf %373, %374 : vector<8x32xf32>
    %376 = vector.extract_strided_slice %338 {offsets = [0, 64], sizes = [8, 32], strides = [1, 1]} : vector<8x128xf32> to vector<8x32xf32>
    %377 = math.tanh %376 : vector<8x32xf32>
    %378 = vector.extract_strided_slice %338 {offsets = [0, 96], sizes = [8, 32], strides = [1, 1]} : vector<8x128xf32> to vector<8x32xf32>
    %379 = arith.negf %378 : vector<8x32xf32>
    %380 = math.exp %379 : vector<8x32xf32>
    %cst_86 = arith.constant 1.000000e+00 : f32
    %381 = vector.broadcast %cst_86 : f32 to vector<8x32xf32>
    %382 = arith.addf %381, %380 : vector<8x32xf32>
    %383 = arith.divf %381, %382 : vector<8x32xf32>
    %384 = arith.mulf %375, %315 : vector<8x32xf32>
    %385 = arith.mulf %369, %377 : vector<8x32xf32>
    %386 = arith.addf %384, %385 : vector<8x32xf32>
    %387 = math.tanh %386 : vector<8x32xf32>
    %388 = arith.mulf %383, %387 : vector<8x32xf32>
    %389 = vector.broadcast %328 : vector<8x1xf32> to vector<8x32xf32>
    %390 = arith.mulf %388, %389 : vector<8x32xf32>
    %391 = vector.broadcast %328 : vector<8x1xf32> to vector<8x32xf32>
    %392 = arith.mulf %386, %391 : vector<8x32xf32>
    %393 = vector.broadcast %326 : vector<8x1xf32> to vector<8x32xf32>
    %394 = arith.mulf %363, %393 : vector<8x32xf32>
    %395 = arith.addf %318, %394 : vector<8x32xf32>
    %396 = arith.addf %319, %390 : vector<8x32xf32>
    %c5_i32 = arith.constant 5 : i32
    %c8_i32_87 = arith.constant 8 : i32
    %397 = arith.muli %c5_i32, %c8_i32_87 : i32
    %398 = tpu.assume_multiple %397, 8 : i32
    %c7_i32_88 = arith.constant 7 : i32
    %399 = arith.subi %c7_i32_88, %c5_i32 : i32
    %c8_i32_89 = arith.constant 8 : i32
    %400 = arith.muli %399, %c8_i32_89 : i32
    %401 = tpu.assume_multiple %400, 8 : i32
    %402 = arith.index_cast %398 : i32 to index
    %c0_90 = arith.constant 0 : index
    %403 = vector.load %arg1[%402, %c0_90] : memref<64x1xf32, #tpu.memory_space<vmem>>, vector<8x1xf32>
    %404 = arith.index_cast %401 : i32 to index
    %c0_91 = arith.constant 0 : index
    %405 = vector.load %arg1[%404, %c0_91] : memref<64x1xf32, #tpu.memory_space<vmem>>, vector<8x1xf32>
    %406 = arith.index_cast %398 : i32 to index
    %c0_92 = arith.constant 0 : index
    %407 = vector.load %arg8[%406, %c0_92] : memref<64x256xf32, #tpu.memory_space<vmem>>, vector<8x128xf32>
    %408 = arith.truncf %363 : vector<8x32xf32> to vector<8x32xbf16>
    %cst_93 = arith.constant dense<0.000000e+00> : vector<8x128xf32>
    %409 = tpu.matmul %408, %7, %cst_93 {dimension_numbers = #tpu.dot_dimension_numbers<[1], [0], [0], [1], [0, 0, 1, 1], [], []>} : vector<8x32xbf16>, vector<32x128xbf16>, vector<8x128xf32> -> vector<8x128xf32>
    %410 = arith.addf %407, %409 : vector<8x128xf32>
    %411 = arith.index_cast %401 : i32 to index
    %c128_94 = arith.constant 128 : index
    %412 = vector.load %arg8[%411, %c128_94] : memref<64x256xf32, #tpu.memory_space<vmem>>, vector<8x128xf32>
    %413 = arith.truncf %390 : vector<8x32xf32> to vector<8x32xbf16>
    %cst_95 = arith.constant dense<0.000000e+00> : vector<8x128xf32>
    %414 = tpu.matmul %413, %8, %cst_95 {dimension_numbers = #tpu.dot_dimension_numbers<[1], [0], [0], [1], [0, 0, 1, 1], [], []>} : vector<8x32xbf16>, vector<32x128xbf16>, vector<8x128xf32> -> vector<8x128xf32>
    %415 = arith.addf %412, %414 : vector<8x128xf32>
    %416 = vector.extract_strided_slice %410 {offsets = [0, 0], sizes = [8, 32], strides = [1, 1]} : vector<8x128xf32> to vector<8x32xf32>
    %417 = arith.negf %416 : vector<8x32xf32>
    %418 = math.exp %417 : vector<8x32xf32>
    %cst_96 = arith.constant 1.000000e+00 : f32
    %419 = vector.broadcast %cst_96 : f32 to vector<8x32xf32>
    %420 = arith.addf %419, %418 : vector<8x32xf32>
    %421 = arith.divf %419, %420 : vector<8x32xf32>
    %422 = vector.extract_strided_slice %410 {offsets = [0, 32], sizes = [8, 32], strides = [1, 1]} : vector<8x128xf32> to vector<8x32xf32>
    %423 = arith.negf %422 : vector<8x32xf32>
    %424 = math.exp %423 : vector<8x32xf32>
    %cst_97 = arith.constant 1.000000e+00 : f32
    %425 = vector.broadcast %cst_97 : f32 to vector<8x32xf32>
    %426 = arith.addf %425, %424 : vector<8x32xf32>
    %427 = arith.divf %425, %426 : vector<8x32xf32>
    %428 = vector.extract_strided_slice %410 {offsets = [0, 64], sizes = [8, 32], strides = [1, 1]} : vector<8x128xf32> to vector<8x32xf32>
    %429 = math.tanh %428 : vector<8x32xf32>
    %430 = vector.extract_strided_slice %410 {offsets = [0, 96], sizes = [8, 32], strides = [1, 1]} : vector<8x128xf32> to vector<8x32xf32>
    %431 = arith.negf %430 : vector<8x32xf32>
    %432 = math.exp %431 : vector<8x32xf32>
    %cst_98 = arith.constant 1.000000e+00 : f32
    %433 = vector.broadcast %cst_98 : f32 to vector<8x32xf32>
    %434 = arith.addf %433, %432 : vector<8x32xf32>
    %435 = arith.divf %433, %434 : vector<8x32xf32>
    %436 = arith.mulf %427, %361 : vector<8x32xf32>
    %437 = arith.mulf %421, %429 : vector<8x32xf32>
    %438 = arith.addf %436, %437 : vector<8x32xf32>
    %439 = math.tanh %438 : vector<8x32xf32>
    %440 = arith.mulf %435, %439 : vector<8x32xf32>
    %441 = vector.extract_strided_slice %415 {offsets = [0, 0], sizes = [8, 32], strides = [1, 1]} : vector<8x128xf32> to vector<8x32xf32>
    %442 = arith.negf %441 : vector<8x32xf32>
    %443 = math.exp %442 : vector<8x32xf32>
    %cst_99 = arith.constant 1.000000e+00 : f32
    %444 = vector.broadcast %cst_99 : f32 to vector<8x32xf32>
    %445 = arith.addf %444, %443 : vector<8x32xf32>
    %446 = arith.divf %444, %445 : vector<8x32xf32>
    %447 = vector.extract_strided_slice %415 {offsets = [0, 32], sizes = [8, 32], strides = [1, 1]} : vector<8x128xf32> to vector<8x32xf32>
    %448 = arith.negf %447 : vector<8x32xf32>
    %449 = math.exp %448 : vector<8x32xf32>
    %cst_100 = arith.constant 1.000000e+00 : f32
    %450 = vector.broadcast %cst_100 : f32 to vector<8x32xf32>
    %451 = arith.addf %450, %449 : vector<8x32xf32>
    %452 = arith.divf %450, %451 : vector<8x32xf32>
    %453 = vector.extract_strided_slice %415 {offsets = [0, 64], sizes = [8, 32], strides = [1, 1]} : vector<8x128xf32> to vector<8x32xf32>
    %454 = math.tanh %453 : vector<8x32xf32>
    %455 = vector.extract_strided_slice %415 {offsets = [0, 96], sizes = [8, 32], strides = [1, 1]} : vector<8x128xf32> to vector<8x32xf32>
    %456 = arith.negf %455 : vector<8x32xf32>
    %457 = math.exp %456 : vector<8x32xf32>
    %cst_101 = arith.constant 1.000000e+00 : f32
    %458 = vector.broadcast %cst_101 : f32 to vector<8x32xf32>
    %459 = arith.addf %458, %457 : vector<8x32xf32>
    %460 = arith.divf %458, %459 : vector<8x32xf32>
    %461 = arith.mulf %452, %392 : vector<8x32xf32>
    %462 = arith.mulf %446, %454 : vector<8x32xf32>
    %463 = arith.addf %461, %462 : vector<8x32xf32>
    %464 = math.tanh %463 : vector<8x32xf32>
    %465 = arith.mulf %460, %464 : vector<8x32xf32>
    %466 = vector.broadcast %405 : vector<8x1xf32> to vector<8x32xf32>
    %467 = arith.mulf %465, %466 : vector<8x32xf32>
    %468 = vector.broadcast %405 : vector<8x1xf32> to vector<8x32xf32>
    %469 = arith.mulf %463, %468 : vector<8x32xf32>
    %470 = vector.broadcast %403 : vector<8x1xf32> to vector<8x32xf32>
    %471 = arith.mulf %440, %470 : vector<8x32xf32>
    %472 = arith.addf %395, %471 : vector<8x32xf32>
    %473 = arith.addf %396, %467 : vector<8x32xf32>
    %c6_i32 = arith.constant 6 : i32
    %c8_i32_102 = arith.constant 8 : i32
    %474 = arith.muli %c6_i32, %c8_i32_102 : i32
    %475 = tpu.assume_multiple %474, 8 : i32
    %c7_i32_103 = arith.constant 7 : i32
    %476 = arith.subi %c7_i32_103, %c6_i32 : i32
    %c8_i32_104 = arith.constant 8 : i32
    %477 = arith.muli %476, %c8_i32_104 : i32
    %478 = tpu.assume_multiple %477, 8 : i32
    %479 = arith.index_cast %475 : i32 to index
    %c0_105 = arith.constant 0 : index
    %480 = vector.load %arg1[%479, %c0_105] : memref<64x1xf32, #tpu.memory_space<vmem>>, vector<8x1xf32>
    %481 = arith.index_cast %478 : i32 to index
    %c0_106 = arith.constant 0 : index
    %482 = vector.load %arg1[%481, %c0_106] : memref<64x1xf32, #tpu.memory_space<vmem>>, vector<8x1xf32>
    %483 = arith.index_cast %475 : i32 to index
    %c0_107 = arith.constant 0 : index
    %484 = vector.load %arg8[%483, %c0_107] : memref<64x256xf32, #tpu.memory_space<vmem>>, vector<8x128xf32>
    %485 = arith.truncf %440 : vector<8x32xf32> to vector<8x32xbf16>
    %cst_108 = arith.constant dense<0.000000e+00> : vector<8x128xf32>
    %486 = tpu.matmul %485, %7, %cst_108 {dimension_numbers = #tpu.dot_dimension_numbers<[1], [0], [0], [1], [0, 0, 1, 1], [], []>} : vector<8x32xbf16>, vector<32x128xbf16>, vector<8x128xf32> -> vector<8x128xf32>
    %487 = arith.addf %484, %486 : vector<8x128xf32>
    %488 = arith.index_cast %478 : i32 to index
    %c128_109 = arith.constant 128 : index
    %489 = vector.load %arg8[%488, %c128_109] : memref<64x256xf32, #tpu.memory_space<vmem>>, vector<8x128xf32>
    %490 = arith.truncf %467 : vector<8x32xf32> to vector<8x32xbf16>
    %cst_110 = arith.constant dense<0.000000e+00> : vector<8x128xf32>
    %491 = tpu.matmul %490, %8, %cst_110 {dimension_numbers = #tpu.dot_dimension_numbers<[1], [0], [0], [1], [0, 0, 1, 1], [], []>} : vector<8x32xbf16>, vector<32x128xbf16>, vector<8x128xf32> -> vector<8x128xf32>
    %492 = arith.addf %489, %491 : vector<8x128xf32>
    %493 = vector.extract_strided_slice %487 {offsets = [0, 0], sizes = [8, 32], strides = [1, 1]} : vector<8x128xf32> to vector<8x32xf32>
    %494 = arith.negf %493 : vector<8x32xf32>
    %495 = math.exp %494 : vector<8x32xf32>
    %cst_111 = arith.constant 1.000000e+00 : f32
    %496 = vector.broadcast %cst_111 : f32 to vector<8x32xf32>
    %497 = arith.addf %496, %495 : vector<8x32xf32>
    %498 = arith.divf %496, %497 : vector<8x32xf32>
    %499 = vector.extract_strided_slice %487 {offsets = [0, 32], sizes = [8, 32], strides = [1, 1]} : vector<8x128xf32> to vector<8x32xf32>
    %500 = arith.negf %499 : vector<8x32xf32>
    %501 = math.exp %500 : vector<8x32xf32>
    %cst_112 = arith.constant 1.000000e+00 : f32
    %502 = vector.broadcast %cst_112 : f32 to vector<8x32xf32>
    %503 = arith.addf %502, %501 : vector<8x32xf32>
    %504 = arith.divf %502, %503 : vector<8x32xf32>
    %505 = vector.extract_strided_slice %487 {offsets = [0, 64], sizes = [8, 32], strides = [1, 1]} : vector<8x128xf32> to vector<8x32xf32>
    %506 = math.tanh %505 : vector<8x32xf32>
    %507 = vector.extract_strided_slice %487 {offsets = [0, 96], sizes = [8, 32], strides = [1, 1]} : vector<8x128xf32> to vector<8x32xf32>
    %508 = arith.negf %507 : vector<8x32xf32>
    %509 = math.exp %508 : vector<8x32xf32>
    %cst_113 = arith.constant 1.000000e+00 : f32
    %510 = vector.broadcast %cst_113 : f32 to vector<8x32xf32>
    %511 = arith.addf %510, %509 : vector<8x32xf32>
    %512 = arith.divf %510, %511 : vector<8x32xf32>
    %513 = arith.mulf %504, %438 : vector<8x32xf32>
    %514 = arith.mulf %498, %506 : vector<8x32xf32>
    %515 = arith.addf %513, %514 : vector<8x32xf32>
    %516 = math.tanh %515 : vector<8x32xf32>
    %517 = arith.mulf %512, %516 : vector<8x32xf32>
    %518 = vector.extract_strided_slice %492 {offsets = [0, 0], sizes = [8, 32], strides = [1, 1]} : vector<8x128xf32> to vector<8x32xf32>
    %519 = arith.negf %518 : vector<8x32xf32>
    %520 = math.exp %519 : vector<8x32xf32>
    %cst_114 = arith.constant 1.000000e+00 : f32
    %521 = vector.broadcast %cst_114 : f32 to vector<8x32xf32>
    %522 = arith.addf %521, %520 : vector<8x32xf32>
    %523 = arith.divf %521, %522 : vector<8x32xf32>
    %524 = vector.extract_strided_slice %492 {offsets = [0, 32], sizes = [8, 32], strides = [1, 1]} : vector<8x128xf32> to vector<8x32xf32>
    %525 = arith.negf %524 : vector<8x32xf32>
    %526 = math.exp %525 : vector<8x32xf32>
    %cst_115 = arith.constant 1.000000e+00 : f32
    %527 = vector.broadcast %cst_115 : f32 to vector<8x32xf32>
    %528 = arith.addf %527, %526 : vector<8x32xf32>
    %529 = arith.divf %527, %528 : vector<8x32xf32>
    %530 = vector.extract_strided_slice %492 {offsets = [0, 64], sizes = [8, 32], strides = [1, 1]} : vector<8x128xf32> to vector<8x32xf32>
    %531 = math.tanh %530 : vector<8x32xf32>
    %532 = vector.extract_strided_slice %492 {offsets = [0, 96], sizes = [8, 32], strides = [1, 1]} : vector<8x128xf32> to vector<8x32xf32>
    %533 = arith.negf %532 : vector<8x32xf32>
    %534 = math.exp %533 : vector<8x32xf32>
    %cst_116 = arith.constant 1.000000e+00 : f32
    %535 = vector.broadcast %cst_116 : f32 to vector<8x32xf32>
    %536 = arith.addf %535, %534 : vector<8x32xf32>
    %537 = arith.divf %535, %536 : vector<8x32xf32>
    %538 = arith.mulf %529, %469 : vector<8x32xf32>
    %539 = arith.mulf %523, %531 : vector<8x32xf32>
    %540 = arith.addf %538, %539 : vector<8x32xf32>
    %541 = math.tanh %540 : vector<8x32xf32>
    %542 = arith.mulf %537, %541 : vector<8x32xf32>
    %543 = vector.broadcast %482 : vector<8x1xf32> to vector<8x32xf32>
    %544 = arith.mulf %542, %543 : vector<8x32xf32>
    %545 = vector.broadcast %482 : vector<8x1xf32> to vector<8x32xf32>
    %546 = arith.mulf %540, %545 : vector<8x32xf32>
    %547 = vector.broadcast %480 : vector<8x1xf32> to vector<8x32xf32>
    %548 = arith.mulf %517, %547 : vector<8x32xf32>
    %549 = arith.addf %472, %548 : vector<8x32xf32>
    %550 = arith.addf %473, %544 : vector<8x32xf32>
    %c7_i32_117 = arith.constant 7 : i32
    %c8_i32_118 = arith.constant 8 : i32
    %551 = arith.muli %c7_i32_117, %c8_i32_118 : i32
    %552 = tpu.assume_multiple %551, 8 : i32
    %c7_i32_119 = arith.constant 7 : i32
    %553 = arith.subi %c7_i32_119, %c7_i32_117 : i32
    %c8_i32_120 = arith.constant 8 : i32
    %554 = arith.muli %553, %c8_i32_120 : i32
    %555 = tpu.assume_multiple %554, 8 : i32
    %556 = arith.index_cast %552 : i32 to index
    %c0_121 = arith.constant 0 : index
    %557 = vector.load %arg1[%556, %c0_121] : memref<64x1xf32, #tpu.memory_space<vmem>>, vector<8x1xf32>
    %558 = arith.index_cast %555 : i32 to index
    %c0_122 = arith.constant 0 : index
    %559 = vector.load %arg1[%558, %c0_122] : memref<64x1xf32, #tpu.memory_space<vmem>>, vector<8x1xf32>
    %560 = arith.index_cast %552 : i32 to index
    %c0_123 = arith.constant 0 : index
    %561 = vector.load %arg8[%560, %c0_123] : memref<64x256xf32, #tpu.memory_space<vmem>>, vector<8x128xf32>
    %562 = arith.truncf %517 : vector<8x32xf32> to vector<8x32xbf16>
    %cst_124 = arith.constant dense<0.000000e+00> : vector<8x128xf32>
    %563 = tpu.matmul %562, %7, %cst_124 {dimension_numbers = #tpu.dot_dimension_numbers<[1], [0], [0], [1], [0, 0, 1, 1], [], []>} : vector<8x32xbf16>, vector<32x128xbf16>, vector<8x128xf32> -> vector<8x128xf32>
    %564 = arith.addf %561, %563 : vector<8x128xf32>
    %565 = arith.index_cast %555 : i32 to index
    %c128_125 = arith.constant 128 : index
    %566 = vector.load %arg8[%565, %c128_125] : memref<64x256xf32, #tpu.memory_space<vmem>>, vector<8x128xf32>
    %567 = arith.truncf %544 : vector<8x32xf32> to vector<8x32xbf16>
    %cst_126 = arith.constant dense<0.000000e+00> : vector<8x128xf32>
    %568 = tpu.matmul %567, %8, %cst_126 {dimension_numbers = #tpu.dot_dimension_numbers<[1], [0], [0], [1], [0, 0, 1, 1], [], []>} : vector<8x32xbf16>, vector<32x128xbf16>, vector<8x128xf32> -> vector<8x128xf32>
    %569 = arith.addf %566, %568 : vector<8x128xf32>
    %570 = vector.extract_strided_slice %564 {offsets = [0, 0], sizes = [8, 32], strides = [1, 1]} : vector<8x128xf32> to vector<8x32xf32>
    %571 = arith.negf %570 : vector<8x32xf32>
    %572 = math.exp %571 : vector<8x32xf32>
    %cst_127 = arith.constant 1.000000e+00 : f32
    %573 = vector.broadcast %cst_127 : f32 to vector<8x32xf32>
    %574 = arith.addf %573, %572 : vector<8x32xf32>
    %575 = arith.divf %573, %574 : vector<8x32xf32>
    %576 = vector.extract_strided_slice %564 {offsets = [0, 32], sizes = [8, 32], strides = [1, 1]} : vector<8x128xf32> to vector<8x32xf32>
    %577 = arith.negf %576 : vector<8x32xf32>
    %578 = math.exp %577 : vector<8x32xf32>
    %cst_128 = arith.constant 1.000000e+00 : f32
    %579 = vector.broadcast %cst_128 : f32 to vector<8x32xf32>
    %580 = arith.addf %579, %578 : vector<8x32xf32>
    %581 = arith.divf %579, %580 : vector<8x32xf32>
    %582 = vector.extract_strided_slice %564 {offsets = [0, 64], sizes = [8, 32], strides = [1, 1]} : vector<8x128xf32> to vector<8x32xf32>
    %583 = math.tanh %582 : vector<8x32xf32>
    %584 = vector.extract_strided_slice %564 {offsets = [0, 96], sizes = [8, 32], strides = [1, 1]} : vector<8x128xf32> to vector<8x32xf32>
    %585 = arith.negf %584 : vector<8x32xf32>
    %586 = math.exp %585 : vector<8x32xf32>
    %cst_129 = arith.constant 1.000000e+00 : f32
    %587 = vector.broadcast %cst_129 : f32 to vector<8x32xf32>
    %588 = arith.addf %587, %586 : vector<8x32xf32>
    %589 = arith.divf %587, %588 : vector<8x32xf32>
    %590 = arith.mulf %581, %515 : vector<8x32xf32>
    %591 = arith.mulf %575, %583 : vector<8x32xf32>
    %592 = arith.addf %590, %591 : vector<8x32xf32>
    %593 = math.tanh %592 : vector<8x32xf32>
    %594 = arith.mulf %589, %593 : vector<8x32xf32>
    %595 = vector.extract_strided_slice %569 {offsets = [0, 0], sizes = [8, 32], strides = [1, 1]} : vector<8x128xf32> to vector<8x32xf32>
    %596 = arith.negf %595 : vector<8x32xf32>
    %597 = math.exp %596 : vector<8x32xf32>
    %cst_130 = arith.constant 1.000000e+00 : f32
    %598 = vector.broadcast %cst_130 : f32 to vector<8x32xf32>
    %599 = arith.addf %598, %597 : vector<8x32xf32>
    %600 = arith.divf %598, %599 : vector<8x32xf32>
    %601 = vector.extract_strided_slice %569 {offsets = [0, 32], sizes = [8, 32], strides = [1, 1]} : vector<8x128xf32> to vector<8x32xf32>
    %602 = arith.negf %601 : vector<8x32xf32>
    %603 = math.exp %602 : vector<8x32xf32>
    %cst_131 = arith.constant 1.000000e+00 : f32
    %604 = vector.broadcast %cst_131 : f32 to vector<8x32xf32>
    %605 = arith.addf %604, %603 : vector<8x32xf32>
    %606 = arith.divf %604, %605 : vector<8x32xf32>
    %607 = vector.extract_strided_slice %569 {offsets = [0, 64], sizes = [8, 32], strides = [1, 1]} : vector<8x128xf32> to vector<8x32xf32>
    %608 = math.tanh %607 : vector<8x32xf32>
    %609 = vector.extract_strided_slice %569 {offsets = [0, 96], sizes = [8, 32], strides = [1, 1]} : vector<8x128xf32> to vector<8x32xf32>
    %610 = arith.negf %609 : vector<8x32xf32>
    %611 = math.exp %610 : vector<8x32xf32>
    %cst_132 = arith.constant 1.000000e+00 : f32
    %612 = vector.broadcast %cst_132 : f32 to vector<8x32xf32>
    %613 = arith.addf %612, %611 : vector<8x32xf32>
    %614 = arith.divf %612, %613 : vector<8x32xf32>
    %615 = arith.mulf %606, %546 : vector<8x32xf32>
    %616 = arith.mulf %600, %608 : vector<8x32xf32>
    %617 = arith.addf %615, %616 : vector<8x32xf32>
    %618 = math.tanh %617 : vector<8x32xf32>
    %619 = arith.mulf %614, %618 : vector<8x32xf32>
    %620 = vector.broadcast %559 : vector<8x1xf32> to vector<8x32xf32>
    %621 = arith.mulf %619, %620 : vector<8x32xf32>
    %622 = vector.broadcast %559 : vector<8x1xf32> to vector<8x32xf32>
    %623 = arith.mulf %617, %622 : vector<8x32xf32>
    %624 = vector.broadcast %557 : vector<8x1xf32> to vector<8x32xf32>
    %625 = arith.mulf %594, %624 : vector<8x32xf32>
    %626 = arith.addf %549, %625 : vector<8x32xf32>
    %627 = arith.addf %550, %621 : vector<8x32xf32>
    %c8_i32_133 = arith.constant 8 : i32
    %628 = tpu.concatenate %626, %627 in 1 : vector<8x32xf32>, vector<8x32xf32> -> vector<8x64xf32>
    %c0_134 = arith.constant 0 : index
    %c0_135 = arith.constant 0 : index
    %629 = vector.load %arg7[%c0_134, %c0_135] : memref<8x64xf32, #tpu.memory_space<vmem>>, vector<8x64xf32>
    tpu.vector_store %arg7[%c0_134, %c0_135], %628 {strides = array<i32>} : memref<8x64xf32, #tpu.memory_space<vmem>>, vector<8x64xf32>,
    return
  }
}

module attributes {stable_mosaic.version = 11 : i64} {
  func.func @_head_kernel(%arg0: memref<8x64xf32, #tpu.memory_space<vmem>>, %arg1: memref<8x1xf32, #tpu.memory_space<vmem>>, %arg2: memref<64x4xf32, #tpu.memory_space<vmem>>, %arg3: memref<1x4xf32, #tpu.memory_space<vmem>>, %arg4: memref<8x4xf32, #tpu.memory_space<vmem>>) attributes {dimension_semantics = [], scalar_prefetch = 0 : i64, scratch_operands = 0 : i64, tpu.core_type = #tpu.core_type<tc>} {
    %c0 = arith.constant 0 : index
    %c0_0 = arith.constant 0 : index
    %0 = vector.load %arg0[%c0, %c0_0] : memref<8x64xf32, #tpu.memory_space<vmem>>, vector<8x64xf32>
    %c0_1 = arith.constant 0 : index
    %c0_2 = arith.constant 0 : index
    %1 = vector.load %arg1[%c0_1, %c0_2] : memref<8x1xf32, #tpu.memory_space<vmem>>, vector<8x1xf32>
    %2 = vector.broadcast %1 : vector<8x1xf32> to vector<8x64xf32>
    %3 = arith.mulf %0, %2 : vector<8x64xf32>
    %c0_3 = arith.constant 0 : index
    %c0_4 = arith.constant 0 : index
    %4 = vector.load %arg2[%c0_3, %c0_4] : memref<64x4xf32, #tpu.memory_space<vmem>>, vector<64x4xf32>
    %cst = arith.constant dense<0.000000e+00> : vector<8x4xf32>
    %5 = tpu.matmul %3, %4, %cst {dimension_numbers = #tpu.dot_dimension_numbers<[1], [0], [0], [1], [0, 0, 1, 1], [], []>} : vector<8x64xf32>, vector<64x4xf32>, vector<8x4xf32> -> vector<8x4xf32>
    %c0_5 = arith.constant 0 : index
    %c0_6 = arith.constant 0 : index
    %6 = vector.load %arg3[%c0_5, %c0_6] : memref<1x4xf32, #tpu.memory_space<vmem>>, vector<1x4xf32>
    %7 = vector.broadcast %6 : vector<1x4xf32> to vector<8x4xf32>
    %8 = arith.addf %5, %7 : vector<8x4xf32>
    %c0_7 = arith.constant 0 : index
    %c0_8 = arith.constant 0 : index
    %9 = vector.load %arg4[%c0_7, %c0_8] : memref<8x4xf32, #tpu.memory_space<vmem>>, vector<8x4xf32>
    tpu.vector_store %arg4[%c0_7, %c0_8], %8 {strides = array<i32>} : memref<8x4xf32, #tpu.memory_space<vmem>>, vector<8x4xf32>,
    return
  }
}

</mosaic_0001>

<llo_original>
// kernel: bilstm_forward.5
$region0: #{bilstm_forward.5}
  #allocation0 [shape = 'u32[]', space=smem, size = 0x4, offset = 0x4, fixed_abs, tag = 'smem constant byte address 0x4 - core index']
  #allocation1 [shape = 'u32[72,128]{1,0:T(1,128)}', space=vmem, size = 0x9000, scoped, tag = 'internal scratch']
  %s0 = inlined_call_operand.vmem [shape: f32[8,64], index: 0, kind: input, shape index: {}]
  %s1 = inlined_call_operand.vmem [shape: f32[8,1], index: 1, kind: input, shape index: {}]
  %s2 = inlined_call_operand.vmem [shape: f32[64,4], index: 2, kind: input, shape index: {}]
  %s3 = inlined_call_operand.vmem [shape: f32[1,4], index: 3, kind: input, shape index: {}]
  %s4 = inlined_call_operand.vmem [shape: f32[8,4], index: 4, kind: output, shape index: {}]
  %s5 = sld [smem:[#allocation0]]
  $region26: #{bilstm_forward.5} parent=0
    _
  %s7 = ssub.s32 1, %s5
  %s8 = scalar_select 0, %s7, %s5
  // Predicated region
  $region2: #{bilstm_forward.5} parent=0 // pred_check
    _
  $region3: #{bilstm_forward.5} parent=0 // pred_check_branch
    %10 = sbr.rel (0) target = $region5
  $region4: #{bilstm_forward.5} parent=0 // pred_region
    _
  $region5: #{bilstm_forward.5} parent=0 // pred_fallthru
    _
  // Predicated region
  $region6: #{bilstm_forward.5} parent=0 // pred_check
    _
  $region7: #{bilstm_forward.5} parent=0 // pred_check_branch
    %12 = sbr.rel (0) target = $region9
  $region8: #{bilstm_forward.5} parent=0 // pred_region
    _
  $region9: #{bilstm_forward.5} parent=0 // pred_fallthru
    _
  // Predicated region
  $region10: #{bilstm_forward.5} parent=0 // pred_check
    _
  $region11: #{bilstm_forward.5} parent=0 // pred_check_branch
    %14 = sbr.rel (0) target = $region13
  $region12: #{bilstm_forward.5} parent=0 // pred_region
    _
  $region13: #{bilstm_forward.5} parent=0 // pred_fallthru
    _
  // Predicated region
  $region14: #{bilstm_forward.5} parent=0 // pred_check
    _
  $region15: #{bilstm_forward.5} parent=0 // pred_check_branch
    %16 = sbr.rel (0) target = $region17
  $region16: #{bilstm_forward.5} parent=0 // pred_region
    _
  $region17: #{bilstm_forward.5} parent=0 // pred_fallthru
    _
  %v17 = vld [vmem:[%s0] sm:$0xff]
  %v18 = vld [vmem:[%s1] sm:$0xff]
  %20 = vset.pattern.permute.xlu0 0
  %21 = vperm.xlu0 %20, %v18
  %v22 = vpop.permute.xlu0 %21
  %v24 = vmul.f32 %v17, %v22
  %v25 = vld [vmem:[%s2] sm:$0xff]
  %v26 = vld [vmem:[%s2 + $0x8] sm:$0xff]
  %v27 = vld [vmem:[%s2 + $0x10] sm:$0xff]
  %v28 = vld [vmem:[%s2 + $0x18] sm:$0xff]
  %v29 = vld [vmem:[%s2 + $0x20] sm:$0xff]
  %v30 = vld [vmem:[%s2 + $0x28] sm:$0xff]
  %v31 = vld [vmem:[%s2 + $0x30] sm:$0xff]
  %v32 = vld [vmem:[%s2 + $0x38] sm:$0xff]
  %v33 = vld [vmem:[%s3] sm:$0x1]
  %v35 = vperm.slane %v33, 0
  %vm37 = vcmask 523264
  %v39 = vsel %vm37, %v24, 0
  %41 = vmatpush.msra.mxu0 0.0
  %42 = vmatpush.msra.mxu0 0.0
  %43 = vmatpush.msra.mxu0 0.0
  %44 = vmatpush.msra.mxu0 0.0
  %45 = vmatpush.msra.mxu0 0.0
  %46 = vmatpush.msra.mxu0 0.0
  %47 = vmatpush.msra.mxu0 0.0
  %48 = vmatpush.msra.mxu0 0.0
  %49 = vmatpush.msra.mxu0 %v32
  %50 = vmatpush.msra.mxu0 %v31
  %51 = vmatpush.msra.mxu0 %v30
  %52 = vmatpush.msra.mxu0 %v29
  %53 = vmatpush.msra.mxu0 %v28
  %54 = vmatpush.msra.mxu0 %v27
  %55 = vmatpush.msra.mxu0 %v26
  %56 = vmatpush.msra.mxu0 %v25
  %57 = vmatmul.f32.gmra.mxu0 %v39
  %v58 = vpop.f32.mrf.mxu0
  %v59 = vadd.f32 %v35, %v58
  %60 = vdwg.mxu0
  %vm61 = vcmask 31744
  %62 = vst.msk [vmem:[%s4] sm:$0xff] %vm61, %v59
  // Predicated region
  $region18: #{bilstm_forward.5} parent=0 // pred_check
    _
  $region19: #{bilstm_forward.5} parent=0 // pred_check_branch
    %64 = sbr.rel (0) target = $region21
  $region20: #{bilstm_forward.5} parent=0 // pred_region
    _
  $region21: #{bilstm_forward.5} parent=0 // pred_fallthru
    _
  // Predicated region
  $region22: #{bilstm_forward.5} parent=0 // pred_check
    _
  $region23: #{bilstm_forward.5} parent=0 // pred_check_branch
    %66 = sbr.rel (0) target = $region25
  $region24: #{bilstm_forward.5} parent=0 // pred_region
    _
  $region25: #{bilstm_forward.5} parent=0 // pred_fallthru
    _

// kernel: bilstm_forward.4
$region0: #{bilstm_forward.4}
  #allocation0 [shape = 'u32[]', space=smem, size = 0x4, offset = 0x4, fixed_abs, tag = 'smem constant byte address 0x4 - core index']
  #allocation1 [shape = 'u32[72,128]{1,0:T(1,128)}', space=vmem, size = 0x9000, scoped, tag = 'internal scratch']
  #allocation2 [shape = 'f32[64,256]{1,0:T(8,128)}', space=vmem, size = 0x10000, scoped, tag = 'scratch operand']
  %s0 = inlined_call_operand.vmem [shape: bf16[64,64], index: 0, kind: input, shape index: {}]
  %s1 = inlined_call_operand.vmem [shape: f32[64,1], index: 1, kind: input, shape index: {}]
  %s2 = inlined_call_operand.vmem [shape: bf16[64,256], index: 2, kind: input, shape index: {}]
  %s3 = inlined_call_operand.vmem [shape: bf16[32,128], index: 3, kind: input, shape index: {}]
  %s4 = inlined_call_operand.vmem [shape: bf16[32,128], index: 4, kind: input, shape index: {}]
  %s5 = inlined_call_operand.vmem [shape: f32[1,256], index: 5, kind: input, shape index: {}]
  %s6 = inlined_call_operand.hbm [shape: f32[8,64], index: 6, kind: output, shape index: {0}]
  %s7 = inlined_call_operand.vmem [shape: f32[8,64], index: 7, kind: output, shape index: {1}]
  %8 = xla_tuple %s6, %s7
  %s9 = sld [smem:[#allocation0]]
  $region42: #{bilstm_forward.4} parent=0
    _
  %s11 = ssub.s32 1, %s9
  %s12 = scalar_select 0, %s11, %s9
  $region1: #{bilstm_forward.4} parent=0
    #allocation3 [shape = 'u8[4096]{0}', space=vmem, size = 0x1000, scoped, tag = 'output window, operand 0, single buffered']
    #allocation4 [shape = 's32[1]{0}', space=sflag, size = 0x4, scoped, tag = 'scoped memory for bilstm_forward.4']
    %13 = vsyncpa [#allocation4], 0
    // Predicated region
    $region2: #{bilstm_forward.4} parent=1 // pred_check
      _
    $region3: #{bilstm_forward.4} parent=1 // pred_check_branch
      %15 = sbr.rel (0) target = $region5
    $region4: #{bilstm_forward.4} parent=1 // pred_region
      _
    $region5: #{bilstm_forward.4} parent=1 // pred_fallthru
      _
    // Predicated region
    $region6: #{bilstm_forward.4} parent=1 // pred_check
      _
    $region7: #{bilstm_forward.4} parent=1 // pred_check_branch
      %17 = sbr.rel (0) target = $region9
    $region8: #{bilstm_forward.4} parent=1 // pred_region
      _
    $region9: #{bilstm_forward.4} parent=1 // pred_fallthru
      _
    // Predicated region
    $region10: #{bilstm_forward.4} parent=1 // pred_check
      _
    $region11: #{bilstm_forward.4} parent=1 // pred_check_branch
      %19 = sbr.rel (0) target = $region13
    $region12: #{bilstm_forward.4} parent=1 // pred_region
      _
    $region13: #{bilstm_forward.4} parent=1 // pred_fallthru
      _
    // Predicated region
    $region14: #{bilstm_forward.4} parent=1 // pred_check
      _
    $region15: #{bilstm_forward.4} parent=1 // pred_check_branch
      %21 = sbr.rel (0) target = $region17
    $region16: #{bilstm_forward.4} parent=1 // pred_region
      _
    $region17: #{bilstm_forward.4} parent=1 // pred_fallthru
      _
    // Predicated region
    $region18: #{bilstm_forward.4} parent=1 // pred_check
      _
    $region19: #{bilstm_forward.4} parent=1 // pred_check_branch
      %23 = sbr.rel (0) target = $region21
    $region20: #{bilstm_forward.4} parent=1 // pred_region
      _
    $region21: #{bilstm_forward.4} parent=1 // pred_fallthru
      _
    // Predicated region
    $region22: #{bilstm_forward.4} parent=1 // pred_check
      _
    $region23: #{bilstm_forward.4} parent=1 // pred_check_branch
      %25 = sbr.rel (0) target = $region25
    $region24: #{bilstm_forward.4} parent=1 // pred_region
      _
    $region25: #{bilstm_forward.4} parent=1 // pred_fallthru
      _
    %v27 = vld [vmem:[%s0] sm:$0xf]
    %v28 = vld [vmem:[%s0 + $0x4] sm:$0xf]
    %v29 = vld [vmem:[%s0 + $0x8] sm:$0xf]
    %v30 = vld [vmem:[%s0 + $0xc] sm:$0xf]
    %v31 = vld [vmem:[%s0 + $0x10] sm:$0xf]
    %v32 = vld [vmem:[%s0 + $0x14] sm:$0xf]
    %v33 = vld [vmem:[%s0 + $0x18] sm:$0xf]
    %v34 = vld [vmem:[%s0 + $0x1c] sm:$0xf]
    %v35 = vld [vmem:[%s2] sm:$0xff]
    %v36 = vld [vmem:[%s2 + $0x8] sm:$0xff]
    %v37 = vld [vmem:[%s2 + $0x10] sm:$0xff]
    %v38 = vld [vmem:[%s2 + $0x18] sm:$0xff]
    %v39 = vld [vmem:[%s2 + $0x20] sm:$0xff]
    %v40 = vld [vmem:[%s2 + $0x28] sm:$0xff]
    %v41 = vld [vmem:[%s2 + $0x30] sm:$0xff]
    %v42 = vld [vmem:[%s2 + $0x38] sm:$0xff]
    %v43 = vld [vmem:[%s5] sm:$0x3]
    %v45 = vperm.slane %v43, 0
    %v46 = vperm.slane %v43, 1
    %v57 = vunpack.c.l.b16 %v27
    %v58 = vunpack.c.l.b16 %v28
    %v59 = vunpack.c.l.b16 %v29
    %v60 = vunpack.c.l.b16 %v30
    %v61 = vunpack.c.l.b16 %v31
    %v62 = vunpack.c.l.b16 %v32
    %v63 = vunpack.c.l.b16 %v33
    %v64 = vunpack.c.l.b16 %v34
    %v65 = vpack.c.b16 %v58, %v57
    %v66 = vpack.c.b16 %v60, %v59
    %v67 = vpack.c.b16 %v62, %v61
    %v68 = vpack.c.b16 %v64, %v63
    %v77 = vunpack.c.l.b16 %v35
    %v78 = vunpack.c.h.b16 %v35
    %v79 = vunpack.c.l.b16 %v36
    %v80 = vunpack.c.h.b16 %v36
    %v81 = vunpack.c.l.b16 %v37
    %v82 = vunpack.c.h.b16 %v37
    %v83 = vunpack.c.l.b16 %v38
    %v84 = vunpack.c.h.b16 %v38
    %v85 = vunpack.c.l.b16 %v39
    %v86 = vunpack.c.h.b16 %v39
    %v87 = vunpack.c.l.b16 %v40
    %v88 = vunpack.c.h.b16 %v40
    %v89 = vunpack.c.l.b16 %v41
    %v90 = vunpack.c.h.b16 %v41
    %v91 = vunpack.c.l.b16 %v42
    %v92 = vunpack.c.h.b16 %v42
    %v93 = vpack.c.b16 %v79, %v77
    %v94 = vpack.c.b16 %v80, %v78
    %v95 = vpack.c.b16 %v83, %v81
    %v96 = vpack.c.b16 %v84, %v82
    %v97 = vpack.c.b16 %v87, %v85
    %v98 = vpack.c.b16 %v88, %v86
    %v99 = vpack.c.b16 %v91, %v89
    %v100 = vpack.c.b16 %v92, %v90
    %vm109 = vcmask 523264
    %v111 = vsel %vm109, %v65, 0
    %v114 = vsel %vm109, %v66, 0
    %v117 = vsel %vm109, %v67, 0
    %v120 = vsel %vm109, %v68, 0
    %122 = vmatpush.bf16.msra.mxu0 0
    %123 = vmatpush.bf16.msra.mxu0 0
    %124 = vmatpush.bf16.msra.mxu0 0
    %125 = vmatpush.bf16.msra.mxu0 0
    %126 = vmatpush.bf16.msra.mxu0 %v99
    %127 = vmatpush.bf16.msra.mxu0 %v97
    %128 = vmatpush.bf16.msra.mxu0 %v95
    %129 = vmatpush.bf16.msra.mxu0 %v93
    %130 = vmatmul.bf16.gmra.mxu0 %v111
    %v131 = vpop.f32.mrf.mxu0
    %v132 = vadd.f32 %v45, %v131
    %v133 = vpop.f32.mrf.mxu0
    %v134 = vadd.f32 %v45, %v133
    %135 = vmatmul.bf16.gmra.mxu0 %v114
    %v136 = vpop.f32.mrf.mxu0
    %v137 = vadd.f32 %v45, %v136
    %v138 = vpop.f32.mrf.mxu0
    %v139 = vadd.f32 %v45, %v138
    %140 = vmatmul.bf16.gmra.mxu0 %v117
    %v141 = vpop.f32.mrf.mxu0
    %v142 = vadd.f32 %v45, %v141
    %v143 = vpop.f32.mrf.mxu0
    %v144 = vadd.f32 %v45, %v143
    %145 = vmatmul.bf16.gmra.mxu0 %v120
    %v146 = vpop.f32.mrf.mxu0
    %v147 = vadd.f32 %v45, %v146
    %v148 = vpop.f32.mrf.mxu0
    %v149 = vadd.f32 %v45, %v148
    %150 = vdwg.mxu0
    %151 = vmatpush.bf16.msra.mxu0 0
    %152 = vmatpush.bf16.msra.mxu0 0
    %153 = vmatpush.bf16.msra.mxu0 0
    %154 = vmatpush.bf16.msra.mxu0 0
    %155 = vmatpush.bf16.msra.mxu0 %v100
    %156 = vmatpush.bf16.msra.mxu0 %v98
    %157 = vmatpush.bf16.msra.mxu0 %v96
    %158 = vmatpush.bf16.msra.mxu0 %v94
    %159 = vmatmul.bf16.gmra.mxu0 %v111
    %v160 = vpop.f32.mrf.mxu0
    %v161 = vadd.f32 %v46, %v160
    %v162 = vpop.f32.mrf.mxu0
    %v163 = vadd.f32 %v46, %v162
    %164 = vmatmul.bf16.gmra.mxu0 %v114
    %v165 = vpop.f32.mrf.mxu0
    %v166 = vadd.f32 %v46, %v165
    %v167 = vpop.f32.mrf.mxu0
    %v168 = vadd.f32 %v46, %v167
    %169 = vmatmul.bf16.gmra.mxu0 %v117
    %v170 = vpop.f32.mrf.mxu0
    %v171 = vadd.f32 %v46, %v170
    %v172 = vpop.f32.mrf.mxu0
    %v173 = vadd.f32 %v46, %v172
    %174 = vmatmul.bf16.gmra.mxu0 %v120
    %v175 = vpop.f32.mrf.mxu0
    %v176 = vadd.f32 %v46, %v175
    %v177 = vpop.f32.mrf.mxu0
    %v178 = vadd.f32 %v46, %v177
    %179 = vdwg.mxu0
    %180 = vst [vmem:[#allocation2] sm:$0xff] %v132
    %181 = vst [vmem:[#allocation2 + $0x8] sm:$0xff] %v161
    %182 = vst [vmem:[#allocation2 + $0x10] sm:$0xff] %v134
    %183 = vst [vmem:[#allocation2 + $0x18] sm:$0xff] %v163
    %184 = vst [vmem:[#allocation2 + $0x20] sm:$0xff] %v137
    %185 = vst [vmem:[#allocation2 + $0x28] sm:$0xff] %v166
    %186 = vst [vmem:[#allocation2 + $0x30] sm:$0xff] %v139
    %187 = vst [vmem:[#allocation2 + $0x38] sm:$0xff] %v168
    %188 = vst [vmem:[#allocation2 + $0x40] sm:$0xff] %v142
    %189 = vst [vmem:[#allocation2 + $0x48] sm:$0xff] %v171
    %190 = vst [vmem:[#allocation2 + $0x50] sm:$0xff] %v144
    %191 = vst [vmem:[#allocation2 + $0x58] sm:$0xff] %v173
    %192 = vst [vmem:[#allocation2 + $0x60] sm:$0xff] %v147
    %193 = vst [vmem:[#allocation2 + $0x68] sm:$0xff] %v176
    %194 = vst [vmem:[#allocation2 + $0x70] sm:$0xff] %v149
    %195 = vst [vmem:[#allocation2 + $0x78] sm:$0xff] %v178
    %v196 = vld [vmem:[%s3] sm:$0xf]
    %v197 = vld [vmem:[%s3 + $0x4] sm:$0xf]
    %v198 = vld [vmem:[%s3 + $0x8] sm:$0xf]
    %v199 = vld [vmem:[%s3 + $0xc] sm:$0xf]
    %v200 = vld [vmem:[%s4] sm:$0xf]
    %v201 = vld [vmem:[%s4 + $0x4] sm:$0xf]
    %v202 = vld [vmem:[%s4 + $0x8] sm:$0xf]
    %v203 = vld [vmem:[%s4 + $0xc] sm:$0xf]
    %204 = vst.msk [vmem:[#allocation3] sm:$0xff] %vm109, 0.0
    %v205 = vld [vmem:[%s1] sm:$0xff]
    %s206 = scalar_lea.vmem %s1, 56
    %v207 = vld [vmem:[%s206] sm:$0xff]
    %s208 = smul.u32 0, 2
    %s209 = smul.addr %s208, 8
    %s210 = scalar_lea.vmem [#allocation2], %s209
    %v211 = vld [vmem:[%s210] sm:$0xff]
    %v216 = vunpack.c.l.b16 %v196
    %v217 = vunpack.c.l.b16 %v197
    %v218 = vunpack.c.l.b16 %v198
    %v219 = vunpack.c.l.b16 %v199
    %v220 = vpack.c.b16 %v217, %v216
    %v221 = vpack.c.b16 %v219, %v218
    %vm224 = vcmask 261120
    %v226 = vsel %vm224, 0, 0
    %228 = vmatpush.bf16.msra.mxu0 0
    %229 = vmatpush.bf16.msra.mxu0 0
    %230 = vmatpush.bf16.msra.mxu0 0
    %231 = vmatpush.bf16.msra.mxu0 0
    %232 = vmatpush.bf16.msra.mxu0 0
    %233 = vmatpush.bf16.msra.mxu0 0
    %234 = vmatpush.bf16.msra.mxu0 %v221
    %235 = vmatpush.bf16.msra.mxu0 %v220
    %236 = vmatmul.bf16.gmra.mxu0 %v226
    %v237 = vpop.f32.mrf.mxu0
    %v238 = vadd.f32 0.0, %v237
    %v239 = vpop.f32.mrf.mxu0
    %240 = vdwg.mxu0
    %v241 = vadd.f32 %v211, %v238
    %s242 = smul.u32 7, 2
    %s243 = smul.addr %s242, 8
    %s244 = scalar_lea.vmem [#allocation2], %s243
    %v245 = vld [vmem:[%s244 + $0x8] sm:$0xff]
    %v250 = vunpack.c.l.b16 %v200
    %v251 = vunpack.c.l.b16 %v201
    %v252 = vunpack.c.l.b16 %v202
    %v253 = vunpack.c.l.b16 %v203
    %v254 = vpack.c.b16 %v251, %v250
    %v255 = vpack.c.b16 %v253, %v252
    %258 = vmatpush.bf16.msra.mxu0 0
    %259 = vmatpush.bf16.msra.mxu0 0
    %260 = vmatpush.bf16.msra.mxu0 0
    %261 = vmatpush.bf16.msra.mxu0 0
    %262 = vmatpush.bf16.msra.mxu0 0
    %263 = vmatpush.bf16.msra.mxu0 0
    %264 = vmatpush.bf16.msra.mxu0 %v255
    %265 = vmatpush.bf16.msra.mxu0 %v254
    %266 = vmatmul.bf16.gmra.mxu0 %v226
    %v267 = vpop.f32.mrf.mxu0
    %v268 = vadd.f32 0.0, %v267
    %v269 = vpop.f32.mrf.mxu0
    %270 = vdwg.mxu0
    %v271 = vadd.f32 %v245, %v268
    %v272 = vxor.u32 %v241, 2147483648
    %v273 = vmul.f32 %v272, 1.442695
    %v274 = vpow.pop %v273
    %v275 = vadd.f32 %v274, 1.0
    %v276 = vrcp.pop %v275
    %v277 = vmul.f32 %v275, %v276
    %v278 = vsub.f32 1.0, %v277
    %v279 = vmul.f32 %v276, %v278
    %v280 = vadd.f32 %v276, %v279
    %vm281 = vweird.f32 %v275
    %vm282 = vweird.f32 %v276
    %vm283 = vmor %vm281, %vm282
    %v284 = vsel %vm283, %v276, %v280
    %v285 = vand.u32 2147483647, %v275
    %vm286 = vcmp.eq.f32.partialorder %v285, 8.507059e+37
    %v287 = vand.u32 %v275, 2147483648
    %v288 = vor.u32 1.1754944e-38, %v287
    %v289 = vsel %vm286, %v288, %v284
    %v290 = vmul.f32 1.0, %v289
    %v291 = vtanh.pop %v241
    %v292 = vmul.f32 %v290, 0.0
    %294 = vrot.lane.b32.xlu0 %v291, 64
    %v295 = vpop.permute.xlu0 %294
    %v297 = vmul.f32 %v290, %v295
    %299 = vrot.lane.b32.xlu0 %v297, 32
    %v300 = vpop.permute.xlu0 %299
    %v302 = vadd.f32 %v292, %v300
    %v303 = vtanh.pop %v302
    %305 = vrot.lane.b32.xlu0 %v303, 64
    %v306 = vpop.permute.xlu0 %305
    %v308 = vmul.f32 %v290, %v306
    %v309 = vxor.u32 %v271, 2147483648
    %v310 = vmul.f32 %v309, 1.442695
    %v311 = vpow.pop %v310
    %v312 = vadd.f32 %v311, 1.0
    %v313 = vrcp.pop %v312
    %v314 = vmul.f32 %v312, %v313
    %v315 = vsub.f32 1.0, %v314
    %v316 = vmul.f32 %v313, %v315
    %v317 = vadd.f32 %v313, %v316
    %vm318 = vweird.f32 %v312
    %vm319 = vweird.f32 %v313
    %vm320 = vmor %vm318, %vm319
    %v321 = vsel %vm320, %v313, %v317
    %v322 = vand.u32 2147483647, %v312
    %vm323 = vcmp.eq.f32.partialorder %v322, 8.507059e+37
    %v324 = vand.u32 %v312, 2147483648
    %v325 = vor.u32 1.1754944e-38, %v324
    %v326 = vsel %vm323, %v325, %v321
    %v327 = vmul.f32 1.0, %v326
    %v328 = vtanh.pop %v271
    %v329 = vmul.f32 %v327, 0.0
    %331 = vrot.lane.b32.xlu0 %v328, 64
    %v332 = vpop.permute.xlu0 %331
    %v334 = vmul.f32 %v327, %v332
    %336 = vrot.lane.b32.xlu0 %v334, 32
    %v337 = vpop.permute.xlu0 %336
    %v339 = vadd.f32 %v329, %v337
    %v340 = vtanh.pop %v339
    %342 = vrot.lane.b32.xlu0 %v340, 64
    %v343 = vpop.permute.xlu0 %342
    %v345 = vmul.f32 %v327, %v343
    %347 = vset.pattern.permute.xlu0 0
    %348 = vperm.xlu0 %347, %v207
    %v349 = vpop.permute.xlu0 %348
    %v351 = vmul.f32 %v345, %v349
    %v352 = vmul.f32 %v339, %v349
    %354 = vset.pattern.permute.xlu0 0
    %355 = vperm.xlu0 %354, %v205
    %v356 = vpop.permute.xlu0 %355
    %v358 = vmul.f32 %v308, %v356
    %v359 = vadd.f32 %v358, 0.0
    %v360 = vadd.f32 %v351, 0.0
    %s361 = scalar_lea.vmem %s1, 8
    %v362 = vld [vmem:[%s361] sm:$0xff]
    %s363 = scalar_lea.vmem %s1, 48
    %v364 = vld [vmem:[%s363] sm:$0xff]
    %s365 = smul.u32 1, 2
    %s366 = smul.addr %s365, 8
    %s367 = scalar_lea.vmem [#allocation2], %s366
    %v368 = vld [vmem:[%s367] sm:$0xff]
    %v369 = vpack.c.bf16 %v308, %v308
    %371 = vrot.lane.b32.xlu0 %v369, 32
    %v372 = vpop.permute.xlu0 %371
    %v374 = vsel %vm224, %v372, 0
    %376 = vmatpush.bf16.msra.mxu0 0
    %377 = vmatpush.bf16.msra.mxu0 0
    %378 = vmatpush.bf16.msra.mxu0 0
    %379 = vmatpush.bf16.msra.mxu0 0
    %380 = vmatpush.bf16.msra.mxu0 0
    %381 = vmatpush.bf16.msra.mxu0 0
    %382 = vmatpush.bf16.msra.mxu0 %v221
    %383 = vmatpush.bf16.msra.mxu0 %v220
    %384 = vmatmul.bf16.gmra.mxu0 %v374
    %v385 = vpop.f32.mrf.mxu0
    %v386 = vadd.f32 0.0, %v385
    %v387 = vpop.f32.mrf.mxu0
    %388 = vdwg.mxu0
    %v389 = vadd.f32 %v368, %v386
    %s390 = smul.u32 6, 2
    %s391 = smul.addr %s390, 8
    %s392 = scalar_lea.vmem [#allocation2], %s391
    %v393 = vld [vmem:[%s392 + $0x8] sm:$0xff]
    %v394 = vpack.c.bf16 %v351, %v351
    %396 = vrot.lane.b32.xlu0 %v394, 32
    %v397 = vpop.permute.xlu0 %396
    %v399 = vsel %vm224, %v397, 0
    %401 = vmatpush.bf16.msra.mxu0 0
    %402 = vmatpush.bf16.msra.mxu0 0
    %403 = vmatpush.bf16.msra.mxu0 0
    %404 = vmatpush.bf16.msra.mxu0 0
    %405 = vmatpush.bf16.msra.mxu0 0
    %406 = vmatpush.bf16.msra.mxu0 0
    %407 = vmatpush.bf16.msra.mxu0 %v255
    %408 = vmatpush.bf16.msra.mxu0 %v254
    %409 = vmatmul.bf16.gmra.mxu0 %v399
    %v410 = vpop.f32.mrf.mxu0
    %v411 = vadd.f32 0.0, %v410
    %v412 = vpop.f32.mrf.mxu0
    %413 = vdwg.mxu0
    %v414 = vadd.f32 %v393, %v411
    %v415 = vxor.u32 %v389, 2147483648
    %v416 = vmul.f32 %v415, 1.442695
    %v417 = vpow.pop %v416
    %v418 = vadd.f32 %v417, 1.0
    %v419 = vrcp.pop %v418
    %v420 = vmul.f32 %v418, %v419
    %v421 = vsub.f32 1.0, %v420
    %v422 = vmul.f32 %v419, %v421
    %v423 = vadd.f32 %v419, %v422
    %vm424 = vweird.f32 %v418
    %vm425 = vweird.f32 %v419
    %vm426 = vmor %vm424, %vm425
    %v427 = vsel %vm426, %v419, %v423
    %v428 = vand.u32 2147483647, %v418
    %vm429 = vcmp.eq.f32.partialorder %v428, 8.507059e+37
    %v430 = vand.u32 %v418, 2147483648
    %v431 = vor.u32 1.1754944e-38, %v430
    %v432 = vsel %vm429, %v431, %v427
    %v433 = vmul.f32 1.0, %v432
    %v434 = vtanh.pop %v389
    %v435 = vmul.f32 %v433, %v302
    %437 = vrot.lane.b32.xlu0 %v434, 64
    %v438 = vpop.permute.xlu0 %437
    %v440 = vmul.f32 %v433, %v438
    %442 = vrot.lane.b32.xlu0 %v440, 32
    %v443 = vpop.permute.xlu0 %442
    %v445 = vadd.f32 %v435, %v443
    %v446 = vtanh.pop %v445
    %448 = vrot.lane.b32.xlu0 %v446, 64
    %v449 = vpop.permute.xlu0 %448
    %v451 = vmul.f32 %v433, %v449
    %v452 = vxor.u32 %v414, 2147483648
    %v453 = vmul.f32 %v452, 1.442695
    %v454 = vpow.pop %v453
    %v455 = vadd.f32 %v454, 1.0
    %v456 = vrcp.pop %v455
    %v457 = vmul.f32 %v455, %v456
    %v458 = vsub.f32 1.0, %v457
    %v459 = vmul.f32 %v456, %v458
    %v460 = vadd.f32 %v456, %v459
    %vm461 = vweird.f32 %v455
    %vm462 = vweird.f32 %v456
    %vm463 = vmor %vm461, %vm462
    %v464 = vsel %vm463, %v456, %v460
    %v465 = vand.u32 2147483647, %v455
    %vm466 = vcmp.eq.f32.partialorder %v465, 8.507059e+37
    %v467 = vand.u32 %v455, 2147483648
    %v468 = vor.u32 1.1754944e-38, %v467
    %v469 = vsel %vm466, %v468, %v464
    %v470 = vmul.f32 1.0, %v469
    %v471 = vtanh.pop %v414
    %v472 = vmul.f32 %v470, %v352
    %474 = vrot.lane.b32.xlu0 %v471, 64
    %v475 = vpop.permute.xlu0 %474
    %v477 = vmul.f32 %v470, %v475
    %479 = vrot.lane.b32.xlu0 %v477, 32
    %v480 = vpop.permute.xlu0 %479
    %v482 = vadd.f32 %v472, %v480
    %v483 = vtanh.pop %v482
    %485 = vrot.lane.b32.xlu0 %v483, 64
    %v486 = vpop.permute.xlu0 %485
    %v488 = vmul.f32 %v470, %v486
    %490 = vset.pattern.permute.xlu0 0
    %491 = vperm.xlu0 %490, %v364
    %v492 = vpop.permute.xlu0 %491
    %v494 = vmul.f32 %v488, %v492
    %v495 = vmul.f32 %v482, %v492
    %497 = vset.pattern.permute.xlu0 0
    %498 = vperm.xlu0 %497, %v362
    %v499 = vpop.permute.xlu0 %498
    %v501 = vmul.f32 %v451, %v499
    %v502 = vadd.f32 %v359, %v501
    %v503 = vadd.f32 %v360, %v494
    %s504 = scalar_lea.vmem %s1, 16
    %v505 = vld [vmem:[%s504] sm:$0xff]
    %s506 = scalar_lea.vmem %s1, 40
    %v507 = vld [vmem:[%s506] sm:$0xff]
    %s508 = smul.u32 2, 2
    %s509 = smul.addr %s508, 8
    %s510 = scalar_lea.vmem [#allocation2], %s509
    %v511 = vld [vmem:[%s510] sm:$0xff]
    %v512 = vpack.c.bf16 %v451, %v451
    %514 = vrot.lane.b32.xlu0 %v512, 32
    %v515 = vpop.permute.xlu0 %514
    %v517 = vsel %vm224, %v515, 0
    %519 = vmatpush.bf16.msra.mxu0 0
    %520 = vmatpush.bf16.msra.mxu0 0
    %521 = vmatpush.bf16.msra.mxu0 0
    %522 = vmatpush.bf16.msra.mxu0 0
    %523 = vmatpush.bf16.msra.mxu0 0
    %524 = vmatpush.bf16.msra.mxu0 0
    %525 = vmatpush.bf16.msra.mxu0 %v221
    %526 = vmatpush.bf16.msra.mxu0 %v220
    %527 = vmatmul.bf16.gmra.mxu0 %v517
    %v528 = vpop.f32.mrf.mxu0
    %v529 = vadd.f32 0.0, %v528
    %v530 = vpop.f32.mrf.mxu0
    %531 = vdwg.mxu0
    %v532 = vadd.f32 %v511, %v529
    %s533 = smul.u32 5, 2
    %s534 = smul.addr %s533, 8
    %s535 = scalar_lea.vmem [#allocation2], %s534
    %v536 = vld [vmem:[%s535 + $0x8] sm:$0xff]
    %v537 = vpack.c.bf16 %v494, %v494
    %539 = vrot.lane.b32.xlu0 %v537, 32
    %v540 = vpop.permute.xlu0 %539
    %v542 = vsel %vm224, %v540, 0
    %544 = vmatpush.bf16.msra.mxu0 0
    %545 = vmatpush.bf16.msra.mxu0 0
    %546 = vmatpush.bf16.msra.mxu0 0
    %547 = vmatpush.bf16.msra.mxu0 0
    %548 = vmatpush.bf16.msra.mxu0 0
    %549 = vmatpush.bf16.msra.mxu0 0
    %550 = vmatpush.bf16.msra.mxu0 %v255
    %551 = vmatpush.bf16.msra.mxu0 %v254
    %552 = vmatmul.bf16.gmra.mxu0 %v542
    %v553 = vpop.f32.mrf.mxu0
    %v554 = vadd.f32 0.0, %v553
    %v555 = vpop.f32.mrf.mxu0
    %556 = vdwg.mxu0
    %v557 = vadd.f32 %v536, %v554
    %v558 = vxor.u32 %v532, 2147483648
    %v559 = vmul.f32 %v558, 1.442695
    %v560 = vpow.pop %v559
    %v561 = vadd.f32 %v560, 1.0
    %v562 = vrcp.pop %v561
    %v563 = vmul.f32 %v561, %v562
    %v564 = vsub.f32 1.0, %v563
    %v565 = vmul.f32 %v562, %v564
    %v566 = vadd.f32 %v562, %v565
    %vm567 = vweird.f32 %v561
    %vm568 = vweird.f32 %v562
    %vm569 = vmor %vm567, %vm568
    %v570 = vsel %vm569, %v562, %v566
    %v571 = vand.u32 2147483647, %v561
    %vm572 = vcmp.eq.f32.partialorder %v571, 8.507059e+37
    %v573 = vand.u32 %v561, 2147483648
    %v574 = vor.u32 1.1754944e-38, %v573
    %v575 = vsel %vm572, %v574, %v570
    %v576 = vmul.f32 1.0, %v575
    %v577 = vtanh.pop %v532
    %v578 = vmul.f32 %v576, %v445
    %580 = vrot.lane.b32.xlu0 %v577, 64
    %v581 = vpop.permute.xlu0 %580
    %v583 = vmul.f32 %v576, %v581
    %585 = vrot.lane.b32.xlu0 %v583, 32
    %v586 = vpop.permute.xlu0 %585
    %v588 = vadd.f32 %v578, %v586
    %v589 = vtanh.pop %v588
    %591 = vrot.lane.b32.xlu0 %v589, 64
    %v592 = vpop.permute.xlu0 %591
    %v594 = vmul.f32 %v576, %v592
    %v595 = vxor.u32 %v557, 2147483648
    %v596 = vmul.f32 %v595, 1.442695
    %v597 = vpow.pop %v596
    %v598 = vadd.f32 %v597, 1.0
    %v599 = vrcp.pop %v598
    %v600 = vmul.f32 %v598, %v599
    %v601 = vsub.f32 1.0, %v600
    %v602 = vmul.f32 %v599, %v601
    %v603 = vadd.f32 %v599, %v602
    %vm604 = vweird.f32 %v598
    %vm605 = vweird.f32 %v599
    %vm606 = vmor %vm604, %vm605
    %v607 = vsel %vm606, %v599, %v603
    %v608 = vand.u32 2147483647, %v598
    %vm609 = vcmp.eq.f32.partialorder %v608, 8.507059e+37
    %v610 = vand.u32 %v598, 2147483648
    %v611 = vor.u32 1.1754944e-38, %v610
    %v612 = vsel %vm609, %v611, %v607
    %v613 = vmul.f32 1.0, %v612
    %v614 = vtanh.pop %v557
    %v615 = vmul.f32 %v613, %v495
    %617 = vrot.lane.b32.xlu0 %v614, 64
    %v618 = vpop.permute.xlu0 %617
    %v620 = vmul.f32 %v613, %v618
    %622 = vrot.lane.b32.xlu0 %v620, 32
    %v623 = vpop.permute.xlu0 %622
    %v625 = vadd.f32 %v615, %v623
    %v626 = vtanh.pop %v625
    %628 = vrot.lane.b32.xlu0 %v626, 64
    %v629 = vpop.permute.xlu0 %628
    %v631 = vmul.f32 %v613, %v629
    %633 = vset.pattern.permute.xlu0 0
    %634 = vperm.xlu0 %633, %v507
    %v635 = vpop.permute.xlu0 %634
    %v637 = vmul.f32 %v631, %v635
    %v638 = vmul.f32 %v625, %v635
    %640 = vset.pattern.permute.xlu0 0
    %641 = vperm.xlu0 %640, %v505
    %v642 = vpop.permute.xlu0 %641
    %v644 = vmul.f32 %v594, %v642
    %v645 = vadd.f32 %v502, %v644
    %v646 = vadd.f32 %v503, %v637
    %s647 = scalar_lea.vmem %s1, 24
    %v648 = vld [vmem:[%s647] sm:$0xff]
    %s649 = scalar_lea.vmem %s1, 32
    %v650 = vld [vmem:[%s649] sm:$0xff]
    %s651 = smul.u32 3, 2
    %s652 = smul.addr %s651, 8
    %s653 = scalar_lea.vmem [#allocation2], %s652
    %v654 = vld [vmem:[%s653] sm:$0xff]
    %v655 = vpack.c.bf16 %v594, %v594
    %657 = vrot.lane.b32.xlu0 %v655, 32
    %v658 = vpop.permute.xlu0 %657
    %v660 = vsel %vm224, %v658, 0
    %662 = vmatpush.bf16.msra.mxu0 0
    %663 = vmatpush.bf16.msra.mxu0 0
    %664 = vmatpush.bf16.msra.mxu0 0
    %665 = vmatpush.bf16.msra.mxu0 0
    %666 = vmatpush.bf16.msra.mxu0 0
    %667 = vmatpush.bf16.msra.mxu0 0
    %668 = vmatpush.bf16.msra.mxu0 %v221
    %669 = vmatpush.bf16.msra.mxu0 %v220
    %670 = vmatmul.bf16.gmra.mxu0 %v660
    %v671 = vpop.f32.mrf.mxu0
    %v672 = vadd.f32 0.0, %v671
    %v673 = vpop.f32.mrf.mxu0
    %674 = vdwg.mxu0
    %v675 = vadd.f32 %v654, %v672
    %s676 = smul.u32 4, 2
    %s677 = smul.addr %s676, 8
    %s678 = scalar_lea.vmem [#allocation2], %s677
    %v679 = vld [vmem:[%s678 + $0x8] sm:$0xff]
    %v680 = vpack.c.bf16 %v637, %v637
    %682 = vrot.lane.b32.xlu0 %v680, 32
    %v683 = vpop.permute.xlu0 %682
    %v685 = vsel %vm224, %v683, 0
    %687 = vmatpush.bf16.msra.mxu0 0
    %688 = vmatpush.bf16.msra.mxu0 0
    %689 = vmatpush.bf16.msra.mxu0 0
    %690 = vmatpush.bf16.msra.mxu0 0
    %691 = vmatpush.bf16.msra.mxu0 0
    %692 = vmatpush.bf16.msra.mxu0 0
    %693 = vmatpush.bf16.msra.mxu0 %v255
    %694 = vmatpush.bf16.msra.mxu0 %v254
    %695 = vmatmul.bf16.gmra.mxu0 %v685
    %v696 = vpop.f32.mrf.mxu0
    %v697 = vadd.f32 0.0, %v696
    %v698 = vpop.f32.mrf.mxu0
    %699 = vdwg.mxu0
    %v700 = vadd.f32 %v679, %v697
    %v701 = vxor.u32 %v675, 2147483648
    %v702 = vmul.f32 %v701, 1.442695
    %v703 = vpow.pop %v702
    %v704 = vadd.f32 %v703, 1.0
    %v705 = vrcp.pop %v704
    %v706 = vmul.f32 %v704, %v705
    %v707 = vsub.f32 1.0, %v706
    %v708 = vmul.f32 %v705, %v707
    %v709 = vadd.f32 %v705, %v708
    %vm710 = vweird.f32 %v704
    %vm711 = vweird.f32 %v705
    %vm712 = vmor %vm710, %vm711
    %v713 = vsel %vm712, %v705, %v709
    %v714 = vand.u32 2147483647, %v704
    %vm715 = vcmp.eq.f32.partialorder %v714, 8.507059e+37
    %v716 = vand.u32 %v704, 2147483648
    %v717 = vor.u32 1.1754944e-38, %v716
    %v718 = vsel %vm715, %v717, %v713
    %v719 = vmul.f32 1.0, %v718
    %v720 = vtanh.pop %v675
    %v721 = vmul.f32 %v719, %v588
    %723 = vrot.lane.b32.xlu0 %v720, 64
    %v724 = vpop.permute.xlu0 %723
    %v726 = vmul.f32 %v719, %v724
    %728 = vrot.lane.b32.xlu0 %v726, 32
    %v729 = vpop.permute.xlu0 %728
    %v731 = vadd.f32 %v721, %v729
    %v732 = vtanh.pop %v731
    %734 = vrot.lane.b32.xlu0 %v732, 64
    %v735 = vpop.permute.xlu0 %734
    %v737 = vmul.f32 %v719, %v735
    %v738 = vxor.u32 %v700, 2147483648
    %v739 = vmul.f32 %v738, 1.442695
    %v740 = vpow.pop %v739
    %v741 = vadd.f32 %v740, 1.0
    %v742 = vrcp.pop %v741
    %v743 = vmul.f32 %v741, %v742
    %v744 = vsub.f32 1.0, %v743
    %v745 = vmul.f32 %v742, %v744
    %v746 = vadd.f32 %v742, %v745
    %vm747 = vweird.f32 %v741
    %vm748 = vweird.f32 %v742
    %vm749 = vmor %vm747, %vm748
    %v750 = vsel %vm749, %v742, %v746
    %v751 = vand.u32 2147483647, %v741
    %vm752 = vcmp.eq.f32.partialorder %v751, 8.507059e+37
    %v753 = vand.u32 %v741, 2147483648
    %v754 = vor.u32 1.1754944e-38, %v753
    %v755 = vsel %vm752, %v754, %v750
    %v756 = vmul.f32 1.0, %v755
    %v757 = vtanh.pop %v700
    %v758 = vmul.f32 %v756, %v638
    %760 = vrot.lane.b32.xlu0 %v757, 64
    %v761 = vpop.permute.xlu0 %760
    %v763 = vmul.f32 %v756, %v761
    %765 = vrot.lane.b32.xlu0 %v763, 32
    %v766 = vpop.permute.xlu0 %765
    %v768 = vadd.f32 %v758, %v766
    %v769 = vtanh.pop %v768
    %771 = vrot.lane.b32.xlu0 %v769, 64
    %v772 = vpop.permute.xlu0 %771
    %v774 = vmul.f32 %v756, %v772
    %776 = vset.pattern.permute.xlu0 0
    %777 = vperm.xlu0 %776, %v650
    %v778 = vpop.permute.xlu0 %777
    %v780 = vmul.f32 %v774, %v778
    %v781 = vmul.f32 %v768, %v778
    %783 = vset.pattern.permute.xlu0 0
    %784 = vperm.xlu0 %783, %v648
    %v785 = vpop.permute.xlu0 %784
    %v787 = vmul.f32 %v737, %v785
    %v788 = vadd.f32 %v645, %v787
    %v789 = vadd.f32 %v646, %v780
    %v790 = vld [vmem:[%s678] sm:$0xff]
    %v791 = vpack.c.bf16 %v737, %v737
    %793 = vrot.lane.b32.xlu0 %v791, 32
    %v794 = vpop.permute.xlu0 %793
    %v796 = vsel %vm224, %v794, 0
    %798 = vmatpush.bf16.msra.mxu0 0
    %799 = vmatpush.bf16.msra.mxu0 0
    %800 = vmatpush.bf16.msra.mxu0 0
    %801 = vmatpush.bf16.msra.mxu0 0
    %802 = vmatpush.bf16.msra.mxu0 0
    %803 = vmatpush.bf16.msra.mxu0 0
    %804 = vmatpush.bf16.msra.mxu0 %v221
    %805 = vmatpush.bf16.msra.mxu0 %v220
    %806 = vmatmul.bf16.gmra.mxu0 %v796
    %v807 = vpop.f32.mrf.mxu0
    %v808 = vadd.f32 0.0, %v807
    %v809 = vpop.f32.mrf.mxu0
    %810 = vdwg.mxu0
    %v811 = vadd.f32 %v790, %v808
    %v812 = vld [vmem:[%s653 + $0x8] sm:$0xff]
    %v813 = vpack.c.bf16 %v780, %v780
    %815 = vrot.lane.b32.xlu0 %v813, 32
    %v816 = vpop.permute.xlu0 %815
    %v818 = vsel %vm224, %v816, 0
    %820 = vmatpush.bf16.msra.mxu0 0
    %821 = vmatpush.bf16.msra.mxu0 0
    %822 = vmatpush.bf16.msra.mxu0 0
    %823 = vmatpush.bf16.msra.mxu0 0
    %824 = vmatpush.bf16.msra.mxu0 0
    %825 = vmatpush.bf16.msra.mxu0 0
    %826 = vmatpush.bf16.msra.mxu0 %v255
    %827 = vmatpush.bf16.msra.mxu0 %v254
    %828 = vmatmul.bf16.gmra.mxu0 %v818
    %v829 = vpop.f32.mrf.mxu0
    %v830 = vadd.f32 0.0, %v829
    %v831 = vpop.f32.mrf.mxu0
    %832 = vdwg.mxu0
    %v833 = vadd.f32 %v812, %v830
    %v834 = vxor.u32 %v811, 2147483648
    %v835 = vmul.f32 %v834, 1.442695
    %v836 = vpow.pop %v835
    %v837 = vadd.f32 %v836, 1.0
    %v838 = vrcp.pop %v837
    %v839 = vmul.f32 %v837, %v838
    %v840 = vsub.f32 1.0, %v839
    %v841 = vmul.f32 %v838, %v840
    %v842 = vadd.f32 %v838, %v841
    %vm843 = vweird.f32 %v837
    %vm844 = vweird.f32 %v838
    %vm845 = vmor %vm843, %vm844
    %v846 = vsel %vm845, %v838, %v842
    %v847 = vand.u32 2147483647, %v837
    %vm848 = vcmp.eq.f32.partialorder %v847, 8.507059e+37
    %v849 = vand.u32 %v837, 2147483648
    %v850 = vor.u32 1.1754944e-38, %v849
    %v851 = vsel %vm848, %v850, %v846
    %v852 = vmul.f32 1.0, %v851
    %v853 = vtanh.pop %v811
    %v854 = vmul.f32 %v852, %v731
    %856 = vrot.lane.b32.xlu0 %v853, 64
    %v857 = vpop.permute.xlu0 %856
    %v859 = vmul.f32 %v852, %v857
    %861 = vrot.lane.b32.xlu0 %v859, 32
    %v862 = vpop.permute.xlu0 %861
    %v864 = vadd.f32 %v854, %v862
    %v865 = vtanh.pop %v864
    %867 = vrot.lane.b32.xlu0 %v865, 64
    %v868 = vpop.permute.xlu0 %867
    %v870 = vmul.f32 %v852, %v868
    %v871 = vxor.u32 %v833, 2147483648
    %v872 = vmul.f32 %v871, 1.442695
    %v873 = vpow.pop %v872
    %v874 = vadd.f32 %v873, 1.0
    %v875 = vrcp.pop %v874
    %v876 = vmul.f32 %v874, %v875
    %v877 = vsub.f32 1.0, %v876
    %v878 = vmul.f32 %v875, %v877
    %v879 = vadd.f32 %v875, %v878
    %vm880 = vweird.f32 %v874
    %vm881 = vweird.f32 %v875
    %vm882 = vmor %vm880, %vm881
    %v883 = vsel %vm882, %v875, %v879
    %v884 = vand.u32 2147483647, %v874
    %vm885 = vcmp.eq.f32.partialorder %v884, 8.507059e+37
    %v886 = vand.u32 %v874, 2147483648
    %v887 = vor.u32 1.1754944e-38, %v886
    %v888 = vsel %vm885, %v887, %v883
    %v889 = vmul.f32 1.0, %v888
    %v890 = vtanh.pop %v833
    %v891 = vmul.f32 %v889, %v781
    %893 = vrot.lane.b32.xlu0 %v890, 64
    %v894 = vpop.permute.xlu0 %893
    %v896 = vmul.f32 %v889, %v894
    %898 = vrot.lane.b32.xlu0 %v896, 32
    %v899 = vpop.permute.xlu0 %898
    %v901 = vadd.f32 %v891, %v899
    %v902 = vtanh.pop %v901
    %904 = vrot.lane.b32.xlu0 %v902, 64
    %v905 = vpop.permute.xlu0 %904
    %v907 = vmul.f32 %v889, %v905
    %v908 = vmul.f32 %v907, %v785
    %v909 = vmul.f32 %v901, %v785
    %v910 = vmul.f32 %v870, %v778
    %v911 = vadd.f32 %v788, %v910
    %v912 = vadd.f32 %v789, %v908
    %v913 = vld [vmem:[%s535] sm:$0xff]
    %v914 = vpack.c.bf16 %v870, %v870
    %916 = vrot.lane.b32.xlu0 %v914, 32
    %v917 = vpop.permute.xlu0 %916
    %v919 = vsel %vm224, %v917, 0
    %921 = vmatpush.bf16.msra.mxu0 0
    %922 = vmatpush.bf16.msra.mxu0 0
    %923 = vmatpush.bf16.msra.mxu0 0
    %924 = vmatpush.bf16.msra.mxu0 0
    %925 = vmatpush.bf16.msra.mxu0 0
    %926 = vmatpush.bf16.msra.mxu0 0
    %927 = vmatpush.bf16.msra.mxu0 %v221
    %928 = vmatpush.bf16.msra.mxu0 %v220
    %929 = vmatmul.bf16.gmra.mxu0 %v919
    %v930 = vpop.f32.mrf.mxu0
    %v931 = vadd.f32 0.0, %v930
    %v932 = vpop.f32.mrf.mxu0
    %933 = vdwg.mxu0
    %v934 = vadd.f32 %v913, %v931
    %v935 = vld [vmem:[%s510 + $0x8] sm:$0xff]
    %v936 = vpack.c.bf16 %v908, %v908
    %938 = vrot.lane.b32.xlu0 %v936, 32
    %v939 = vpop.permute.xlu0 %938
    %v941 = vsel %vm224, %v939, 0
    %943 = vmatpush.bf16.msra.mxu0 0
    %944 = vmatpush.bf16.msra.mxu0 0
    %945 = vmatpush.bf16.msra.mxu0 0
    %946 = vmatpush.bf16.msra.mxu0 0
    %947 = vmatpush.bf16.msra.mxu0 0
    %948 = vmatpush.bf16.msra.mxu0 0
    %949 = vmatpush.bf16.msra.mxu0 %v255
    %950 = vmatpush.bf16.msra.mxu0 %v254
    %951 = vmatmul.bf16.gmra.mxu0 %v941
    %v952 = vpop.f32.mrf.mxu0
    %v953 = vadd.f32 0.0, %v952
    %v954 = vpop.f32.mrf.mxu0
    %955 = vdwg.mxu0
    %v956 = vadd.f32 %v935, %v953
    %v957 = vxor.u32 %v934, 2147483648
    %v958 = vmul.f32 %v957, 1.442695
    %v959 = vpow.pop %v958
    %v960 = vadd.f32 %v959, 1.0
    %v961 = vrcp.pop %v960
    %v962 = vmul.f32 %v960, %v961
    %v963 = vsub.f32 1.0, %v962
    %v964 = vmul.f32 %v961, %v963
    %v965 = vadd.f32 %v961, %v964
    %vm966 = vweird.f32 %v960
    %vm967 = vweird.f32 %v961
    %vm968 = vmor %vm966, %vm967
    %v969 = vsel %vm968, %v961, %v965
    %v970 = vand.u32 2147483647, %v960
    %vm971 = vcmp.eq.f32.partialorder %v970, 8.507059e+37
    %v972 = vand.u32 %v960, 2147483648
    %v973 = vor.u32 1.1754944e-38, %v972
    %v974 = vsel %vm971, %v973, %v969
    %v975 = vmul.f32 1.0, %v974
    %v976 = vtanh.pop %v934
    %v977 = vmul.f32 %v975, %v864
    %979 = vrot.lane.b32.xlu0 %v976, 64
    %v980 = vpop.permute.xlu0 %979
    %v982 = vmul.f32 %v975, %v980
    %984 = vrot.lane.b32.xlu0 %v982, 32
    %v985 = vpop.permute.xlu0 %984
    %v987 = vadd.f32 %v977, %v985
    %v988 = vtanh.pop %v987
    %990 = vrot.lane.b32.xlu0 %v988, 64
    %v991 = vpop.permute.xlu0 %990
    %v993 = vmul.f32 %v975, %v991
    %v994 = vxor.u32 %v956, 2147483648
    %v995 = vmul.f32 %v994, 1.442695
    %v996 = vpow.pop %v995
    %v997 = vadd.f32 %v996, 1.0
    %v998 = vrcp.pop %v997
    %v999 = vmul.f32 %v997, %v998
    %v1000 = vsub.f32 1.0, %v999
    %v1001 = vmul.f32 %v998, %v1000
    %v1002 = vadd.f32 %v998, %v1001
    %vm1003 = vweird.f32 %v997
    %vm1004 = vweird.f32 %v998
    %vm1005 = vmor %vm1003, %vm1004
    %v1006 = vsel %vm1005, %v998, %v1002
    %v1007 = vand.u32 2147483647, %v997
    %vm1008 = vcmp.eq.f32.partialorder %v1007, 8.507059e+37
    %v1009 = vand.u32 %v997, 2147483648
    %v1010 = vor.u32 1.1754944e-38, %v1009
    %v1011 = vsel %vm1008, %v1010, %v1006
    %v1012 = vmul.f32 1.0, %v1011
    %v1013 = vtanh.pop %v956
    %v1014 = vmul.f32 %v1012, %v909
    %1016 = vrot.lane.b32.xlu0 %v1013, 64
    %v1017 = vpop.permute.xlu0 %1016
    %v1019 = vmul.f32 %v1012, %v1017
    %1021 = vrot.lane.b32.xlu0 %v1019, 32
    %v1022 = vpop.permute.xlu0 %1021
    %v1024 = vadd.f32 %v1014, %v1022
    %v1025 = vtanh.pop %v1024
    %1027 = vrot.lane.b32.xlu0 %v1025, 64
    %v1028 = vpop.permute.xlu0 %1027
    %v1030 = vmul.f32 %v1012, %v1028
    %v1031 = vmul.f32 %v1030, %v642
    %v1032 = vmul.f32 %v1024, %v642
    %v1033 = vmul.f32 %v993, %v635
    %v1034 = vadd.f32 %v911, %v1033
    %v1035 = vadd.f32 %v912, %v1031
    %v1036 = vld [vmem:[%s392] sm:$0xff]
    %v1037 = vpack.c.bf16 %v993, %v993
    %1039 = vrot.lane.b32.xlu0 %v1037, 32
    %v1040 = vpop.permute.xlu0 %1039
    %v1042 = vsel %vm224, %v1040, 0
    %1044 = vmatpush.bf16.msra.mxu0 0
    %1045 = vmatpush.bf16.msra.mxu0 0
    %1046 = vmatpush.bf16.msra.mxu0 0
    %1047 = vmatpush.bf16.msra.mxu0 0
    %1048 = vmatpush.bf16.msra.mxu0 0
    %1049 = vmatpush.bf16.msra.mxu0 0
    %1050 = vmatpush.bf16.msra.mxu0 %v221
    %1051 = vmatpush.bf16.msra.mxu0 %v220
    %1052 = vmatmul.bf16.gmra.mxu0 %v1042
    %v1053 = vpop.f32.mrf.mxu0
    %v1054 = vadd.f32 0.0, %v1053
    %v1055 = vpop.f32.mrf.mxu0
    %1056 = vdwg.mxu0
    %v1057 = vadd.f32 %v1036, %v1054
    %v1058 = vld [vmem:[%s367 + $0x8] sm:$0xff]
    %v1059 = vpack.c.bf16 %v1031, %v1031
    %1061 = vrot.lane.b32.xlu0 %v1059, 32
    %v1062 = vpop.permute.xlu0 %1061
    %v1064 = vsel %vm224, %v1062, 0
    %1066 = vmatpush.bf16.msra.mxu0 0
    %1067 = vmatpush.bf16.msra.mxu0 0
    %1068 = vmatpush.bf16.msra.mxu0 0
    %1069 = vmatpush.bf16.msra.mxu0 0
    %1070 = vmatpush.bf16.msra.mxu0 0
    %1071 = vmatpush.bf16.msra.mxu0 0
    %1072 = vmatpush.bf16.msra.mxu0 %v255
    %1073 = vmatpush.bf16.msra.mxu0 %v254
    %1074 = vmatmul.bf16.gmra.mxu0 %v1064
    %v1075 = vpop.f32.mrf.mxu0
    %v1076 = vadd.f32 0.0, %v1075
    %v1077 = vpop.f32.mrf.mxu0
    %1078 = vdwg.mxu0
    %v1079 = vadd.f32 %v1058, %v1076
    %v1080 = vxor.u32 %v1057, 2147483648
    %v1081 = vmul.f32 %v1080, 1.442695
    %v1082 = vpow.pop %v1081
    %v1083 = vadd.f32 %v1082, 1.0
    %v1084 = vrcp.pop %v1083
    %v1085 = vmul.f32 %v1083, %v1084
    %v1086 = vsub.f32 1.0, %v1085
    %v1087 = vmul.f32 %v1084, %v1086
    %v1088 = vadd.f32 %v1084, %v1087
    %vm1089 = vweird.f32 %v1083
    %vm1090 = vweird.f32 %v1084
    %vm1091 = vmor %vm1089, %vm1090
    %v1092 = vsel %vm1091, %v1084, %v1088
    %v1093 = vand.u32 2147483647, %v1083
    %vm1094 = vcmp.eq.f32.partialorder %v1093, 8.507059e+37
    %v1095 = vand.u32 %v1083, 2147483648
    %v1096 = vor.u32 1.1754944e-38, %v1095
    %v1097 = vsel %vm1094, %v1096, %v1092
    %v1098 = vmul.f32 1.0, %v1097
    %v1099 = vtanh.pop %v1057
    %v1100 = vmul.f32 %v1098, %v987
    %1102 = vrot.lane.b32.xlu0 %v1099, 64
    %v1103 = vpop.permute.xlu0 %1102
    %v1105 = vmul.f32 %v1098, %v1103
    %1107 = vrot.lane.b32.xlu0 %v1105, 32
    %v1108 = vpop.permute.xlu0 %1107
    %v1110 = vadd.f32 %v1100, %v1108
    %v1111 = vtanh.pop %v1110
    %1113 = vrot.lane.b32.xlu0 %v1111, 64
    %v1114 = vpop.permute.xlu0 %1113
    %v1116 = vmul.f32 %v1098, %v1114
    %v1117 = vxor.u32 %v1079, 2147483648
    %v1118 = vmul.f32 %v1117, 1.442695
    %v1119 = vpow.pop %v1118
    %v1120 = vadd.f32 %v1119, 1.0
    %v1121 = vrcp.pop %v1120
    %v1122 = vmul.f32 %v1120, %v1121
    %v1123 = vsub.f32 1.0, %v1122
    %v1124 = vmul.f32 %v1121, %v1123
    %v1125 = vadd.f32 %v1121, %v1124
    %vm1126 = vweird.f32 %v1120
    %vm1127 = vweird.f32 %v1121
    %vm1128 = vmor %vm1126, %vm1127
    %v1129 = vsel %vm1128, %v1121, %v1125
    %v1130 = vand.u32 2147483647, %v1120
    %vm1131 = vcmp.eq.f32.partialorder %v1130, 8.507059e+37
    %v1132 = vand.u32 %v1120, 2147483648
    %v1133 = vor.u32 1.1754944e-38, %v1132
    %v1134 = vsel %vm1131, %v1133, %v1129
    %v1135 = vmul.f32 1.0, %v1134
    %v1136 = vtanh.pop %v1079
    %v1137 = vmul.f32 %v1135, %v1032
    %1139 = vrot.lane.b32.xlu0 %v1136, 64
    %v1140 = vpop.permute.xlu0 %1139
    %v1142 = vmul.f32 %v1135, %v1140
    %1144 = vrot.lane.b32.xlu0 %v1142, 32
    %v1145 = vpop.permute.xlu0 %1144
    %v1147 = vadd.f32 %v1137, %v1145
    %v1148 = vtanh.pop %v1147
    %1150 = vrot.lane.b32.xlu0 %v1148, 64
    %v1151 = vpop.permute.xlu0 %1150
    %v1153 = vmul.f32 %v1135, %v1151
    %v1154 = vmul.f32 %v1153, %v499
    %v1155 = vmul.f32 %v1147, %v499
    %v1156 = vmul.f32 %v1116, %v492
    %v1157 = vadd.f32 %v1034, %v1156
    %v1158 = vadd.f32 %v1035, %v1154
    %v1159 = vld [vmem:[%s244] sm:$0xff]
    %v1160 = vpack.c.bf16 %v1116, %v1116
    %1162 = vrot.lane.b32.xlu0 %v1160, 32
    %v1163 = vpop.permute.xlu0 %1162
    %v1165 = vsel %vm224, %v1163, 0
    %1167 = vmatpush.bf16.msra.mxu0 0
    %1168 = vmatpush.bf16.msra.mxu0 0
    %1169 = vmatpush.bf16.msra.mxu0 0
    %1170 = vmatpush.bf16.msra.mxu0 0
    %1171 = vmatpush.bf16.msra.mxu0 0
    %1172 = vmatpush.bf16.msra.mxu0 0
    %1173 = vmatpush.bf16.msra.mxu0 %v221
    %1174 = vmatpush.bf16.msra.mxu0 %v220
    %1175 = vmatmul.bf16.gmra.mxu0 %v1165
    %v1176 = vpop.f32.mrf.mxu0
    %v1177 = vadd.f32 0.0, %v1176
    %v1178 = vpop.f32.mrf.mxu0
    %1179 = vdwg.mxu0
    %v1180 = vadd.f32 %v1159, %v1177
    %v1181 = vld [vmem:[%s210 + $0x8] sm:$0xff]
    %v1182 = vpack.c.bf16 %v1154, %v1154
    %1184 = vrot.lane.b32.xlu0 %v1182, 32
    %v1185 = vpop.permute.xlu0 %1184
    %v1187 = vsel %vm224, %v1185, 0
    %1189 = vmatpush.bf16.msra.mxu0 0
    %1190 = vmatpush.bf16.msra.mxu0 0
    %1191 = vmatpush.bf16.msra.mxu0 0
    %1192 = vmatpush.bf16.msra.mxu0 0
    %1193 = vmatpush.bf16.msra.mxu0 0
    %1194 = vmatpush.bf16.msra.mxu0 0
    %1195 = vmatpush.bf16.msra.mxu0 %v255
    %1196 = vmatpush.bf16.msra.mxu0 %v254
    %1197 = vmatmul.bf16.gmra.mxu0 %v1187
    %v1198 = vpop.f32.mrf.mxu0
    %v1199 = vadd.f32 0.0, %v1198
    %v1200 = vpop.f32.mrf.mxu0
    %1201 = vdwg.mxu0
    %v1202 = vadd.f32 %v1181, %v1199
    %v1203 = vxor.u32 %v1180, 2147483648
    %v1204 = vmul.f32 %v1203, 1.442695
    %v1205 = vpow.pop %v1204
    %v1206 = vadd.f32 %v1205, 1.0
    %v1207 = vrcp.pop %v1206
    %v1208 = vmul.f32 %v1206, %v1207
    %v1209 = vsub.f32 1.0, %v1208
    %v1210 = vmul.f32 %v1207, %v1209
    %v1211 = vadd.f32 %v1207, %v1210
    %vm1212 = vweird.f32 %v1206
    %vm1213 = vweird.f32 %v1207
    %vm1214 = vmor %vm1212, %vm1213
    %v1215 = vsel %vm1214, %v1207, %v1211
    %v1216 = vand.u32 2147483647, %v1206
    %vm1217 = vcmp.eq.f32.partialorder %v1216, 8.507059e+37
    %v1218 = vand.u32 %v1206, 2147483648
    %v1219 = vor.u32 1.1754944e-38, %v1218
    %v1220 = vsel %vm1217, %v1219, %v1215
    %v1221 = vmul.f32 1.0, %v1220
    %v1222 = vtanh.pop %v1180
    %v1223 = vmul.f32 %v1221, %v1110
    %1225 = vrot.lane.b32.xlu0 %v1222, 64
    %v1226 = vpop.permute.xlu0 %1225
    %v1228 = vmul.f32 %v1221, %v1226
    %1230 = vrot.lane.b32.xlu0 %v1228, 32
    %v1231 = vpop.permute.xlu0 %1230
    %v1233 = vadd.f32 %v1223, %v1231
    %v1234 = vtanh.pop %v1233
    %1236 = vrot.lane.b32.xlu0 %v1234, 64
    %v1237 = vpop.permute.xlu0 %1236
    %v1239 = vmul.f32 %v1221, %v1237
    %v1240 = vxor.u32 %v1202, 2147483648
    %v1241 = vmul.f32 %v1240, 1.442695
    %v1242 = vpow.pop %v1241
    %v1243 = vadd.f32 %v1242, 1.0
    %v1244 = vrcp.pop %v1243
    %v1245 = vmul.f32 %v1243, %v1244
    %v1246 = vsub.f32 1.0, %v1245
    %v1247 = vmul.f32 %v1244, %v1246
    %v1248 = vadd.f32 %v1244, %v1247
    %vm1249 = vweird.f32 %v1243
    %vm1250 = vweird.f32 %v1244
    %vm1251 = vmor %vm1249, %vm1250
    %v1252 = vsel %vm1251, %v1244, %v1248
    %v1253 = vand.u32 2147483647, %v1243
    %vm1254 = vcmp.eq.f32.partialorder %v1253, 8.507059e+37
    %v1255 = vand.u32 %v1243, 2147483648
    %v1256 = vor.u32 1.1754944e-38, %v1255
    %v1257 = vsel %vm1254, %v1256, %v1252
    %v1258 = vmul.f32 1.0, %v1257
    %v1259 = vtanh.pop %v1202
    %v1260 = vmul.f32 %v1258, %v1155
    %1262 = vrot.lane.b32.xlu0 %v1259, 64
    %v1263 = vpop.permute.xlu0 %1262
    %v1265 = vmul.f32 %v1258, %v1263
    %1267 = vrot.lane.b32.xlu0 %v1265, 32
    %v1268 = vpop.permute.xlu0 %1267
    %v1270 = vadd.f32 %v1260, %v1268
    %v1271 = vtanh.pop %v1270
    %1273 = vrot.lane.b32.xlu0 %v1271, 64
    %v1274 = vpop.permute.xlu0 %1273
    %v1276 = vmul.f32 %v1258, %v1274
    %v1277 = vmul.f32 %v1276, %v356
    %v1278 = vmul.f32 %v1239, %v349
    %v1279 = vadd.f32 %v1157, %v1278
    %v1280 = vadd.f32 %v1158, %v1277
    %1282 = vrot.lane.b32.xlu0 %v1279, 32
    %v1283 = vpop.permute.xlu0 %1282
    %1286 = vrot.lane.b32.xlu0 %v1280, 64
    %v1287 = vpop.permute.xlu0 %1286
    %v1289 = vsel %vm224, %v1283, %v1287
    %1290 = vst.msk [vmem:[%s7] sm:$0xff] %vm109, %v1289
    // Predicated region
    $region26: #{bilstm_forward.4} parent=1 // pred_check
      _
    $region27: #{bilstm_forward.4} parent=1 // pred_check_branch
      %1292 = sbr.rel (0) target = $region29
    $region28: #{bilstm_forward.4} parent=1 // pred_region
      %1294 = vsyncadd [#allocation4], 0
      %s1296 = sshll.u32 [#allocation3], 4
      %s1297 = int_to_ptr.vmem [resolvable:$true] %s1296
      %s1298 = sshll.u32 %s6, 4
      %s1299 = int_to_ptr.hbm [resolvable:$true] %s1298
      %1301 = dma.vmem_to_hbm [thread:$0]  %s1297, 128, %s1299, [#allocation4]
    $region29: #{bilstm_forward.4} parent=1 // pred_fallthru
      _
    // Predicated region
    $region30: #{bilstm_forward.4} parent=1 // pred_check
      _
    $region31: #{bilstm_forward.4} parent=1 // pred_check_branch
      %1303 = sbr.rel (0) target = $region33
    $region32: #{bilstm_forward.4} parent=1 // pred_region
      _
    $region33: #{bilstm_forward.4} parent=1 // pred_fallthru
      _
    // Predicated region
    $region34: #{bilstm_forward.4} parent=1 // pred_check
      _
    $region35: #{bilstm_forward.4} parent=1 // pred_check_branch
      %1305 = sbr.rel (0) target = $region37
    $region36: #{bilstm_forward.4} parent=1 // pred_region
      %1307 = dma.done [#allocation4], 128
    $region37: #{bilstm_forward.4} parent=1 // pred_fallthru
      _
    // Predicated region
    $region38: #{bilstm_forward.4} parent=1 // pred_check
      _
    $region39: #{bilstm_forward.4} parent=1 // pred_check_branch
      %1309 = sbr.rel (0) target = $region41
    $region40: #{bilstm_forward.4} parent=1 // pred_region
      _
    $region41: #{bilstm_forward.4} parent=1 // pred_fallthru
      _
    %1310 = vsyncpa [#allocation4], 1

// kernel: bilstm_forward.3
$region0: #{bilstm_forward.3}
  #allocation0 [shape = 'u32[]', space=smem, size = 0x4, offset = 0x4, fixed_abs, tag = 'smem constant byte address 0x4 - core index']
  #allocation1 [shape = 'u32[72,128]{1,0:T(1,128)}', space=vmem, size = 0x9000, scoped, tag = 'internal scratch']
  #allocation2 [shape = 'f32[64,256]{1,0:T(8,128)}', space=vmem, size = 0x10000, scoped, tag = 'scratch operand']
  %s0 = inlined_call_operand.vmem [shape: bf16[64,32], index: 0, kind: input, shape index: {}]
  %s1 = inlined_call_operand.vmem [shape: f32[64,1], index: 1, kind: input, shape index: {}]
  %s2 = inlined_call_operand.vmem [shape: bf16[32,256], index: 2, kind: input, shape index: {}]
  %s3 = inlined_call_operand.vmem [shape: bf16[32,128], index: 3, kind: input, shape index: {}]
  %s4 = inlined_call_operand.vmem [shape: bf16[32,128], index: 4, kind: input, shape index: {}]
  %s5 = inlined_call_operand.vmem [shape: f32[1,256], index: 5, kind: input, shape index: {}]
  %s6 = inlined_call_operand.vmem [shape: f32[64,64], index: 6, kind: output, shape index: {0}]
  %s7 = inlined_call_operand.hbm [shape: f32[8,64], index: 7, kind: output, shape index: {1}]
  %8 = xla_tuple %s6, %s7
  %s9 = sld [smem:[#allocation0]]
  $region42: #{bilstm_forward.3} parent=0
    _
  %s11 = ssub.s32 1, %s9
  %s12 = scalar_select 0, %s11, %s9
  $region1: #{bilstm_forward.3} parent=0
    #allocation3 [shape = 'u8[4096]{0}', space=vmem, size = 0x1000, scoped, tag = 'output window, operand 1, single buffered']
    #allocation4 [shape = 's32[1]{0}', space=sflag, size = 0x4, scoped, tag = 'scoped memory for bilstm_forward.3']
    %13 = vsyncpa [#allocation4], 0
    // Predicated region
    $region2: #{bilstm_forward.3} parent=1 // pred_check
      _
    $region3: #{bilstm_forward.3} parent=1 // pred_check_branch
      %15 = sbr.rel (0) target = $region5
    $region4: #{bilstm_forward.3} parent=1 // pred_region
      _
    $region5: #{bilstm_forward.3} parent=1 // pred_fallthru
      _
    // Predicated region
    $region6: #{bilstm_forward.3} parent=1 // pred_check
      _
    $region7: #{bilstm_forward.3} parent=1 // pred_check_branch
      %17 = sbr.rel (0) target = $region9
    $region8: #{bilstm_forward.3} parent=1 // pred_region
      _
    $region9: #{bilstm_forward.3} parent=1 // pred_fallthru
      _
    // Predicated region
    $region10: #{bilstm_forward.3} parent=1 // pred_check
      _
    $region11: #{bilstm_forward.3} parent=1 // pred_check_branch
      %19 = sbr.rel (0) target = $region13
    $region12: #{bilstm_forward.3} parent=1 // pred_region
      _
    $region13: #{bilstm_forward.3} parent=1 // pred_fallthru
      _
    // Predicated region
    $region14: #{bilstm_forward.3} parent=1 // pred_check
      _
    $region15: #{bilstm_forward.3} parent=1 // pred_check_branch
      %21 = sbr.rel (0) target = $region17
    $region16: #{bilstm_forward.3} parent=1 // pred_region
      _
    $region17: #{bilstm_forward.3} parent=1 // pred_fallthru
      _
    // Predicated region
    $region18: #{bilstm_forward.3} parent=1 // pred_check
      _
    $region19: #{bilstm_forward.3} parent=1 // pred_check_branch
      %23 = sbr.rel (0) target = $region21
    $region20: #{bilstm_forward.3} parent=1 // pred_region
      _
    $region21: #{bilstm_forward.3} parent=1 // pred_fallthru
      _
    // Predicated region
    $region22: #{bilstm_forward.3} parent=1 // pred_check
      _
    $region23: #{bilstm_forward.3} parent=1 // pred_check_branch
      %25 = sbr.rel (0) target = $region25
    $region24: #{bilstm_forward.3} parent=1 // pred_region
      _
    $region25: #{bilstm_forward.3} parent=1 // pred_fallthru
      _
    %v27 = vld [vmem:[%s0] sm:$0xf]
    %v28 = vld [vmem:[%s0 + $0x4] sm:$0xf]
    %v29 = vld [vmem:[%s0 + $0x8] sm:$0xf]
    %v30 = vld [vmem:[%s0 + $0xc] sm:$0xf]
    %v31 = vld [vmem:[%s0 + $0x10] sm:$0xf]
    %v32 = vld [vmem:[%s0 + $0x14] sm:$0xf]
    %v33 = vld [vmem:[%s0 + $0x18] sm:$0xf]
    %v34 = vld [vmem:[%s0 + $0x1c] sm:$0xf]
    %v35 = vld [vmem:[%s2] sm:$0xff]
    %v36 = vld [vmem:[%s2 + $0x8] sm:$0xff]
    %v37 = vld [vmem:[%s2 + $0x10] sm:$0xff]
    %v38 = vld [vmem:[%s2 + $0x18] sm:$0xff]
    %v39 = vld [vmem:[%s5] sm:$0x3]
    %v41 = vperm.slane %v39, 0
    %v42 = vperm.slane %v39, 1
    %v53 = vunpack.c.l.b16 %v27
    %v54 = vunpack.c.l.b16 %v28
    %v55 = vunpack.c.l.b16 %v29
    %v56 = vunpack.c.l.b16 %v30
    %v57 = vunpack.c.l.b16 %v31
    %v58 = vunpack.c.l.b16 %v32
    %v59 = vunpack.c.l.b16 %v33
    %v60 = vunpack.c.l.b16 %v34
    %v61 = vpack.c.b16 %v54, %v53
    %v62 = vpack.c.b16 %v56, %v55
    %v63 = vpack.c.b16 %v58, %v57
    %v64 = vpack.c.b16 %v60, %v59
    %v69 = vunpack.c.l.b16 %v35
    %v70 = vunpack.c.h.b16 %v35
    %v71 = vunpack.c.l.b16 %v36
    %v72 = vunpack.c.h.b16 %v36
    %v73 = vunpack.c.l.b16 %v37
    %v74 = vunpack.c.h.b16 %v37
    %v75 = vunpack.c.l.b16 %v38
    %v76 = vunpack.c.h.b16 %v38
    %v77 = vpack.c.b16 %v71, %v69
    %v78 = vpack.c.b16 %v72, %v70
    %v79 = vpack.c.b16 %v75, %v73
    %v80 = vpack.c.b16 %v76, %v74
    %vm85 = vcmask 261120
    %v87 = vsel %vm85, %v61, 0
    %v90 = vsel %vm85, %v62, 0
    %v93 = vsel %vm85, %v63, 0
    %v96 = vsel %vm85, %v64, 0
    %98 = vmatpush.bf16.msra.mxu0 0
    %99 = vmatpush.bf16.msra.mxu0 0
    %100 = vmatpush.bf16.msra.mxu0 0
    %101 = vmatpush.bf16.msra.mxu0 0
    %102 = vmatpush.bf16.msra.mxu0 0
    %103 = vmatpush.bf16.msra.mxu0 0
    %104 = vmatpush.bf16.msra.mxu0 %v79
    %105 = vmatpush.bf16.msra.mxu0 %v77
    %106 = vmatmul.bf16.gmra.mxu0 %v87
    %v107 = vpop.f32.mrf.mxu0
    %v108 = vadd.f32 %v41, %v107
    %v109 = vpop.f32.mrf.mxu0
    %v110 = vadd.f32 %v41, %v109
    %111 = vmatmul.bf16.gmra.mxu0 %v90
    %v112 = vpop.f32.mrf.mxu0
    %v113 = vadd.f32 %v41, %v112
    %v114 = vpop.f32.mrf.mxu0
    %v115 = vadd.f32 %v41, %v114
    %116 = vmatmul.bf16.gmra.mxu0 %v93
    %v117 = vpop.f32.mrf.mxu0
    %v118 = vadd.f32 %v41, %v117
    %v119 = vpop.f32.mrf.mxu0
    %v120 = vadd.f32 %v41, %v119
    %121 = vmatmul.bf16.gmra.mxu0 %v96
    %v122 = vpop.f32.mrf.mxu0
    %v123 = vadd.f32 %v41, %v122
    %v124 = vpop.f32.mrf.mxu0
    %v125 = vadd.f32 %v41, %v124
    %126 = vdwg.mxu0
    %127 = vmatpush.bf16.msra.mxu0 0
    %128 = vmatpush.bf16.msra.mxu0 0
    %129 = vmatpush.bf16.msra.mxu0 0
    %130 = vmatpush.bf16.msra.mxu0 0
    %131 = vmatpush.bf16.msra.mxu0 0
    %132 = vmatpush.bf16.msra.mxu0 0
    %133 = vmatpush.bf16.msra.mxu0 %v80
    %134 = vmatpush.bf16.msra.mxu0 %v78
    %135 = vmatmul.bf16.gmra.mxu0 %v87
    %v136 = vpop.f32.mrf.mxu0
    %v137 = vadd.f32 %v42, %v136
    %v138 = vpop.f32.mrf.mxu0
    %v139 = vadd.f32 %v42, %v138
    %140 = vmatmul.bf16.gmra.mxu0 %v90
    %v141 = vpop.f32.mrf.mxu0
    %v142 = vadd.f32 %v42, %v141
    %v143 = vpop.f32.mrf.mxu0
    %v144 = vadd.f32 %v42, %v143
    %145 = vmatmul.bf16.gmra.mxu0 %v93
    %v146 = vpop.f32.mrf.mxu0
    %v147 = vadd.f32 %v42, %v146
    %v148 = vpop.f32.mrf.mxu0
    %v149 = vadd.f32 %v42, %v148
    %150 = vmatmul.bf16.gmra.mxu0 %v96
    %v151 = vpop.f32.mrf.mxu0
    %v152 = vadd.f32 %v42, %v151
    %v153 = vpop.f32.mrf.mxu0
    %v154 = vadd.f32 %v42, %v153
    %155 = vdwg.mxu0
    %156 = vst [vmem:[#allocation2] sm:$0xff] %v108
    %157 = vst [vmem:[#allocation2 + $0x8] sm:$0xff] %v137
    %158 = vst [vmem:[#allocation2 + $0x10] sm:$0xff] %v110
    %159 = vst [vmem:[#allocation2 + $0x18] sm:$0xff] %v139
    %160 = vst [vmem:[#allocation2 + $0x20] sm:$0xff] %v113
    %161 = vst [vmem:[#allocation2 + $0x28] sm:$0xff] %v142
    %162 = vst [vmem:[#allocation2 + $0x30] sm:$0xff] %v115
    %163 = vst [vmem:[#allocation2 + $0x38] sm:$0xff] %v144
    %164 = vst [vmem:[#allocation2 + $0x40] sm:$0xff] %v118
    %165 = vst [vmem:[#allocation2 + $0x48] sm:$0xff] %v147
    %166 = vst [vmem:[#allocation2 + $0x50] sm:$0xff] %v120
    %167 = vst [vmem:[#allocation2 + $0x58] sm:$0xff] %v149
    %168 = vst [vmem:[#allocation2 + $0x60] sm:$0xff] %v123
    %169 = vst [vmem:[#allocation2 + $0x68] sm:$0xff] %v152
    %170 = vst [vmem:[#allocation2 + $0x70] sm:$0xff] %v125
    %171 = vst [vmem:[#allocation2 + $0x78] sm:$0xff] %v154
    %v172 = vld [vmem:[%s3] sm:$0xf]
    %v173 = vld [vmem:[%s3 + $0x4] sm:$0xf]
    %v174 = vld [vmem:[%s3 + $0x8] sm:$0xf]
    %v175 = vld [vmem:[%s3 + $0xc] sm:$0xf]
    %v176 = vld [vmem:[%s4] sm:$0xf]
    %v177 = vld [vmem:[%s4 + $0x4] sm:$0xf]
    %v178 = vld [vmem:[%s4 + $0x8] sm:$0xf]
    %v179 = vld [vmem:[%s4 + $0xc] sm:$0xf]
    %v180 = vld [vmem:[%s1] sm:$0xff]
    %s181 = scalar_lea.vmem %s1, 56
    %v182 = vld [vmem:[%s181] sm:$0xff]
    %s183 = smul.u32 0, 2
    %s184 = smul.addr %s183, 8
    %s185 = scalar_lea.vmem [#allocation2], %s184
    %v186 = vld [vmem:[%s185] sm:$0xff]
    %v191 = vunpack.c.l.b16 %v172
    %v192 = vunpack.c.l.b16 %v173
    %v193 = vunpack.c.l.b16 %v174
    %v194 = vunpack.c.l.b16 %v175
    %v195 = vpack.c.b16 %v192, %v191
    %v196 = vpack.c.b16 %v194, %v193
    %v200 = vsel %vm85, 0, 0
    %202 = vmatpush.bf16.msra.mxu0 0
    %203 = vmatpush.bf16.msra.mxu0 0
    %204 = vmatpush.bf16.msra.mxu0 0
    %205 = vmatpush.bf16.msra.mxu0 0
    %206 = vmatpush.bf16.msra.mxu0 0
    %207 = vmatpush.bf16.msra.mxu0 0
    %208 = vmatpush.bf16.msra.mxu0 %v196
    %209 = vmatpush.bf16.msra.mxu0 %v195
    %210 = vmatmul.bf16.gmra.mxu0 %v200
    %v211 = vpop.f32.mrf.mxu0
    %v212 = vadd.f32 0.0, %v211
    %v213 = vpop.f32.mrf.mxu0
    %214 = vdwg.mxu0
    %v215 = vadd.f32 %v186, %v212
    %s216 = smul.u32 7, 2
    %s217 = smul.addr %s216, 8
    %s218 = scalar_lea.vmem [#allocation2], %s217
    %v219 = vld [vmem:[%s218 + $0x8] sm:$0xff]
    %v224 = vunpack.c.l.b16 %v176
    %v225 = vunpack.c.l.b16 %v177
    %v226 = vunpack.c.l.b16 %v178
    %v227 = vunpack.c.l.b16 %v179
    %v228 = vpack.c.b16 %v225, %v224
    %v229 = vpack.c.b16 %v227, %v226
    %232 = vmatpush.bf16.msra.mxu0 0
    %233 = vmatpush.bf16.msra.mxu0 0
    %234 = vmatpush.bf16.msra.mxu0 0
    %235 = vmatpush.bf16.msra.mxu0 0
    %236 = vmatpush.bf16.msra.mxu0 0
    %237 = vmatpush.bf16.msra.mxu0 0
    %238 = vmatpush.bf16.msra.mxu0 %v229
    %239 = vmatpush.bf16.msra.mxu0 %v228
    %240 = vmatmul.bf16.gmra.mxu0 %v200
    %v241 = vpop.f32.mrf.mxu0
    %v242 = vadd.f32 0.0, %v241
    %v243 = vpop.f32.mrf.mxu0
    %244 = vdwg.mxu0
    %v245 = vadd.f32 %v219, %v242
    %v246 = vxor.u32 %v215, 2147483648
    %v247 = vmul.f32 %v246, 1.442695
    %v248 = vpow.pop %v247
    %v249 = vadd.f32 %v248, 1.0
    %v250 = vrcp.pop %v249
    %v251 = vmul.f32 %v249, %v250
    %v252 = vsub.f32 1.0, %v251
    %v253 = vmul.f32 %v250, %v252
    %v254 = vadd.f32 %v250, %v253
    %vm255 = vweird.f32 %v249
    %vm256 = vweird.f32 %v250
    %vm257 = vmor %vm255, %vm256
    %v258 = vsel %vm257, %v250, %v254
    %v259 = vand.u32 2147483647, %v249
    %vm260 = vcmp.eq.f32.partialorder %v259, 8.507059e+37
    %v261 = vand.u32 %v249, 2147483648
    %v262 = vor.u32 1.1754944e-38, %v261
    %v263 = vsel %vm260, %v262, %v258
    %v264 = vmul.f32 1.0, %v263
    %v265 = vtanh.pop %v215
    %v266 = vmul.f32 %v264, 0.0
    %268 = vrot.lane.b32.xlu0 %v265, 64
    %v269 = vpop.permute.xlu0 %268
    %v271 = vmul.f32 %v264, %v269
    %273 = vrot.lane.b32.xlu0 %v271, 32
    %v274 = vpop.permute.xlu0 %273
    %v276 = vadd.f32 %v266, %v274
    %v277 = vtanh.pop %v276
    %279 = vrot.lane.b32.xlu0 %v277, 64
    %v280 = vpop.permute.xlu0 %279
    %v282 = vmul.f32 %v264, %v280
    %v283 = vxor.u32 %v245, 2147483648
    %v284 = vmul.f32 %v283, 1.442695
    %v285 = vpow.pop %v284
    %v286 = vadd.f32 %v285, 1.0
    %v287 = vrcp.pop %v286
    %v288 = vmul.f32 %v286, %v287
    %v289 = vsub.f32 1.0, %v288
    %v290 = vmul.f32 %v287, %v289
    %v291 = vadd.f32 %v287, %v290
    %vm292 = vweird.f32 %v286
    %vm293 = vweird.f32 %v287
    %vm294 = vmor %vm292, %vm293
    %v295 = vsel %vm294, %v287, %v291
    %v296 = vand.u32 2147483647, %v286
    %vm297 = vcmp.eq.f32.partialorder %v296, 8.507059e+37
    %v298 = vand.u32 %v286, 2147483648
    %v299 = vor.u32 1.1754944e-38, %v298
    %v300 = vsel %vm297, %v299, %v295
    %v301 = vmul.f32 1.0, %v300
    %v302 = vtanh.pop %v245
    %v303 = vmul.f32 %v301, 0.0
    %305 = vrot.lane.b32.xlu0 %v302, 64
    %v306 = vpop.permute.xlu0 %305
    %v308 = vmul.f32 %v301, %v306
    %310 = vrot.lane.b32.xlu0 %v308, 32
    %v311 = vpop.permute.xlu0 %310
    %v313 = vadd.f32 %v303, %v311
    %v314 = vtanh.pop %v313
    %316 = vrot.lane.b32.xlu0 %v314, 64
    %v317 = vpop.permute.xlu0 %316
    %v319 = vmul.f32 %v301, %v317
    %321 = vset.pattern.permute.xlu0 0
    %322 = vperm.xlu0 %321, %v182
    %v323 = vpop.permute.xlu0 %322
    %v325 = vmul.f32 %v319, %v323
    %v326 = vmul.f32 %v313, %v323
    %328 = vset.pattern.permute.xlu0 0
    %329 = vperm.xlu0 %328, %v180
    %v330 = vpop.permute.xlu0 %329
    %v332 = vmul.f32 %v282, %v330
    %334 = vrot.lane.b32.xlu0 %v332, 32
    %v335 = vpop.permute.xlu0 %334
    %337 = vst.msk [vmem:[%s6] sm:$0xff] %vm85, %v335
    %339 = vrot.lane.b32.xlu0 %v325, 64
    %v340 = vpop.permute.xlu0 %339
    %s342 = scalar_lea.vmem %s6, 56
    %vm343 = vcmask 523520
    %344 = vst.msk [vmem:[%s342] sm:$0xff] %vm343, %v340
    %v345 = vadd.f32 %v332, 0.0
    %v346 = vadd.f32 %v325, 0.0
    %s347 = scalar_lea.vmem %s1, 8
    %v348 = vld [vmem:[%s347] sm:$0xff]
    %s349 = scalar_lea.vmem %s1, 48
    %v350 = vld [vmem:[%s349] sm:$0xff]
    %s351 = smul.u32 1, 2
    %s352 = smul.addr %s351, 8
    %s353 = scalar_lea.vmem [#allocation2], %s352
    %v354 = vld [vmem:[%s353] sm:$0xff]
    %v355 = vpack.c.bf16 %v282, %v282
    %357 = vrot.lane.b32.xlu0 %v355, 32
    %v358 = vpop.permute.xlu0 %357
    %v360 = vsel %vm85, %v358, 0
    %362 = vmatpush.bf16.msra.mxu0 0
    %363 = vmatpush.bf16.msra.mxu0 0
    %364 = vmatpush.bf16.msra.mxu0 0
    %365 = vmatpush.bf16.msra.mxu0 0
    %366 = vmatpush.bf16.msra.mxu0 0
    %367 = vmatpush.bf16.msra.mxu0 0
    %368 = vmatpush.bf16.msra.mxu0 %v196
    %369 = vmatpush.bf16.msra.mxu0 %v195
    %370 = vmatmul.bf16.gmra.mxu0 %v360
    %v371 = vpop.f32.mrf.mxu0
    %v372 = vadd.f32 0.0, %v371
    %v373 = vpop.f32.mrf.mxu0
    %374 = vdwg.mxu0
    %v375 = vadd.f32 %v354, %v372
    %s376 = smul.u32 6, 2
    %s377 = smul.addr %s376, 8
    %s378 = scalar_lea.vmem [#allocation2], %s377
    %v379 = vld [vmem:[%s378 + $0x8] sm:$0xff]
    %v380 = vpack.c.bf16 %v325, %v325
    %382 = vrot.lane.b32.xlu0 %v380, 32
    %v383 = vpop.permute.xlu0 %382
    %v385 = vsel %vm85, %v383, 0
    %387 = vmatpush.bf16.msra.mxu0 0
    %388 = vmatpush.bf16.msra.mxu0 0
    %389 = vmatpush.bf16.msra.mxu0 0
    %390 = vmatpush.bf16.msra.mxu0 0
    %391 = vmatpush.bf16.msra.mxu0 0
    %392 = vmatpush.bf16.msra.mxu0 0
    %393 = vmatpush.bf16.msra.mxu0 %v229
    %394 = vmatpush.bf16.msra.mxu0 %v228
    %395 = vmatmul.bf16.gmra.mxu0 %v385
    %v396 = vpop.f32.mrf.mxu0
    %v397 = vadd.f32 0.0, %v396
    %v398 = vpop.f32.mrf.mxu0
    %399 = vdwg.mxu0
    %v400 = vadd.f32 %v379, %v397
    %v401 = vxor.u32 %v375, 2147483648
    %v402 = vmul.f32 %v401, 1.442695
    %v403 = vpow.pop %v402
    %v404 = vadd.f32 %v403, 1.0
    %v405 = vrcp.pop %v404
    %v406 = vmul.f32 %v404, %v405
    %v407 = vsub.f32 1.0, %v406
    %v408 = vmul.f32 %v405, %v407
    %v409 = vadd.f32 %v405, %v408
    %vm410 = vweird.f32 %v404
    %vm411 = vweird.f32 %v405
    %vm412 = vmor %vm410, %vm411
    %v413 = vsel %vm412, %v405, %v409
    %v414 = vand.u32 2147483647, %v404
    %vm415 = vcmp.eq.f32.partialorder %v414, 8.507059e+37
    %v416 = vand.u32 %v404, 2147483648
    %v417 = vor.u32 1.1754944e-38, %v416
    %v418 = vsel %vm415, %v417, %v413
    %v419 = vmul.f32 1.0, %v418
    %v420 = vtanh.pop %v375
    %v421 = vmul.f32 %v419, %v276
    %423 = vrot.lane.b32.xlu0 %v420, 64
    %v424 = vpop.permute.xlu0 %423
    %v426 = vmul.f32 %v419, %v424
    %428 = vrot.lane.b32.xlu0 %v426, 32
    %v429 = vpop.permute.xlu0 %428
    %v431 = vadd.f32 %v421, %v429
    %v432 = vtanh.pop %v431
    %434 = vrot.lane.b32.xlu0 %v432, 64
    %v435 = vpop.permute.xlu0 %434
    %v437 = vmul.f32 %v419, %v435
    %v438 = vxor.u32 %v400, 2147483648
    %v439 = vmul.f32 %v438, 1.442695
    %v440 = vpow.pop %v439
    %v441 = vadd.f32 %v440, 1.0
    %v442 = vrcp.pop %v441
    %v443 = vmul.f32 %v441, %v442
    %v444 = vsub.f32 1.0, %v443
    %v445 = vmul.f32 %v442, %v444
    %v446 = vadd.f32 %v442, %v445
    %vm447 = vweird.f32 %v441
    %vm448 = vweird.f32 %v442
    %vm449 = vmor %vm447, %vm448
    %v450 = vsel %vm449, %v442, %v446
    %v451 = vand.u32 2147483647, %v441
    %vm452 = vcmp.eq.f32.partialorder %v451, 8.507059e+37
    %v453 = vand.u32 %v441, 2147483648
    %v454 = vor.u32 1.1754944e-38, %v453
    %v455 = vsel %vm452, %v454, %v450
    %v456 = vmul.f32 1.0, %v455
    %v457 = vtanh.pop %v400
    %v458 = vmul.f32 %v456, %v326
    %460 = vrot.lane.b32.xlu0 %v457, 64
    %v461 = vpop.permute.xlu0 %460
    %v463 = vmul.f32 %v456, %v461
    %465 = vrot.lane.b32.xlu0 %v463, 32
    %v466 = vpop.permute.xlu0 %465
    %v468 = vadd.f32 %v458, %v466
    %v469 = vtanh.pop %v468
    %471 = vrot.lane.b32.xlu0 %v469, 64
    %v472 = vpop.permute.xlu0 %471
    %v474 = vmul.f32 %v456, %v472
    %476 = vset.pattern.permute.xlu0 0
    %477 = vperm.xlu0 %476, %v350
    %v478 = vpop.permute.xlu0 %477
    %v480 = vmul.f32 %v474, %v478
    %v481 = vmul.f32 %v468, %v478
    %483 = vset.pattern.permute.xlu0 0
    %484 = vperm.xlu0 %483, %v348
    %v485 = vpop.permute.xlu0 %484
    %v487 = vmul.f32 %v437, %v485
    %489 = vrot.lane.b32.xlu0 %v487, 32
    %v490 = vpop.permute.xlu0 %489
    %s492 = scalar_lea.vmem %s6, 8
    %493 = vst.msk [vmem:[%s492] sm:$0xff] %vm85, %v490
    %495 = vrot.lane.b32.xlu0 %v480, 64
    %v496 = vpop.permute.xlu0 %495
    %s498 = scalar_lea.vmem %s6, 48
    %499 = vst.msk [vmem:[%s498] sm:$0xff] %vm343, %v496
    %v500 = vadd.f32 %v345, %v487
    %v501 = vadd.f32 %v346, %v480
    %s502 = scalar_lea.vmem %s1, 16
    %v503 = vld [vmem:[%s502] sm:$0xff]
    %s504 = scalar_lea.vmem %s1, 40
    %v505 = vld [vmem:[%s504] sm:$0xff]
    %s506 = smul.u32 2, 2
    %s507 = smul.addr %s506, 8
    %s508 = scalar_lea.vmem [#allocation2], %s507
    %v509 = vld [vmem:[%s508] sm:$0xff]
    %v510 = vpack.c.bf16 %v437, %v437
    %512 = vrot.lane.b32.xlu0 %v510, 32
    %v513 = vpop.permute.xlu0 %512
    %v515 = vsel %vm85, %v513, 0
    %517 = vmatpush.bf16.msra.mxu0 0
    %518 = vmatpush.bf16.msra.mxu0 0
    %519 = vmatpush.bf16.msra.mxu0 0
    %520 = vmatpush.bf16.msra.mxu0 0
    %521 = vmatpush.bf16.msra.mxu0 0
    %522 = vmatpush.bf16.msra.mxu0 0
    %523 = vmatpush.bf16.msra.mxu0 %v196
    %524 = vmatpush.bf16.msra.mxu0 %v195
    %525 = vmatmul.bf16.gmra.mxu0 %v515
    %v526 = vpop.f32.mrf.mxu0
    %v527 = vadd.f32 0.0, %v526
    %v528 = vpop.f32.mrf.mxu0
    %529 = vdwg.mxu0
    %v530 = vadd.f32 %v509, %v527
    %s531 = smul.u32 5, 2
    %s532 = smul.addr %s531, 8
    %s533 = scalar_lea.vmem [#allocation2], %s532
    %v534 = vld [vmem:[%s533 + $0x8] sm:$0xff]
    %v535 = vpack.c.bf16 %v480, %v480
    %537 = vrot.lane.b32.xlu0 %v535, 32
    %v538 = vpop.permute.xlu0 %537
    %v540 = vsel %vm85, %v538, 0
    %542 = vmatpush.bf16.msra.mxu0 0
    %543 = vmatpush.bf16.msra.mxu0 0
    %544 = vmatpush.bf16.msra.mxu0 0
    %545 = vmatpush.bf16.msra.mxu0 0
    %546 = vmatpush.bf16.msra.mxu0 0
    %547 = vmatpush.bf16.msra.mxu0 0
    %548 = vmatpush.bf16.msra.mxu0 %v229
    %549 = vmatpush.bf16.msra.mxu0 %v228
    %550 = vmatmul.bf16.gmra.mxu0 %v540
    %v551 = vpop.f32.mrf.mxu0
    %v552 = vadd.f32 0.0, %v551
    %v553 = vpop.f32.mrf.mxu0
    %554 = vdwg.mxu0
    %v555 = vadd.f32 %v534, %v552
    %v556 = vxor.u32 %v530, 2147483648
    %v557 = vmul.f32 %v556, 1.442695
    %v558 = vpow.pop %v557
    %v559 = vadd.f32 %v558, 1.0
    %v560 = vrcp.pop %v559
    %v561 = vmul.f32 %v559, %v560
    %v562 = vsub.f32 1.0, %v561
    %v563 = vmul.f32 %v560, %v562
    %v564 = vadd.f32 %v560, %v563
    %vm565 = vweird.f32 %v559
    %vm566 = vweird.f32 %v560
    %vm567 = vmor %vm565, %vm566
    %v568 = vsel %vm567, %v560, %v564
    %v569 = vand.u32 2147483647, %v559
    %vm570 = vcmp.eq.f32.partialorder %v569, 8.507059e+37
    %v571 = vand.u32 %v559, 2147483648
    %v572 = vor.u32 1.1754944e-38, %v571
    %v573 = vsel %vm570, %v572, %v568
    %v574 = vmul.f32 1.0, %v573
    %v575 = vtanh.pop %v530
    %v576 = vmul.f32 %v574, %v431
    %578 = vrot.lane.b32.xlu0 %v575, 64
    %v579 = vpop.permute.xlu0 %578
    %v581 = vmul.f32 %v574, %v579
    %583 = vrot.lane.b32.xlu0 %v581, 32
    %v584 = vpop.permute.xlu0 %583
    %v586 = vadd.f32 %v576, %v584
    %v587 = vtanh.pop %v586
    %589 = vrot.lane.b32.xlu0 %v587, 64
    %v590 = vpop.permute.xlu0 %589
    %v592 = vmul.f32 %v574, %v590
    %v593 = vxor.u32 %v555, 2147483648
    %v594 = vmul.f32 %v593, 1.442695
    %v595 = vpow.pop %v594
    %v596 = vadd.f32 %v595, 1.0
    %v597 = vrcp.pop %v596
    %v598 = vmul.f32 %v596, %v597
    %v599 = vsub.f32 1.0, %v598
    %v600 = vmul.f32 %v597, %v599
    %v601 = vadd.f32 %v597, %v600
    %vm602 = vweird.f32 %v596
    %vm603 = vweird.f32 %v597
    %vm604 = vmor %vm602, %vm603
    %v605 = vsel %vm604, %v597, %v601
    %v606 = vand.u32 2147483647, %v596
    %vm607 = vcmp.eq.f32.partialorder %v606, 8.507059e+37
    %v608 = vand.u32 %v596, 2147483648
    %v609 = vor.u32 1.1754944e-38, %v608
    %v610 = vsel %vm607, %v609, %v605
    %v611 = vmul.f32 1.0, %v610
    %v612 = vtanh.pop %v555
    %v613 = vmul.f32 %v611, %v481
    %615 = vrot.lane.b32.xlu0 %v612, 64
    %v616 = vpop.permute.xlu0 %615
    %v618 = vmul.f32 %v611, %v616
    %620 = vrot.lane.b32.xlu0 %v618, 32
    %v621 = vpop.permute.xlu0 %620
    %v623 = vadd.f32 %v613, %v621
    %v624 = vtanh.pop %v623
    %626 = vrot.lane.b32.xlu0 %v624, 64
    %v627 = vpop.permute.xlu0 %626
    %v629 = vmul.f32 %v611, %v627
    %631 = vset.pattern.permute.xlu0 0
    %632 = vperm.xlu0 %631, %v505
    %v633 = vpop.permute.xlu0 %632
    %v635 = vmul.f32 %v629, %v633
    %v636 = vmul.f32 %v623, %v633
    %638 = vset.pattern.permute.xlu0 0
    %639 = vperm.xlu0 %638, %v503
    %v640 = vpop.permute.xlu0 %639
    %v642 = vmul.f32 %v592, %v640
    %644 = vrot.lane.b32.xlu0 %v642, 32
    %v645 = vpop.permute.xlu0 %644
    %s647 = scalar_lea.vmem %s6, 16
    %648 = vst.msk [vmem:[%s647] sm:$0xff] %vm85, %v645
    %650 = vrot.lane.b32.xlu0 %v635, 64
    %v651 = vpop.permute.xlu0 %650
    %s653 = scalar_lea.vmem %s6, 40
    %654 = vst.msk [vmem:[%s653] sm:$0xff] %vm343, %v651
    %v655 = vadd.f32 %v500, %v642
    %v656 = vadd.f32 %v501, %v635
    %s657 = scalar_lea.vmem %s1, 24
    %v658 = vld [vmem:[%s657] sm:$0xff]
    %s659 = scalar_lea.vmem %s1, 32
    %v660 = vld [vmem:[%s659] sm:$0xff]
    %s661 = smul.u32 3, 2
    %s662 = smul.addr %s661, 8
    %s663 = scalar_lea.vmem [#allocation2], %s662
    %v664 = vld [vmem:[%s663] sm:$0xff]
    %v665 = vpack.c.bf16 %v592, %v592
    %667 = vrot.lane.b32.xlu0 %v665, 32
    %v668 = vpop.permute.xlu0 %667
    %v670 = vsel %vm85, %v668, 0
    %672 = vmatpush.bf16.msra.mxu0 0
    %673 = vmatpush.bf16.msra.mxu0 0
    %674 = vmatpush.bf16.msra.mxu0 0
    %675 = vmatpush.bf16.msra.mxu0 0
    %676 = vmatpush.bf16.msra.mxu0 0
    %677 = vmatpush.bf16.msra.mxu0 0
    %678 = vmatpush.bf16.msra.mxu0 %v196
    %679 = vmatpush.bf16.msra.mxu0 %v195
    %680 = vmatmul.bf16.gmra.mxu0 %v670
    %v681 = vpop.f32.mrf.mxu0
    %v682 = vadd.f32 0.0, %v681
    %v683 = vpop.f32.mrf.mxu0
    %684 = vdwg.mxu0
    %v685 = vadd.f32 %v664, %v682
    %s686 = smul.u32 4, 2
    %s687 = smul.addr %s686, 8
    %s688 = scalar_lea.vmem [#allocation2], %s687
    %v689 = vld [vmem:[%s688 + $0x8] sm:$0xff]
    %v690 = vpack.c.bf16 %v635, %v635
    %692 = vrot.lane.b32.xlu0 %v690, 32
    %v693 = vpop.permute.xlu0 %692
    %v695 = vsel %vm85, %v693, 0
    %697 = vmatpush.bf16.msra.mxu0 0
    %698 = vmatpush.bf16.msra.mxu0 0
    %699 = vmatpush.bf16.msra.mxu0 0
    %700 = vmatpush.bf16.msra.mxu0 0
    %701 = vmatpush.bf16.msra.mxu0 0
    %702 = vmatpush.bf16.msra.mxu0 0
    %703 = vmatpush.bf16.msra.mxu0 %v229
    %704 = vmatpush.bf16.msra.mxu0 %v228
    %705 = vmatmul.bf16.gmra.mxu0 %v695
    %v706 = vpop.f32.mrf.mxu0
    %v707 = vadd.f32 0.0, %v706
    %v708 = vpop.f32.mrf.mxu0
    %709 = vdwg.mxu0
    %v710 = vadd.f32 %v689, %v707
    %v711 = vxor.u32 %v685, 2147483648
    %v712 = vmul.f32 %v711, 1.442695
    %v713 = vpow.pop %v712
    %v714 = vadd.f32 %v713, 1.0
    %v715 = vrcp.pop %v714
    %v716 = vmul.f32 %v714, %v715
    %v717 = vsub.f32 1.0, %v716
    %v718 = vmul.f32 %v715, %v717
    %v719 = vadd.f32 %v715, %v718
    %vm720 = vweird.f32 %v714
    %vm721 = vweird.f32 %v715
    %vm722 = vmor %vm720, %vm721
    %v723 = vsel %vm722, %v715, %v719
    %v724 = vand.u32 2147483647, %v714
    %vm725 = vcmp.eq.f32.partialorder %v724, 8.507059e+37
    %v726 = vand.u32 %v714, 2147483648
    %v727 = vor.u32 1.1754944e-38, %v726
    %v728 = vsel %vm725, %v727, %v723
    %v729 = vmul.f32 1.0, %v728
    %v730 = vtanh.pop %v685
    %v731 = vmul.f32 %v729, %v586
    %733 = vrot.lane.b32.xlu0 %v730, 64
    %v734 = vpop.permute.xlu0 %733
    %v736 = vmul.f32 %v729, %v734
    %738 = vrot.lane.b32.xlu0 %v736, 32
    %v739 = vpop.permute.xlu0 %738
    %v741 = vadd.f32 %v731, %v739
    %v742 = vtanh.pop %v741
    %744 = vrot.lane.b32.xlu0 %v742, 64
    %v745 = vpop.permute.xlu0 %744
    %v747 = vmul.f32 %v729, %v745
    %v748 = vxor.u32 %v710, 2147483648
    %v749 = vmul.f32 %v748, 1.442695
    %v750 = vpow.pop %v749
    %v751 = vadd.f32 %v750, 1.0
    %v752 = vrcp.pop %v751
    %v753 = vmul.f32 %v751, %v752
    %v754 = vsub.f32 1.0, %v753
    %v755 = vmul.f32 %v752, %v754
    %v756 = vadd.f32 %v752, %v755
    %vm757 = vweird.f32 %v751
    %vm758 = vweird.f32 %v752
    %vm759 = vmor %vm757, %vm758
    %v760 = vsel %vm759, %v752, %v756
    %v761 = vand.u32 2147483647, %v751
    %vm762 = vcmp.eq.f32.partialorder %v761, 8.507059e+37
    %v763 = vand.u32 %v751, 2147483648
    %v764 = vor.u32 1.1754944e-38, %v763
    %v765 = vsel %vm762, %v764, %v760
    %v766 = vmul.f32 1.0, %v765
    %v767 = vtanh.pop %v710
    %v768 = vmul.f32 %v766, %v636
    %770 = vrot.lane.b32.xlu0 %v767, 64
    %v771 = vpop.permute.xlu0 %770
    %v773 = vmul.f32 %v766, %v771
    %775 = vrot.lane.b32.xlu0 %v773, 32
    %v776 = vpop.permute.xlu0 %775
    %v778 = vadd.f32 %v768, %v776
    %v779 = vtanh.pop %v778
    %781 = vrot.lane.b32.xlu0 %v779, 64
    %v782 = vpop.permute.xlu0 %781
    %v784 = vmul.f32 %v766, %v782
    %786 = vset.pattern.permute.xlu0 0
    %787 = vperm.xlu0 %786, %v660
    %v788 = vpop.permute.xlu0 %787
    %v790 = vmul.f32 %v784, %v788
    %v791 = vmul.f32 %v778, %v788
    %793 = vset.pattern.permute.xlu0 0
    %794 = vperm.xlu0 %793, %v658
    %v795 = vpop.permute.xlu0 %794
    %v797 = vmul.f32 %v747, %v795
    %799 = vrot.lane.b32.xlu0 %v797, 32
    %v800 = vpop.permute.xlu0 %799
    %s802 = scalar_lea.vmem %s6, 24
    %803 = vst.msk [vmem:[%s802] sm:$0xff] %vm85, %v800
    %805 = vrot.lane.b32.xlu0 %v790, 64
    %v806 = vpop.permute.xlu0 %805
    %s808 = scalar_lea.vmem %s6, 32
    %809 = vst.msk [vmem:[%s808] sm:$0xff] %vm343, %v806
    %v810 = vadd.f32 %v655, %v797
    %v811 = vadd.f32 %v656, %v790
    %v812 = vld [vmem:[%s659] sm:$0xff]
    %v813 = vld [vmem:[%s657] sm:$0xff]
    %v814 = vld [vmem:[%s688] sm:$0xff]
    %v815 = vpack.c.bf16 %v747, %v747
    %817 = vrot.lane.b32.xlu0 %v815, 32
    %v818 = vpop.permute.xlu0 %817
    %v820 = vsel %vm85, %v818, 0
    %822 = vmatpush.bf16.msra.mxu0 0
    %823 = vmatpush.bf16.msra.mxu0 0
    %824 = vmatpush.bf16.msra.mxu0 0
    %825 = vmatpush.bf16.msra.mxu0 0
    %826 = vmatpush.bf16.msra.mxu0 0
    %827 = vmatpush.bf16.msra.mxu0 0
    %828 = vmatpush.bf16.msra.mxu0 %v196
    %829 = vmatpush.bf16.msra.mxu0 %v195
    %830 = vmatmul.bf16.gmra.mxu0 %v820
    %v831 = vpop.f32.mrf.mxu0
    %v832 = vadd.f32 0.0, %v831
    %v833 = vpop.f32.mrf.mxu0
    %834 = vdwg.mxu0
    %v835 = vadd.f32 %v814, %v832
    %v836 = vld [vmem:[%s663 + $0x8] sm:$0xff]
    %v837 = vpack.c.bf16 %v790, %v790
    %839 = vrot.lane.b32.xlu0 %v837, 32
    %v840 = vpop.permute.xlu0 %839
    %v842 = vsel %vm85, %v840, 0
    %844 = vmatpush.bf16.msra.mxu0 0
    %845 = vmatpush.bf16.msra.mxu0 0
    %846 = vmatpush.bf16.msra.mxu0 0
    %847 = vmatpush.bf16.msra.mxu0 0
    %848 = vmatpush.bf16.msra.mxu0 0
    %849 = vmatpush.bf16.msra.mxu0 0
    %850 = vmatpush.bf16.msra.mxu0 %v229
    %851 = vmatpush.bf16.msra.mxu0 %v228
    %852 = vmatmul.bf16.gmra.mxu0 %v842
    %v853 = vpop.f32.mrf.mxu0
    %v854 = vadd.f32 0.0, %v853
    %v855 = vpop.f32.mrf.mxu0
    %856 = vdwg.mxu0
    %v857 = vadd.f32 %v836, %v854
    %v858 = vxor.u32 %v835, 2147483648
    %v859 = vmul.f32 %v858, 1.442695
    %v860 = vpow.pop %v859
    %v861 = vadd.f32 %v860, 1.0
    %v862 = vrcp.pop %v861
    %v863 = vmul.f32 %v861, %v862
    %v864 = vsub.f32 1.0, %v863
    %v865 = vmul.f32 %v862, %v864
    %v866 = vadd.f32 %v862, %v865
    %vm867 = vweird.f32 %v861
    %vm868 = vweird.f32 %v862
    %vm869 = vmor %vm867, %vm868
    %v870 = vsel %vm869, %v862, %v866
    %v871 = vand.u32 2147483647, %v861
    %vm872 = vcmp.eq.f32.partialorder %v871, 8.507059e+37
    %v873 = vand.u32 %v861, 2147483648
    %v874 = vor.u32 1.1754944e-38, %v873
    %v875 = vsel %vm872, %v874, %v870
    %v876 = vmul.f32 1.0, %v875
    %v877 = vtanh.pop %v835
    %v878 = vmul.f32 %v876, %v741
    %880 = vrot.lane.b32.xlu0 %v877, 64
    %v881 = vpop.permute.xlu0 %880
    %v883 = vmul.f32 %v876, %v881
    %885 = vrot.lane.b32.xlu0 %v883, 32
    %v886 = vpop.permute.xlu0 %885
    %v888 = vadd.f32 %v878, %v886
    %v889 = vtanh.pop %v888
    %891 = vrot.lane.b32.xlu0 %v889, 64
    %v892 = vpop.permute.xlu0 %891
    %v894 = vmul.f32 %v876, %v892
    %v895 = vxor.u32 %v857, 2147483648
    %v896 = vmul.f32 %v895, 1.442695
    %v897 = vpow.pop %v896
    %v898 = vadd.f32 %v897, 1.0
    %v899 = vrcp.pop %v898
    %v900 = vmul.f32 %v898, %v899
    %v901 = vsub.f32 1.0, %v900
    %v902 = vmul.f32 %v899, %v901
    %v903 = vadd.f32 %v899, %v902
    %vm904 = vweird.f32 %v898
    %vm905 = vweird.f32 %v899
    %vm906 = vmor %vm904, %vm905
    %v907 = vsel %vm906, %v899, %v903
    %v908 = vand.u32 2147483647, %v898
    %vm909 = vcmp.eq.f32.partialorder %v908, 8.507059e+37
    %v910 = vand.u32 %v898, 2147483648
    %v911 = vor.u32 1.1754944e-38, %v910
    %v912 = vsel %vm909, %v911, %v907
    %v913 = vmul.f32 1.0, %v912
    %v914 = vtanh.pop %v857
    %v915 = vmul.f32 %v913, %v791
    %917 = vrot.lane.b32.xlu0 %v914, 64
    %v918 = vpop.permute.xlu0 %917
    %v920 = vmul.f32 %v913, %v918
    %922 = vrot.lane.b32.xlu0 %v920, 32
    %v923 = vpop.permute.xlu0 %922
    %v925 = vadd.f32 %v915, %v923
    %v926 = vtanh.pop %v925
    %928 = vrot.lane.b32.xlu0 %v926, 64
    %v929 = vpop.permute.xlu0 %928
    %v931 = vmul.f32 %v913, %v929
    %933 = vset.pattern.permute.xlu0 0
    %934 = vperm.xlu0 %933, %v813
    %v935 = vpop.permute.xlu0 %934
    %v937 = vmul.f32 %v931, %v935
    %v938 = vmul.f32 %v925, %v935
    %940 = vset.pattern.permute.xlu0 0
    %941 = vperm.xlu0 %940, %v812
    %v942 = vpop.permute.xlu0 %941
    %v944 = vmul.f32 %v894, %v942
    %946 = vrot.lane.b32.xlu0 %v944, 32
    %v947 = vpop.permute.xlu0 %946
    %949 = vst.msk [vmem:[%s808] sm:$0xff] %vm85, %v947
    %951 = vrot.lane.b32.xlu0 %v937, 64
    %v952 = vpop.permute.xlu0 %951
    %954 = vst.msk [vmem:[%s802] sm:$0xff] %vm343, %v952
    %v955 = vadd.f32 %v810, %v944
    %v956 = vadd.f32 %v811, %v937
    %v957 = vld [vmem:[%s504] sm:$0xff]
    %v958 = vld [vmem:[%s502] sm:$0xff]
    %v959 = vld [vmem:[%s533] sm:$0xff]
    %v960 = vpack.c.bf16 %v894, %v894
    %962 = vrot.lane.b32.xlu0 %v960, 32
    %v963 = vpop.permute.xlu0 %962
    %v965 = vsel %vm85, %v963, 0
    %967 = vmatpush.bf16.msra.mxu0 0
    %968 = vmatpush.bf16.msra.mxu0 0
    %969 = vmatpush.bf16.msra.mxu0 0
    %970 = vmatpush.bf16.msra.mxu0 0
    %971 = vmatpush.bf16.msra.mxu0 0
    %972 = vmatpush.bf16.msra.mxu0 0
    %973 = vmatpush.bf16.msra.mxu0 %v196
    %974 = vmatpush.bf16.msra.mxu0 %v195
    %975 = vmatmul.bf16.gmra.mxu0 %v965
    %v976 = vpop.f32.mrf.mxu0
    %v977 = vadd.f32 0.0, %v976
    %v978 = vpop.f32.mrf.mxu0
    %979 = vdwg.mxu0
    %v980 = vadd.f32 %v959, %v977
    %v981 = vld [vmem:[%s508 + $0x8] sm:$0xff]
    %v982 = vpack.c.bf16 %v937, %v937
    %984 = vrot.lane.b32.xlu0 %v982, 32
    %v985 = vpop.permute.xlu0 %984
    %v987 = vsel %vm85, %v985, 0
    %989 = vmatpush.bf16.msra.mxu0 0
    %990 = vmatpush.bf16.msra.mxu0 0
    %991 = vmatpush.bf16.msra.mxu0 0
    %992 = vmatpush.bf16.msra.mxu0 0
    %993 = vmatpush.bf16.msra.mxu0 0
    %994 = vmatpush.bf16.msra.mxu0 0
    %995 = vmatpush.bf16.msra.mxu0 %v229
    %996 = vmatpush.bf16.msra.mxu0 %v228
    %997 = vmatmul.bf16.gmra.mxu0 %v987
    %v998 = vpop.f32.mrf.mxu0
    %v999 = vadd.f32 0.0, %v998
    %v1000 = vpop.f32.mrf.mxu0
    %1001 = vdwg.mxu0
    %v1002 = vadd.f32 %v981, %v999
    %v1003 = vxor.u32 %v980, 2147483648
    %v1004 = vmul.f32 %v1003, 1.442695
    %v1005 = vpow.pop %v1004
    %v1006 = vadd.f32 %v1005, 1.0
    %v1007 = vrcp.pop %v1006
    %v1008 = vmul.f32 %v1006, %v1007
    %v1009 = vsub.f32 1.0, %v1008
    %v1010 = vmul.f32 %v1007, %v1009
    %v1011 = vadd.f32 %v1007, %v1010
    %vm1012 = vweird.f32 %v1006
    %vm1013 = vweird.f32 %v1007
    %vm1014 = vmor %vm1012, %vm1013
    %v1015 = vsel %vm1014, %v1007, %v1011
    %v1016 = vand.u32 2147483647, %v1006
    %vm1017 = vcmp.eq.f32.partialorder %v1016, 8.507059e+37
    %v1018 = vand.u32 %v1006, 2147483648
    %v1019 = vor.u32 1.1754944e-38, %v1018
    %v1020 = vsel %vm1017, %v1019, %v1015
    %v1021 = vmul.f32 1.0, %v1020
    %v1022 = vtanh.pop %v980
    %v1023 = vmul.f32 %v1021, %v888
    %1025 = vrot.lane.b32.xlu0 %v1022, 64
    %v1026 = vpop.permute.xlu0 %1025
    %v1028 = vmul.f32 %v1021, %v1026
    %1030 = vrot.lane.b32.xlu0 %v1028, 32
    %v1031 = vpop.permute.xlu0 %1030
    %v1033 = vadd.f32 %v1023, %v1031
    %v1034 = vtanh.pop %v1033
    %1036 = vrot.lane.b32.xlu0 %v1034, 64
    %v1037 = vpop.permute.xlu0 %1036
    %v1039 = vmul.f32 %v1021, %v1037
    %v1040 = vxor.u32 %v1002, 2147483648
    %v1041 = vmul.f32 %v1040, 1.442695
    %v1042 = vpow.pop %v1041
    %v1043 = vadd.f32 %v1042, 1.0
    %v1044 = vrcp.pop %v1043
    %v1045 = vmul.f32 %v1043, %v1044
    %v1046 = vsub.f32 1.0, %v1045
    %v1047 = vmul.f32 %v1044, %v1046
    %v1048 = vadd.f32 %v1044, %v1047
    %vm1049 = vweird.f32 %v1043
    %vm1050 = vweird.f32 %v1044
    %vm1051 = vmor %vm1049, %vm1050
    %v1052 = vsel %vm1051, %v1044, %v1048
    %v1053 = vand.u32 2147483647, %v1043
    %vm1054 = vcmp.eq.f32.partialorder %v1053, 8.507059e+37
    %v1055 = vand.u32 %v1043, 2147483648
    %v1056 = vor.u32 1.1754944e-38, %v1055
    %v1057 = vsel %vm1054, %v1056, %v1052
    %v1058 = vmul.f32 1.0, %v1057
    %v1059 = vtanh.pop %v1002
    %v1060 = vmul.f32 %v1058, %v938
    %1062 = vrot.lane.b32.xlu0 %v1059, 64
    %v1063 = vpop.permute.xlu0 %1062
    %v1065 = vmul.f32 %v1058, %v1063
    %1067 = vrot.lane.b32.xlu0 %v1065, 32
    %v1068 = vpop.permute.xlu0 %1067
    %v1070 = vadd.f32 %v1060, %v1068
    %v1071 = vtanh.pop %v1070
    %1073 = vrot.lane.b32.xlu0 %v1071, 64
    %v1074 = vpop.permute.xlu0 %1073
    %v1076 = vmul.f32 %v1058, %v1074
    %1078 = vset.pattern.permute.xlu0 0
    %1079 = vperm.xlu0 %1078, %v958
    %v1080 = vpop.permute.xlu0 %1079
    %v1082 = vmul.f32 %v1076, %v1080
    %v1083 = vmul.f32 %v1070, %v1080
    %1085 = vset.pattern.permute.xlu0 0
    %1086 = vperm.xlu0 %1085, %v957
    %v1087 = vpop.permute.xlu0 %1086
    %v1089 = vmul.f32 %v1039, %v1087
    %1091 = vrot.lane.b32.xlu0 %v1089, 32
    %v1092 = vpop.permute.xlu0 %1091
    %1094 = vst.msk [vmem:[%s653] sm:$0xff] %vm85, %v1092
    %1096 = vrot.lane.b32.xlu0 %v1082, 64
    %v1097 = vpop.permute.xlu0 %1096
    %1099 = vst.msk [vmem:[%s647] sm:$0xff] %vm343, %v1097
    %v1100 = vadd.f32 %v955, %v1089
    %v1101 = vadd.f32 %v956, %v1082
    %v1102 = vld [vmem:[%s349] sm:$0xff]
    %v1103 = vld [vmem:[%s347] sm:$0xff]
    %v1104 = vld [vmem:[%s378] sm:$0xff]
    %v1105 = vpack.c.bf16 %v1039, %v1039
    %1107 = vrot.lane.b32.xlu0 %v1105, 32
    %v1108 = vpop.permute.xlu0 %1107
    %v1110 = vsel %vm85, %v1108, 0
    %1112 = vmatpush.bf16.msra.mxu0 0
    %1113 = vmatpush.bf16.msra.mxu0 0
    %1114 = vmatpush.bf16.msra.mxu0 0
    %1115 = vmatpush.bf16.msra.mxu0 0
    %1116 = vmatpush.bf16.msra.mxu0 0
    %1117 = vmatpush.bf16.msra.mxu0 0
    %1118 = vmatpush.bf16.msra.mxu0 %v196
    %1119 = vmatpush.bf16.msra.mxu0 %v195
    %1120 = vmatmul.bf16.gmra.mxu0 %v1110
    %v1121 = vpop.f32.mrf.mxu0
    %v1122 = vadd.f32 0.0, %v1121
    %v1123 = vpop.f32.mrf.mxu0
    %1124 = vdwg.mxu0
    %v1125 = vadd.f32 %v1104, %v1122
    %v1126 = vld [vmem:[%s353 + $0x8] sm:$0xff]
    %v1127 = vpack.c.bf16 %v1082, %v1082
    %1129 = vrot.lane.b32.xlu0 %v1127, 32
    %v1130 = vpop.permute.xlu0 %1129
    %v1132 = vsel %vm85, %v1130, 0
    %1134 = vmatpush.bf16.msra.mxu0 0
    %1135 = vmatpush.bf16.msra.mxu0 0
    %1136 = vmatpush.bf16.msra.mxu0 0
    %1137 = vmatpush.bf16.msra.mxu0 0
    %1138 = vmatpush.bf16.msra.mxu0 0
    %1139 = vmatpush.bf16.msra.mxu0 0
    %1140 = vmatpush.bf16.msra.mxu0 %v229
    %1141 = vmatpush.bf16.msra.mxu0 %v228
    %1142 = vmatmul.bf16.gmra.mxu0 %v1132
    %v1143 = vpop.f32.mrf.mxu0
    %v1144 = vadd.f32 0.0, %v1143
    %v1145 = vpop.f32.mrf.mxu0
    %1146 = vdwg.mxu0
    %v1147 = vadd.f32 %v1126, %v1144
    %v1148 = vxor.u32 %v1125, 2147483648
    %v1149 = vmul.f32 %v1148, 1.442695
    %v1150 = vpow.pop %v1149
    %v1151 = vadd.f32 %v1150, 1.0
    %v1152 = vrcp.pop %v1151
    %v1153 = vmul.f32 %v1151, %v1152
    %v1154 = vsub.f32 1.0, %v1153
    %v1155 = vmul.f32 %v1152, %v1154
    %v1156 = vadd.f32 %v1152, %v1155
    %vm1157 = vweird.f32 %v1151
    %vm1158 = vweird.f32 %v1152
    %vm1159 = vmor %vm1157, %vm1158
    %v1160 = vsel %vm1159, %v1152, %v1156
    %v1161 = vand.u32 2147483647, %v1151
    %vm1162 = vcmp.eq.f32.partialorder %v1161, 8.507059e+37
    %v1163 = vand.u32 %v1151, 2147483648
    %v1164 = vor.u32 1.1754944e-38, %v1163
    %v1165 = vsel %vm1162, %v1164, %v1160
    %v1166 = vmul.f32 1.0, %v1165
    %v1167 = vtanh.pop %v1125
    %v1168 = vmul.f32 %v1166, %v1033
    %1170 = vrot.lane.b32.xlu0 %v1167, 64
    %v1171 = vpop.permute.xlu0 %1170
    %v1173 = vmul.f32 %v1166, %v1171
    %1175 = vrot.lane.b32.xlu0 %v1173, 32
    %v1176 = vpop.permute.xlu0 %1175
    %v1178 = vadd.f32 %v1168, %v1176
    %v1179 = vtanh.pop %v1178
    %1181 = vrot.lane.b32.xlu0 %v1179, 64
    %v1182 = vpop.permute.xlu0 %1181
    %v1184 = vmul.f32 %v1166, %v1182
    %v1185 = vxor.u32 %v1147, 2147483648
    %v1186 = vmul.f32 %v1185, 1.442695
    %v1187 = vpow.pop %v1186
    %v1188 = vadd.f32 %v1187, 1.0
    %v1189 = vrcp.pop %v1188
    %v1190 = vmul.f32 %v1188, %v1189
    %v1191 = vsub.f32 1.0, %v1190
    %v1192 = vmul.f32 %v1189, %v1191
    %v1193 = vadd.f32 %v1189, %v1192
    %vm1194 = vweird.f32 %v1188
    %vm1195 = vweird.f32 %v1189
    %vm1196 = vmor %vm1194, %vm1195
    %v1197 = vsel %vm1196, %v1189, %v1193
    %v1198 = vand.u32 2147483647, %v1188
    %vm1199 = vcmp.eq.f32.partialorder %v1198, 8.507059e+37
    %v1200 = vand.u32 %v1188, 2147483648
    %v1201 = vor.u32 1.1754944e-38, %v1200
    %v1202 = vsel %vm1199, %v1201, %v1197
    %v1203 = vmul.f32 1.0, %v1202
    %v1204 = vtanh.pop %v1147
    %v1205 = vmul.f32 %v1203, %v1083
    %1207 = vrot.lane.b32.xlu0 %v1204, 64
    %v1208 = vpop.permute.xlu0 %1207
    %v1210 = vmul.f32 %v1203, %v1208
    %1212 = vrot.lane.b32.xlu0 %v1210, 32
    %v1213 = vpop.permute.xlu0 %1212
    %v1215 = vadd.f32 %v1205, %v1213
    %v1216 = vtanh.pop %v1215
    %1218 = vrot.lane.b32.xlu0 %v1216, 64
    %v1219 = vpop.permute.xlu0 %1218
    %v1221 = vmul.f32 %v1203, %v1219
    %1223 = vset.pattern.permute.xlu0 0
    %1224 = vperm.xlu0 %1223, %v1103
    %v1225 = vpop.permute.xlu0 %1224
    %v1227 = vmul.f32 %v1221, %v1225
    %v1228 = vmul.f32 %v1215, %v1225
    %1230 = vset.pattern.permute.xlu0 0
    %1231 = vperm.xlu0 %1230, %v1102
    %v1232 = vpop.permute.xlu0 %1231
    %v1234 = vmul.f32 %v1184, %v1232
    %1236 = vrot.lane.b32.xlu0 %v1234, 32
    %v1237 = vpop.permute.xlu0 %1236
    %1239 = vst.msk [vmem:[%s498] sm:$0xff] %vm85, %v1237
    %1241 = vrot.lane.b32.xlu0 %v1227, 64
    %v1242 = vpop.permute.xlu0 %1241
    %1244 = vst.msk [vmem:[%s492] sm:$0xff] %vm343, %v1242
    %v1245 = vadd.f32 %v1100, %v1234
    %v1246 = vadd.f32 %v1101, %v1227
    %v1247 = vld [vmem:[%s181] sm:$0xff]
    %v1248 = vld [vmem:[%s1] sm:$0xff]
    %v1249 = vld [vmem:[%s218] sm:$0xff]
    %v1250 = vpack.c.bf16 %v1184, %v1184
    %1252 = vrot.lane.b32.xlu0 %v1250, 32
    %v1253 = vpop.permute.xlu0 %1252
    %v1255 = vsel %vm85, %v1253, 0
    %1257 = vmatpush.bf16.msra.mxu0 0
    %1258 = vmatpush.bf16.msra.mxu0 0
    %1259 = vmatpush.bf16.msra.mxu0 0
    %1260 = vmatpush.bf16.msra.mxu0 0
    %1261 = vmatpush.bf16.msra.mxu0 0
    %1262 = vmatpush.bf16.msra.mxu0 0
    %1263 = vmatpush.bf16.msra.mxu0 %v196
    %1264 = vmatpush.bf16.msra.mxu0 %v195
    %1265 = vmatmul.bf16.gmra.mxu0 %v1255
    %v1266 = vpop.f32.mrf.mxu0
    %v1267 = vadd.f32 0.0, %v1266
    %v1268 = vpop.f32.mrf.mxu0
    %1269 = vdwg.mxu0
    %v1270 = vadd.f32 %v1249, %v1267
    %v1271 = vld [vmem:[%s185 + $0x8] sm:$0xff]
    %v1272 = vpack.c.bf16 %v1227, %v1227
    %1274 = vrot.lane.b32.xlu0 %v1272, 32
    %v1275 = vpop.permute.xlu0 %1274
    %v1277 = vsel %vm85, %v1275, 0
    %1279 = vmatpush.bf16.msra.mxu0 0
    %1280 = vmatpush.bf16.msra.mxu0 0
    %1281 = vmatpush.bf16.msra.mxu0 0
    %1282 = vmatpush.bf16.msra.mxu0 0
    %1283 = vmatpush.bf16.msra.mxu0 0
    %1284 = vmatpush.bf16.msra.mxu0 0
    %1285 = vmatpush.bf16.msra.mxu0 %v229
    %1286 = vmatpush.bf16.msra.mxu0 %v228
    %1287 = vmatmul.bf16.gmra.mxu0 %v1277
    %v1288 = vpop.f32.mrf.mxu0
    %v1289 = vadd.f32 0.0, %v1288
    %v1290 = vpop.f32.mrf.mxu0
    %1291 = vdwg.mxu0
    %v1292 = vadd.f32 %v1271, %v1289
    %v1293 = vxor.u32 %v1270, 2147483648
    %v1294 = vmul.f32 %v1293, 1.442695
    %v1295 = vpow.pop %v1294
    %v1296 = vadd.f32 %v1295, 1.0
    %v1297 = vrcp.pop %v1296
    %v1298 = vmul.f32 %v1296, %v1297
    %v1299 = vsub.f32 1.0, %v1298
    %v1300 = vmul.f32 %v1297, %v1299
    %v1301 = vadd.f32 %v1297, %v1300
    %vm1302 = vweird.f32 %v1296
    %vm1303 = vweird.f32 %v1297
    %vm1304 = vmor %vm1302, %vm1303
    %v1305 = vsel %vm1304, %v1297, %v1301
    %v1306 = vand.u32 2147483647, %v1296
    %vm1307 = vcmp.eq.f32.partialorder %v1306, 8.507059e+37
    %v1308 = vand.u32 %v1296, 2147483648
    %v1309 = vor.u32 1.1754944e-38, %v1308
    %v1310 = vsel %vm1307, %v1309, %v1305
    %v1311 = vmul.f32 1.0, %v1310
    %v1312 = vtanh.pop %v1270
    %v1313 = vmul.f32 %v1311, %v1178
    %1315 = vrot.lane.b32.xlu0 %v1312, 64
    %v1316 = vpop.permute.xlu0 %1315
    %v1318 = vmul.f32 %v1311, %v1316
    %1320 = vrot.lane.b32.xlu0 %v1318, 32
    %v1321 = vpop.permute.xlu0 %1320
    %v1323 = vadd.f32 %v1313, %v1321
    %v1324 = vtanh.pop %v1323
    %1326 = vrot.lane.b32.xlu0 %v1324, 64
    %v1327 = vpop.permute.xlu0 %1326
    %v1329 = vmul.f32 %v1311, %v1327
    %v1330 = vxor.u32 %v1292, 2147483648
    %v1331 = vmul.f32 %v1330, 1.442695
    %v1332 = vpow.pop %v1331
    %v1333 = vadd.f32 %v1332, 1.0
    %v1334 = vrcp.pop %v1333
    %v1335 = vmul.f32 %v1333, %v1334
    %v1336 = vsub.f32 1.0, %v1335
    %v1337 = vmul.f32 %v1334, %v1336
    %v1338 = vadd.f32 %v1334, %v1337
    %vm1339 = vweird.f32 %v1333
    %vm1340 = vweird.f32 %v1334
    %vm1341 = vmor %vm1339, %vm1340
    %v1342 = vsel %vm1341, %v1334, %v1338
    %v1343 = vand.u32 2147483647, %v1333
    %vm1344 = vcmp.eq.f32.partialorder %v1343, 8.507059e+37
    %v1345 = vand.u32 %v1333, 2147483648
    %v1346 = vor.u32 1.1754944e-38, %v1345
    %v1347 = vsel %vm1344, %v1346, %v1342
    %v1348 = vmul.f32 1.0, %v1347
    %v1349 = vtanh.pop %v1292
    %v1350 = vmul.f32 %v1348, %v1228
    %1352 = vrot.lane.b32.xlu0 %v1349, 64
    %v1353 = vpop.permute.xlu0 %1352
    %v1355 = vmul.f32 %v1348, %v1353
    %1357 = vrot.lane.b32.xlu0 %v1355, 32
    %v1358 = vpop.permute.xlu0 %1357
    %v1360 = vadd.f32 %v1350, %v1358
    %v1361 = vtanh.pop %v1360
    %1363 = vrot.lane.b32.xlu0 %v1361, 64
    %v1364 = vpop.permute.xlu0 %1363
    %v1366 = vmul.f32 %v1348, %v1364
    %1368 = vset.pattern.permute.xlu0 0
    %1369 = vperm.xlu0 %1368, %v1248
    %v1370 = vpop.permute.xlu0 %1369
    %v1372 = vmul.f32 %v1366, %v1370
    %1374 = vset.pattern.permute.xlu0 0
    %1375 = vperm.xlu0 %1374, %v1247
    %v1376 = vpop.permute.xlu0 %1375
    %v1378 = vmul.f32 %v1329, %v1376
    %1380 = vrot.lane.b32.xlu0 %v1378, 32
    %v1381 = vpop.permute.xlu0 %1380
    %1383 = vst.msk [vmem:[%s342] sm:$0xff] %vm85, %v1381
    %1385 = vrot.lane.b32.xlu0 %v1372, 64
    %v1386 = vpop.permute.xlu0 %1385
    %1388 = vst.msk [vmem:[%s6] sm:$0xff] %vm343, %v1386
    %v1389 = vadd.f32 %v1245, %v1378
    %v1390 = vadd.f32 %v1246, %v1372
    %1392 = vrot.lane.b32.xlu0 %v1389, 32
    %v1393 = vpop.permute.xlu0 %1392
    %1396 = vrot.lane.b32.xlu0 %v1390, 64
    %v1397 = vpop.permute.xlu0 %1396
    %v1399 = vsel %vm85, %v1393, %v1397
    %vm1400 = vcmask 523264
    %1401 = vst.msk [vmem:[#allocation3] sm:$0xff] %vm1400, %v1399
    // Predicated region
    $region26: #{bilstm_forward.3} parent=1 // pred_check
      _
    $region27: #{bilstm_forward.3} parent=1 // pred_check_branch
      %1403 = sbr.rel (0) target = $region29
    $region28: #{bilstm_forward.3} parent=1 // pred_region
      _
    $region29: #{bilstm_forward.3} parent=1 // pred_fallthru
      _
    // Predicated region
    $region30: #{bilstm_forward.3} parent=1 // pred_check
      _
    $region31: #{bilstm_forward.3} parent=1 // pred_check_branch
      %1405 = sbr.rel (0) target = $region33
    $region32: #{bilstm_forward.3} parent=1 // pred_region
      %1407 = vsyncadd [#allocation4], 0
      %s1409 = sshll.u32 [#allocation3], 4
      %s1410 = int_to_ptr.vmem [resolvable:$true] %s1409
      %s1411 = sshll.u32 %s7, 4
      %s1412 = int_to_ptr.hbm [resolvable:$true] %s1411
      %1414 = dma.vmem_to_hbm [thread:$0]  %s1410, 128, %s1412, [#allocation4]
    $region33: #{bilstm_forward.3} parent=1 // pred_fallthru
      _
    // Predicated region
    $region34: #{bilstm_forward.3} parent=1 // pred_check
      _
    $region35: #{bilstm_forward.3} parent=1 // pred_check_branch
      %1416 = sbr.rel (0) target = $region37
    $region36: #{bilstm_forward.3} parent=1 // pred_region
      _
    $region37: #{bilstm_forward.3} parent=1 // pred_fallthru
      _
    // Predicated region
    $region38: #{bilstm_forward.3} parent=1 // pred_check
      _
    $region39: #{bilstm_forward.3} parent=1 // pred_check_branch
      %1418 = sbr.rel (0) target = $region41
    $region40: #{bilstm_forward.3} parent=1 // pred_region
      %1420 = dma.done [#allocation4], 128
    $region41: #{bilstm_forward.3} parent=1 // pred_fallthru
      _
    %1421 = vsyncpa [#allocation4], 1

</llo_original>
